<compile_context>
chip_gen: v7x
topology: tpu7x:2x2x1
jax: 0.10.0
libtpu: 0.0.40
codegen_flags: <defaults>
</compile_context>

<pallas_src>
import functools

import jax
import jax.numpy as jnp
from jax.experimental import pallas as pl
from jax.experimental.pallas import tpu as pltpu

# Hidden layer widths from the module's __init__.
HIDDEN = [16, 64, 256, 1024, 256, 128, 64, 32]
N_LAYERS = 9                        # 8 hidden + 1 output layer
SMALL_LAYERS = (0, 1, 6, 7, 8)      # fc1, fc2, fc7, fc8, fc9 -> (5,128,128) slab
PAD128 = 128                        # padded width for small layers / input / output
BIG_DIM = 1024                      # fc4 out / fc5 in
IN_PAD = PAD128                     # input lanes padded to 128
OUT_PAD = PAD128                    # lane-dense padded output width


def mlp_kernel(x_ref, ws_ref, w3_ref, w6_ref, w4_hbm, w5_hbm, b_ref, o_ref,
               w4_vmem, w5_vmem, sem):
    """x:(TB,128) f32 | ws:(5,128,128) bf16 | w3:(128,256) bf16 |
    w6:(256,128) bf16 | w4:(256,1024) bf16 HBM | w5:(1024,256) bf16 HBM |
    b:(9,1024) f32 | o:(TB,128) f32."""

    # Kick off the big-layer weight DMAs immediately so they overlap the
    # fc1-fc3 matmuls (P4 manual prefetch; w4/w5 live in pl.ANY / HBM).
    cp4 = pltpu.make_async_copy(w4_hbm, w4_vmem, sem.at[0])
    cp5 = pltpu.make_async_copy(w5_hbm, w5_vmem, sem.at[1])
    cp4.start()
    cp5.start()

    def dense(h, w, layer, width, relu=True):
        # bf16 only at the MXU boundary; f32 accumulate, f32 bias/ReLU.
        y = jnp.dot(h.astype(jnp.bfloat16), w, preferred_element_type=jnp.float32)
        y = y + b_ref[layer:layer + 1, :width]
        if relu:
            y = jnp.maximum(y, 0.0)
        return y

    h = x_ref[...]                                   # (TB, 128), dead lanes 0
    h = dense(h, ws_ref[0], 0, PAD128)               # fc1:   4 ->   16
    h = dense(h, ws_ref[1], 1, PAD128)               # fc2:  16 ->   64
    h = dense(h, w3_ref[...], 2, 256)                # fc3:  64 ->  256
    cp4.wait()
    h = dense(h, w4_vmem[...], 3, BIG_DIM)           # fc4: 256 -> 1024
    cp5.wait()
    h = dense(h, w5_vmem[...], 4, 256)               # fc5: 1024 -> 256
    h = dense(h, w6_ref[...], 5, PAD128)             # fc6: 256 ->  128
    h = dense(h, ws_ref[2], 6, PAD128)               # fc7: 128 ->   64
    h = dense(h, ws_ref[3], 7, PAD128)               # fc8:  64 ->   32
    h = dense(h, ws_ref[4], 8, PAD128, relu=False)   # fc9:  32 -> n_output
    o_ref[...] = h                                   # lane-dense unmasked store


def pack_params(weights, biases):
    """One-time packing (call at init / after each optimizer step), NOT per forward.

    weights[i]: (in_i, out_i) f32; biases[i]: (1, out_i) f32.
    """
    ws = jnp.zeros((len(SMALL_LAYERS), PAD128, PAD128), jnp.bfloat16)
    for slot, li in enumerate(SMALL_LAYERS):
        w = weights[li]
        ws = ws.at[slot, : w.shape[0], : w.shape[1]].set(w.astype(jnp.bfloat16))
    w3 = jnp.zeros((PAD128, 256), jnp.bfloat16)
    w3 = w3.at[: weights[2].shape[0], :].set(weights[2].astype(jnp.bfloat16))
    w6 = weights[5].astype(jnp.bfloat16)             # (256, 128), exact
    w4 = weights[3].astype(jnp.bfloat16)             # (256, 1024)
    w5 = weights[4].astype(jnp.bfloat16)             # (1024, 256)
    b = jnp.zeros((N_LAYERS, BIG_DIM), jnp.float32)
    for i, bi in enumerate(biases):
        b = b.at[i, : bi.shape[-1]].set(bi.reshape(-1))
    return dict(ws=ws, w3=w3, w6=w6, w4=w4, w5=w5, b=b)


def default_batch_tile(batch):
    """Full batch on single-TC chips (v5e/v6e); split across the 2 TCs on v7x."""
    kind = ""
    try:
        kind = jax.devices()[0].device_kind.lower()
    except Exception:
        pass
    n_tc = 2 if "v7" in kind else 1
    tile = max(8, -(-batch // n_tc))
    return -(-tile // 8) * 8          # sublane-aligned


@functools.partial(jax.jit, static_argnames=("n_output", "batch_tile"))
def dqn_forward(x, packed, *, n_output, batch_tile):
    """x: (B, n_input) f32; packed: output of pack_params()."""
    B, n_input = x.shape
    assert n_input <= IN_PAD and n_output <= OUT_PAD

    n_tiles = pl.cdiv(B, batch_tile)
    Bp = n_tiles * batch_tile
    # Single pad op (no zeros+scatter round-trip); dead rows/lanes are 0.
    x_pad = jnp.pad(x.astype(jnp.float32), ((0, Bp - B), (0, IN_PAD - n_input)))

    out = pl.pallas_call(
        mlp_kernel,
        out_shape=jax.ShapeDtypeStruct((Bp, OUT_PAD), jnp.float32),
        grid=(n_tiles,),
        in_specs=[
            pl.BlockSpec((batch_tile, IN_PAD), lambda i: (i, 0)),
            pl.BlockSpec((len(SMALL_LAYERS), PAD128, PAD128), lambda i: (0, 0, 0)),
            pl.BlockSpec((PAD128, 256), lambda i: (0, 0)),
            pl.BlockSpec((256, PAD128), lambda i: (0, 0)),
            pl.BlockSpec(memory_space=pl.ANY),        # w4: manual prefetch
            pl.BlockSpec(memory_space=pl.ANY),        # w5: manual prefetch
            pl.BlockSpec((N_LAYERS, BIG_DIM), lambda i: (0, 0)),
        ],
        out_specs=pl.BlockSpec((batch_tile, OUT_PAD), lambda i: (i, 0)),
        scratch_shapes=[
            pltpu.VMEM((256, BIG_DIM), jnp.bfloat16),   # w4 landing buffer
            pltpu.VMEM((BIG_DIM, 256), jnp.bfloat16),   # w5 landing buffer
            pltpu.SemaphoreType.DMA((2,)),
        ],
        compiler_params=pltpu.CompilerParams(
            dimension_semantics=("parallel",),   # v7x: 2 TCs split the batch
            vmem_limit_bytes=16 << 20,
        ),
    )(x_pad, packed["ws"], packed["w3"], packed["w6"],
      packed["w4"], packed["w5"], packed["b"])

    return out[:B, :n_output]


def init_params(key, n_input, n_output):
    """PyTorch nn.Linear default init: U(-1/sqrt(fan_in), 1/sqrt(fan_in))."""
    sizes = [n_input] + HIDDEN + [n_output]
    weights, biases = [], []
    for i in range(N_LAYERS):
        fan_in, fan_out = sizes[i], sizes[i + 1]
        key, kw, kb = jax.random.split(key, 3)
        bound = 1.0 / (fan_in ** 0.5)
        weights.append(jax.random.uniform(kw, (fan_in, fan_out), jnp.float32, -bound, bound))
        biases.append(jax.random.uniform(kb, (1, fan_out), jnp.float32, -bound, bound))
    return weights, biases


def reference_forward(x, weights, biases):
    """Pure-JAX reference with the same bf16 quantization at the dot boundary."""
    h = x.astype(jnp.float32)
    for i in range(N_LAYERS):
        wq = weights[i].astype(jnp.bfloat16).astype(jnp.float32)
        hq = h.astype(jnp.bfloat16).astype(jnp.float32)
        h = jnp.dot(hq, wq, precision=jax.lax.Precision.HIGHEST) + biases[i].reshape(1, -1)
        if i < N_LAYERS - 1:
            h = jnp.maximum(h, 0.0)
    return h


if __name__ == "__main__":
    # Batched: 256 states amortize the ~1.3 MiB weight stream over a full MXU M.
    B, n_input, n_output = 256, 4, 2

    key = jax.random.PRNGKey(0)
    key, kx, kp = jax.random.split(key, 3)
    x = jax.random.normal(kx, (B, n_input), jnp.float32)
    weights, biases = init_params(kp, n_input, n_output)

    # Packing is hoisted out of the per-forward hot path.
    packed = pack_params(weights, biases)
    batch_tile = default_batch_tile(B)

    out = dqn_forward(x, packed, n_output=n_output, batch_tile=batch_tile)
    out = jax.block_until_ready(out)

    ref = reference_forward(x, weights, biases)
    assert out.shape == (B, n_output)
    assert jnp.allclose(out, ref, atol=1e-2, rtol=1e-2), "mismatch vs reference"

    print("KERNEL_OK")
</pallas_src>

<mosaic_0001>
module attributes {stable_mosaic.version = 11 : i64} {
  func.func @mlp_kernel(%arg0: i32, %arg1: memref<256x128xf32, #tpu.memory_space<vmem>>, %arg2: memref<5x128x128xbf16, #tpu.memory_space<vmem>>, %arg3: memref<128x256xbf16, #tpu.memory_space<vmem>>, %arg4: memref<256x128xbf16, #tpu.memory_space<vmem>>, %arg5: memref<256x1024xbf16, #tpu.memory_space<any>>, %arg6: memref<1024x256xbf16, #tpu.memory_space<any>>, %arg7: memref<9x1024xf32, #tpu.memory_space<vmem>>, %arg8: memref<256x128xf32, #tpu.memory_space<vmem>>, %arg9: memref<256x1024xbf16, #tpu.memory_space<vmem>>, %arg10: memref<1024x256xbf16, #tpu.memory_space<vmem>>, %arg11: memref<2x!tpu.dma_semaphore, #tpu.memory_space<semaphore_mem>>) attributes {dimension_semantics = [#tpu.dimension_semantics<parallel>], iteration_bounds = array<i64: 1>, scalar_prefetch = 0 : i64, scratch_operands = 3 : i64, tpu.core_type = #tpu.core_type<tc>, window_params = [{transform_indices = @transform_0, window_bounds = array<i64: 256, 128>}, {pipeline_mode = #tpu.pipeline_mode<synchronous>, transform_indices = @transform_1, window_bounds = array<i64: 5, 128, 128>}, {pipeline_mode = #tpu.pipeline_mode<synchronous>, transform_indices = @transform_2, window_bounds = array<i64: 128, 256>}, {pipeline_mode = #tpu.pipeline_mode<synchronous>, transform_indices = @transform_3, window_bounds = array<i64: 256, 128>}, {}, {}, {pipeline_mode = #tpu.pipeline_mode<synchronous>, transform_indices = @transform_6, window_bounds = array<i64: 9, 1024>}, {transform_indices = @transform_7, window_bounds = array<i64: 256, 128>}]} {
    %c0_i32 = arith.constant 0 : i32
    %0 = tpu.memref_slice %arg11[%c0_i32] : memref<2x!tpu.dma_semaphore, #tpu.memory_space<semaphore_mem>> -> memref<1x!tpu.dma_semaphore, #tpu.memory_space<semaphore_mem>>
    %1 = tpu.memref_squeeze %0 : memref<1x!tpu.dma_semaphore, #tpu.memory_space<semaphore_mem>> -> memref<!tpu.dma_semaphore, #tpu.memory_space<semaphore_mem>>
    tpu.enqueue_dma source(%arg5 : memref<256x1024xbf16, #tpu.memory_space<any>>) target(%arg9 : memref<256x1024xbf16, #tpu.memory_space<vmem>>) target_semaphore(%1 : memref<!tpu.dma_semaphore, #tpu.memory_space<semaphore_mem>>)
    %c1_i32 = arith.constant 1 : i32
    %2 = tpu.memref_slice %arg11[%c1_i32] : memref<2x!tpu.dma_semaphore, #tpu.memory_space<semaphore_mem>> -> memref<1x!tpu.dma_semaphore, #tpu.memory_space<semaphore_mem>>
    %3 = tpu.memref_squeeze %2 : memref<1x!tpu.dma_semaphore, #tpu.memory_space<semaphore_mem>> -> memref<!tpu.dma_semaphore, #tpu.memory_space<semaphore_mem>>
    tpu.enqueue_dma source(%arg6 : memref<1024x256xbf16, #tpu.memory_space<any>>) target(%arg10 : memref<1024x256xbf16, #tpu.memory_space<vmem>>) target_semaphore(%3 : memref<!tpu.dma_semaphore, #tpu.memory_space<semaphore_mem>>)
    %c0 = arith.constant 0 : index
    %c0_0 = arith.constant 0 : index
    %4 = vector.load %arg1[%c0, %c0_0] : memref<256x128xf32, #tpu.memory_space<vmem>>, vector<256x128xf32>
    %c0_1 = arith.constant 0 : index
    %c0_2 = arith.constant 0 : index
    %c0_3 = arith.constant 0 : index
    %5 = vector.load %arg2[%c0_1, %c0_2, %c0_3] : memref<5x128x128xbf16, #tpu.memory_space<vmem>>, vector<1x128x128xbf16>
    %6 = vector.shape_cast %5 : vector<1x128x128xbf16> to vector<128x128xbf16>
    %7 = arith.truncf %4 : vector<256x128xf32> to vector<256x128xbf16>
    %cst = arith.constant dense<0.000000e+00> : vector<256x128xf32>
    %8 = tpu.matmul %7, %6, %cst {dimension_numbers = #tpu.dot_dimension_numbers<[1], [0], [0], [1], [0, 0, 1, 1], [], []>} : vector<256x128xbf16>, vector<128x128xbf16>, vector<256x128xf32> -> vector<256x128xf32>
    %c0_4 = arith.constant 0 : index
    %c0_5 = arith.constant 0 : index
    %9 = vector.load %arg7[%c0_4, %c0_5] : memref<9x1024xf32, #tpu.memory_space<vmem>>, vector<1x128xf32>
    %10 = vector.broadcast %9 : vector<1x128xf32> to vector<256x128xf32>
    %11 = arith.addf %8, %10 : vector<256x128xf32>
    %cst_6 = arith.constant 0.000000e+00 : f32
    %12 = vector.broadcast %cst_6 : f32 to vector<256x128xf32>
    %13 = arith.maximumf %11, %12 : vector<256x128xf32>
    %c1 = arith.constant 1 : index
    %c0_7 = arith.constant 0 : index
    %c0_8 = arith.constant 0 : index
    %14 = vector.load %arg2[%c1, %c0_7, %c0_8] : memref<5x128x128xbf16, #tpu.memory_space<vmem>>, vector<1x128x128xbf16>
    %15 = vector.shape_cast %14 : vector<1x128x128xbf16> to vector<128x128xbf16>
    %16 = arith.truncf %13 : vector<256x128xf32> to vector<256x128xbf16>
    %cst_9 = arith.constant dense<0.000000e+00> : vector<256x128xf32>
    %17 = tpu.matmul %16, %15, %cst_9 {dimension_numbers = #tpu.dot_dimension_numbers<[1], [0], [0], [1], [0, 0, 1, 1], [], []>} : vector<256x128xbf16>, vector<128x128xbf16>, vector<256x128xf32> -> vector<256x128xf32>
    %c1_10 = arith.constant 1 : index
    %c0_11 = arith.constant 0 : index
    %18 = vector.load %arg7[%c1_10, %c0_11] : memref<9x1024xf32, #tpu.memory_space<vmem>>, vector<1x128xf32>
    %19 = vector.broadcast %18 : vector<1x128xf32> to vector<256x128xf32>
    %20 = arith.addf %17, %19 : vector<256x128xf32>
    %cst_12 = arith.constant 0.000000e+00 : f32
    %21 = vector.broadcast %cst_12 : f32 to vector<256x128xf32>
    %22 = arith.maximumf %20, %21 : vector<256x128xf32>
    %c0_13 = arith.constant 0 : index
    %c0_14 = arith.constant 0 : index
    %23 = vector.load %arg3[%c0_13, %c0_14] : memref<128x256xbf16, #tpu.memory_space<vmem>>, vector<128x256xbf16>
    %24 = arith.truncf %22 : vector<256x128xf32> to vector<256x128xbf16>
    %cst_15 = arith.constant dense<0.000000e+00> : vector<256x256xf32>
    %25 = tpu.matmul %24, %23, %cst_15 {dimension_numbers = #tpu.dot_dimension_numbers<[1], [0], [0], [1], [0, 0, 1, 1], [], []>} : vector<256x128xbf16>, vector<128x256xbf16>, vector<256x256xf32> -> vector<256x256xf32>
    %c2 = arith.constant 2 : index
    %c0_16 = arith.constant 0 : index
    %26 = vector.load %arg7[%c2, %c0_16] : memref<9x1024xf32, #tpu.memory_space<vmem>>, vector<1x256xf32>
    %27 = vector.broadcast %26 : vector<1x256xf32> to vector<256x256xf32>
    %28 = arith.addf %25, %27 : vector<256x256xf32>
    %cst_17 = arith.constant 0.000000e+00 : f32
    %29 = vector.broadcast %cst_17 : f32 to vector<256x256xf32>
    %30 = arith.maximumf %28, %29 : vector<256x256xf32>
    %c0_i32_18 = arith.constant 0 : i32
    %31 = tpu.memref_slice %arg11[%c0_i32_18] : memref<2x!tpu.dma_semaphore, #tpu.memory_space<semaphore_mem>> -> memref<1x!tpu.dma_semaphore, #tpu.memory_space<semaphore_mem>>
    %32 = tpu.memref_squeeze %31 : memref<1x!tpu.dma_semaphore, #tpu.memory_space<semaphore_mem>> -> memref<!tpu.dma_semaphore, #tpu.memory_space<semaphore_mem>>
    tpu.wait_dma2 semaphore(%32 : memref<!tpu.dma_semaphore, #tpu.memory_space<semaphore_mem>>) src(%arg5 : memref<256x1024xbf16, #tpu.memory_space<any>>) dst(%arg9 : memref<256x1024xbf16, #tpu.memory_space<vmem>>)
    %c0_19 = arith.constant 0 : index
    %c0_20 = arith.constant 0 : index
    %33 = vector.load %arg9[%c0_19, %c0_20] : memref<256x1024xbf16, #tpu.memory_space<vmem>>, vector<256x1024xbf16>
    %34 = arith.truncf %30 : vector<256x256xf32> to vector<256x256xbf16>
    %cst_21 = arith.constant dense<0.000000e+00> : vector<256x1024xf32>
    %35 = tpu.matmul %34, %33, %cst_21 {dimension_numbers = #tpu.dot_dimension_numbers<[1], [0], [0], [1], [0, 0, 1, 1], [], []>} : vector<256x256xbf16>, vector<256x1024xbf16>, vector<256x1024xf32> -> vector<256x1024xf32>
    %c3 = arith.constant 3 : index
    %c0_22 = arith.constant 0 : index
    %36 = vector.load %arg7[%c3, %c0_22] : memref<9x1024xf32, #tpu.memory_space<vmem>>, vector<1x1024xf32>
    %37 = vector.broadcast %36 : vector<1x1024xf32> to vector<256x1024xf32>
    %38 = arith.addf %35, %37 : vector<256x1024xf32>
    %cst_23 = arith.constant 0.000000e+00 : f32
    %39 = vector.broadcast %cst_23 : f32 to vector<256x1024xf32>
    %40 = arith.maximumf %38, %39 : vector<256x1024xf32>
    %c1_i32_24 = arith.constant 1 : i32
    %41 = tpu.memref_slice %arg11[%c1_i32_24] : memref<2x!tpu.dma_semaphore, #tpu.memory_space<semaphore_mem>> -> memref<1x!tpu.dma_semaphore, #tpu.memory_space<semaphore_mem>>
    %42 = tpu.memref_squeeze %41 : memref<1x!tpu.dma_semaphore, #tpu.memory_space<semaphore_mem>> -> memref<!tpu.dma_semaphore, #tpu.memory_space<semaphore_mem>>
    tpu.wait_dma2 semaphore(%42 : memref<!tpu.dma_semaphore, #tpu.memory_space<semaphore_mem>>) src(%arg6 : memref<1024x256xbf16, #tpu.memory_space<any>>) dst(%arg10 : memref<1024x256xbf16, #tpu.memory_space<vmem>>)
    %c0_25 = arith.constant 0 : index
    %c0_26 = arith.constant 0 : index
    %43 = vector.load %arg10[%c0_25, %c0_26] : memref<1024x256xbf16, #tpu.memory_space<vmem>>, vector<1024x256xbf16>
    %44 = arith.truncf %40 : vector<256x1024xf32> to vector<256x1024xbf16>
    %cst_27 = arith.constant dense<0.000000e+00> : vector<256x256xf32>
    %45 = tpu.matmul %44, %43, %cst_27 {dimension_numbers = #tpu.dot_dimension_numbers<[1], [0], [0], [1], [0, 0, 1, 1], [], []>} : vector<256x1024xbf16>, vector<1024x256xbf16>, vector<256x256xf32> -> vector<256x256xf32>
    %c4 = arith.constant 4 : index
    %c0_28 = arith.constant 0 : index
    %46 = vector.load %arg7[%c4, %c0_28] : memref<9x1024xf32, #tpu.memory_space<vmem>>, vector<1x256xf32>
    %47 = vector.broadcast %46 : vector<1x256xf32> to vector<256x256xf32>
    %48 = arith.addf %45, %47 : vector<256x256xf32>
    %cst_29 = arith.constant 0.000000e+00 : f32
    %49 = vector.broadcast %cst_29 : f32 to vector<256x256xf32>
    %50 = arith.maximumf %48, %49 : vector<256x256xf32>
    %c0_30 = arith.constant 0 : index
    %c0_31 = arith.constant 0 : index
    %51 = vector.load %arg4[%c0_30, %c0_31] : memref<256x128xbf16, #tpu.memory_space<vmem>>, vector<256x128xbf16>
    %52 = arith.truncf %50 : vector<256x256xf32> to vector<256x256xbf16>
    %cst_32 = arith.constant dense<0.000000e+00> : vector<256x128xf32>
    %53 = tpu.matmul %52, %51, %cst_32 {dimension_numbers = #tpu.dot_dimension_numbers<[1], [0], [0], [1], [0, 0, 1, 1], [], []>} : vector<256x256xbf16>, vector<256x128xbf16>, vector<256x128xf32> -> vector<256x128xf32>
    %c5 = arith.constant 5 : index
    %c0_33 = arith.constant 0 : index
    %54 = vector.load %arg7[%c5, %c0_33] : memref<9x1024xf32, #tpu.memory_space<vmem>>, vector<1x128xf32>
    %55 = vector.broadcast %54 : vector<1x128xf32> to vector<256x128xf32>
    %56 = arith.addf %53, %55 : vector<256x128xf32>
    %cst_34 = arith.constant 0.000000e+00 : f32
    %57 = vector.broadcast %cst_34 : f32 to vector<256x128xf32>
    %58 = arith.maximumf %56, %57 : vector<256x128xf32>
    %c2_35 = arith.constant 2 : index
    %c0_36 = arith.constant 0 : index
    %c0_37 = arith.constant 0 : index
    %59 = vector.load %arg2[%c2_35, %c0_36, %c0_37] : memref<5x128x128xbf16, #tpu.memory_space<vmem>>, vector<1x128x128xbf16>
    %60 = vector.shape_cast %59 : vector<1x128x128xbf16> to vector<128x128xbf16>
    %61 = arith.truncf %58 : vector<256x128xf32> to vector<256x128xbf16>
    %cst_38 = arith.constant dense<0.000000e+00> : vector<256x128xf32>
    %62 = tpu.matmul %61, %60, %cst_38 {dimension_numbers = #tpu.dot_dimension_numbers<[1], [0], [0], [1], [0, 0, 1, 1], [], []>} : vector<256x128xbf16>, vector<128x128xbf16>, vector<256x128xf32> -> vector<256x128xf32>
    %c6 = arith.constant 6 : index
    %c0_39 = arith.constant 0 : index
    %63 = vector.load %arg7[%c6, %c0_39] : memref<9x1024xf32, #tpu.memory_space<vmem>>, vector<1x128xf32>
    %64 = vector.broadcast %63 : vector<1x128xf32> to vector<256x128xf32>
    %65 = arith.addf %62, %64 : vector<256x128xf32>
    %cst_40 = arith.constant 0.000000e+00 : f32
    %66 = vector.broadcast %cst_40 : f32 to vector<256x128xf32>
    %67 = arith.maximumf %65, %66 : vector<256x128xf32>
    %c3_41 = arith.constant 3 : index
    %c0_42 = arith.constant 0 : index
    %c0_43 = arith.constant 0 : index
    %68 = vector.load %arg2[%c3_41, %c0_42, %c0_43] : memref<5x128x128xbf16, #tpu.memory_space<vmem>>, vector<1x128x128xbf16>
    %69 = vector.shape_cast %68 : vector<1x128x128xbf16> to vector<128x128xbf16>
    %70 = arith.truncf %67 : vector<256x128xf32> to vector<256x128xbf16>
    %cst_44 = arith.constant dense<0.000000e+00> : vector<256x128xf32>
    %71 = tpu.matmul %70, %69, %cst_44 {dimension_numbers = #tpu.dot_dimension_numbers<[1], [0], [0], [1], [0, 0, 1, 1], [], []>} : vector<256x128xbf16>, vector<128x128xbf16>, vector<256x128xf32> -> vector<256x128xf32>
    %c7 = arith.constant 7 : index
    %c0_45 = arith.constant 0 : index
    %72 = vector.load %arg7[%c7, %c0_45] : memref<9x1024xf32, #tpu.memory_space<vmem>>, vector<1x128xf32>
    %73 = vector.broadcast %72 : vector<1x128xf32> to vector<256x128xf32>
    %74 = arith.addf %71, %73 : vector<256x128xf32>
    %cst_46 = arith.constant 0.000000e+00 : f32
    %75 = vector.broadcast %cst_46 : f32 to vector<256x128xf32>
    %76 = arith.maximumf %74, %75 : vector<256x128xf32>
    %c4_47 = arith.constant 4 : index
    %c0_48 = arith.constant 0 : index
    %c0_49 = arith.constant 0 : index
    %77 = vector.load %arg2[%c4_47, %c0_48, %c0_49] : memref<5x128x128xbf16, #tpu.memory_space<vmem>>, vector<1x128x128xbf16>
    %78 = vector.shape_cast %77 : vector<1x128x128xbf16> to vector<128x128xbf16>
    %79 = arith.truncf %76 : vector<256x128xf32> to vector<256x128xbf16>
    %cst_50 = arith.constant dense<0.000000e+00> : vector<256x128xf32>
    %80 = tpu.matmul %79, %78, %cst_50 {dimension_numbers = #tpu.dot_dimension_numbers<[1], [0], [0], [1], [0, 0, 1, 1], [], []>} : vector<256x128xbf16>, vector<128x128xbf16>, vector<256x128xf32> -> vector<256x128xf32>
    %c8 = arith.constant 8 : index
    %c0_51 = arith.constant 0 : index
    %81 = vector.load %arg7[%c8, %c0_51] : memref<9x1024xf32, #tpu.memory_space<vmem>>, vector<1x128xf32>
    %82 = vector.broadcast %81 : vector<1x128xf32> to vector<256x128xf32>
    %83 = arith.addf %80, %82 : vector<256x128xf32>
    %c0_52 = arith.constant 0 : index
    %c0_53 = arith.constant 0 : index
    %84 = vector.load %arg8[%c0_52, %c0_53] : memref<256x128xf32, #tpu.memory_space<vmem>>, vector<256x128xf32>
    tpu.vector_store %arg8[%c0_52, %c0_53], %83 {strides = array<i32>} : memref<256x128xf32, #tpu.memory_space<vmem>>, vector<256x128xf32>,
    return
  }
  func.func @transform_0(%arg0: i32) -> (i32, i32) {
    %c0_i32 = arith.constant 0 : i32
    %c0_i32_0 = arith.constant 0 : i32
    return %arg0, %c0_i32 : i32, i32
  }
  func.func @transform_1(%arg0: i32) -> (i32, i32, i32) {
    %c0_i32 = arith.constant 0 : i32
    %c0_i32_0 = arith.constant 0 : i32
    %c0_i32_1 = arith.constant 0 : i32
    %c0_i32_2 = arith.constant 0 : i32
    return %c0_i32, %c0_i32_0, %c0_i32_1 : i32, i32, i32
  }
  func.func @transform_2(%arg0: i32) -> (i32, i32) {
    %c0_i32 = arith.constant 0 : i32
    %c0_i32_0 = arith.constant 0 : i32
    %c0_i32_1 = arith.constant 0 : i32
    return %c0_i32, %c0_i32_0 : i32, i32
  }
  func.func @transform_3(%arg0: i32) -> (i32, i32) {
    %c0_i32 = arith.constant 0 : i32
    %c0_i32_0 = arith.constant 0 : i32
    %c0_i32_1 = arith.constant 0 : i32
    return %c0_i32, %c0_i32_0 : i32, i32
  }
  func.func @transform_6(%arg0: i32) -> (i32, i32) {
    %c0_i32 = arith.constant 0 : i32
    %c0_i32_0 = arith.constant 0 : i32
    %c0_i32_1 = arith.constant 0 : i32
    return %c0_i32, %c0_i32_0 : i32, i32
  }
  func.func @transform_7(%arg0: i32) -> (i32, i32) {
    %c0_i32 = arith.constant 0 : i32
    %c0_i32_0 = arith.constant 0 : i32
    return %arg0, %c0_i32 : i32, i32
  }
}

</mosaic_0001>

<llo_original>
// kernel: dqn_forward.1
$region0: #{dqn_forward.1}
  #allocation0 [shape = 'u32[]', space=smem, size = 0x4, offset = 0x4, fixed_abs, tag = 'smem constant byte address 0x4 - core index']
  #allocation1 [shape = 'u32[144,128]{1,0:T(1,128)}', space=vmem, size = 0x12000, scoped, tag = 'internal scratch']
  #allocation2 [shape = 'bf16[256,1024]{1,0:T(16,128)(2,1)}', space=vmem, size = 0x80000, scoped, tag = 'scratch operand']
  #allocation3 [shape = 'bf16[1024,256]{1,0:T(16,128)(2,1)}', space=vmem, size = 0x80000, scoped, tag = 'scratch operand']
  #allocation4 [shape = 's32[2]{0}', space=sflag, size = 0x8, scoped, tag = 'scratch operand']
  #allocation5 [shape = 's32[]', space=sflag, size = 0x4, offset = 0, fixed_abs, tag = 'sflag constant byte address 0x0 - dummy sync flag']
  #allocation7 [shape = 's32[]', space=sflag, size = 0x4, offset = 0, fixed_abs, tag = 'sflag constant byte address 0x0 - dummy sync flag']
  %s0 = inlined_call_operand.vmem [shape: f32[256,128], index: 0, kind: input, shape index: {}]
  %s1 = inlined_call_operand.vmem [shape: bf16[5,128,128], index: 1, kind: input, shape index: {}]
  %s2 = inlined_call_operand.vmem [shape: bf16[128,256], index: 2, kind: input, shape index: {}]
  %s3 = inlined_call_operand.vmem [shape: bf16[256,128], index: 3, kind: input, shape index: {}]
  %s4 = inlined_call_operand.hbm [shape: bf16[256,1024], index: 4, kind: input, shape index: {}]
  %s5 = inlined_call_operand.hbm [shape: bf16[1024,256], index: 5, kind: input, shape index: {}]
  %s6 = inlined_call_operand.vmem [shape: f32[9,1024], index: 6, kind: input, shape index: {}]
  %s7 = inlined_call_operand.vmem [shape: f32[256,128], index: 7, kind: output, shape index: {}]
  %s8 = sld [smem:[#allocation0]]
  $region30: #{dqn_forward.1} parent=0
    _
  %s10 = ssub.s32 1, %s8
  %s11 = scalar_select 0, %s10, %s8
  $region1: #{dqn_forward.1} parent=0
    #allocation6 [shape = 'u32[9]{0}', space=smem, size = 0x24, scoped, tag = 'DMA stride descriptor']
    #allocation8 [shape = 'u32[9]{0}', space=smem, size = 0x24, scoped, tag = 'DMA stride descriptor']
    // Predicated region
    $region2: #{dqn_forward.1} parent=1 // pred_check
      _
    $region3: #{dqn_forward.1} parent=1 // pred_check_branch
      %13 = sbr.rel (0) target = $region5
    $region4: #{dqn_forward.1} parent=1 // pred_region
      _
    $region5: #{dqn_forward.1} parent=1 // pred_fallthru
      _
    // Predicated region
    $region6: #{dqn_forward.1} parent=1 // pred_check
      _
    $region7: #{dqn_forward.1} parent=1 // pred_check_branch
      %15 = sbr.rel (0) target = $region9
    $region8: #{dqn_forward.1} parent=1 // pred_region
      _
    $region9: #{dqn_forward.1} parent=1 // pred_fallthru
      _
    // Predicated region
    $region10: #{dqn_forward.1} parent=1 // pred_check
      _
    $region11: #{dqn_forward.1} parent=1 // pred_check_branch
      %17 = sbr.rel (0) target = $region13
    $region12: #{dqn_forward.1} parent=1 // pred_region
      _
    $region13: #{dqn_forward.1} parent=1 // pred_fallthru
      _
    // Predicated region
    $region14: #{dqn_forward.1} parent=1 // pred_check
      _
    $region15: #{dqn_forward.1} parent=1 // pred_check_branch
      %19 = sbr.rel (0) target = $region17
    $region16: #{dqn_forward.1} parent=1 // pred_region
      _
    $region17: #{dqn_forward.1} parent=1 // pred_fallthru
      _
    // Predicated region
    $region18: #{dqn_forward.1} parent=1 // pred_check
      _
    $region19: #{dqn_forward.1} parent=1 // pred_check_branch
      %21 = sbr.rel (0) target = $region21
    $region20: #{dqn_forward.1} parent=1 // pred_region
      _
    $region21: #{dqn_forward.1} parent=1 // pred_fallthru
      _
    %s24 = sshll.u32 1, 14
    %s25 = sxor.u32 4294967295, %s24
    %s27 = sld [smem:[#allocation0]]
    %s28 = sadd.s32 2, %s27
    %s30 = sshll.u32 7, 26
    %s31 = sxor.u32 4294967295, %s30
    %s32 = sand.u32 0, %s31
    %s33 = sshll.u32 %s28, 26
    %s34 = sor.u32 %s32, %s33
    %s35 = sshll.u32 [#allocation2], 4
    %s36 = int_to_ptr.vmem [resolvable:$true] %s35
    %39 = sst [smem:[#allocation6]] 1024
    %s40 = scalar_lea.smem [#allocation6], 1
    %41 = sst [smem:[%s40]] 1024
    %s42 = scalar_lea.smem [#allocation6], 2
    %43 = sst [smem:[%s42]] 8
    %s44 = scalar_lea.smem [#allocation6], 3
    %45 = sst [smem:[%s44]] 64
    %s46 = scalar_lea.smem [#allocation6], 4
    %47 = sst [smem:[%s46]] 128
    %s48 = scalar_lea.smem [#allocation6], 5
    %49 = sst [smem:[%s48]] 2
    %s50 = scalar_lea.smem [#allocation6], 6
    %51 = sst [smem:[%s50]] 512
    %s52 = scalar_lea.smem [#allocation6], 7
    %53 = sst [smem:[%s52]] 64
    %s54 = scalar_lea.smem [#allocation6], 8
    %55 = sst [smem:[%s54]] 4
    %57 = dma.general %s4, 16384, %s36, [#allocation4], [#allocation5], [#allocation6], %s34, 0
    %s58 = scalar_lea.sflag [#allocation4], 1
    %s60 = sshll.u32 1, 14
    %s61 = sxor.u32 4294967295, %s60
    %s63 = sadd.s32 2, %s27
    %s65 = sshll.u32 7, 26
    %s66 = sxor.u32 4294967295, %s65
    %s67 = sand.u32 0, %s66
    %s68 = sshll.u32 %s63, 26
    %s69 = sor.u32 %s67, %s68
    %s70 = sshll.u32 [#allocation3], 4
    %s71 = int_to_ptr.vmem [resolvable:$true] %s70
    %74 = sst [smem:[#allocation8]] 256
    %s75 = scalar_lea.smem [#allocation8], 1
    %76 = sst [smem:[%s75]] 256
    %s77 = scalar_lea.smem [#allocation8], 2
    %78 = sst [smem:[%s77]] 2
    %s79 = scalar_lea.smem [#allocation8], 3
    %80 = sst [smem:[%s79]] 64
    %s81 = scalar_lea.smem [#allocation8], 4
    %82 = sst [smem:[%s81]] 128
    %s83 = scalar_lea.smem [#allocation8], 5
    %84 = sst [smem:[%s83]] 2
    %s85 = scalar_lea.smem [#allocation8], 6
    %86 = sst [smem:[%s85]] 128
    %s87 = scalar_lea.smem [#allocation8], 7
    %88 = sst [smem:[%s87]] 64
    %s89 = scalar_lea.smem [#allocation8], 8
    %90 = sst [smem:[%s89]] 4
    %92 = dma.general %s5, 16384, %s71, %s58, [#allocation7], [#allocation8], %s69, 0
    %v93 = vld [vmem:[%s0] sm:$0xff]
    %v94 = vld [vmem:[%s0 + $0x8] sm:$0xff]
    %v95 = vld [vmem:[%s0 + $0x10] sm:$0xff]
    %v96 = vld [vmem:[%s0 + $0x18] sm:$0xff]
    %v97 = vld [vmem:[%s0 + $0x20] sm:$0xff]
    %v98 = vld [vmem:[%s0 + $0x28] sm:$0xff]
    %v99 = vld [vmem:[%s0 + $0x30] sm:$0xff]
    %v100 = vld [vmem:[%s0 + $0x38] sm:$0xff]
    %v101 = vld [vmem:[%s0 + $0x40] sm:$0xff]
    %v102 = vld [vmem:[%s0 + $0x48] sm:$0xff]
    %v103 = vld [vmem:[%s0 + $0x50] sm:$0xff]
    %v104 = vld [vmem:[%s0 + $0x58] sm:$0xff]
    %v105 = vld [vmem:[%s0 + $0x60] sm:$0xff]
    %v106 = vld [vmem:[%s0 + $0x68] sm:$0xff]
    %v107 = vld [vmem:[%s0 + $0x70] sm:$0xff]
    %v108 = vld [vmem:[%s0 + $0x78] sm:$0xff]
    %v109 = vld [vmem:[%s0 + $0x80] sm:$0xff]
    %v110 = vld [vmem:[%s0 + $0x88] sm:$0xff]
    %v111 = vld [vmem:[%s0 + $0x90] sm:$0xff]
    %v112 = vld [vmem:[%s0 + $0x98] sm:$0xff]
    %v113 = vld [vmem:[%s0 + $0xa0] sm:$0xff]
    %v114 = vld [vmem:[%s0 + $0xa8] sm:$0xff]
    %v115 = vld [vmem:[%s0 + $0xb0] sm:$0xff]
    %v116 = vld [vmem:[%s0 + $0xb8] sm:$0xff]
    %v117 = vld [vmem:[%s0 + $0xc0] sm:$0xff]
    %v118 = vld [vmem:[%s0 + $0xc8] sm:$0xff]
    %v119 = vld [vmem:[%s0 + $0xd0] sm:$0xff]
    %v120 = vld [vmem:[%s0 + $0xd8] sm:$0xff]
    %v121 = vld [vmem:[%s0 + $0xe0] sm:$0xff]
    %v122 = vld [vmem:[%s0 + $0xe8] sm:$0xff]
    %v123 = vld [vmem:[%s0 + $0xf0] sm:$0xff]
    %v124 = vld [vmem:[%s0 + $0xf8] sm:$0xff]
    %v125 = vld [vmem:[%s1] sm:$0xf]
    %v126 = vld [vmem:[%s1 + $0x4] sm:$0xf]
    %v127 = vld [vmem:[%s1 + $0x8] sm:$0xf]
    %v128 = vld [vmem:[%s1 + $0xc] sm:$0xf]
    %v129 = vld [vmem:[%s1 + $0x10] sm:$0xf]
    %v130 = vld [vmem:[%s1 + $0x14] sm:$0xf]
    %v131 = vld [vmem:[%s1 + $0x18] sm:$0xf]
    %v132 = vld [vmem:[%s1 + $0x1c] sm:$0xf]
    %v133 = vld [vmem:[%s1 + $0x20] sm:$0xf]
    %v134 = vld [vmem:[%s1 + $0x24] sm:$0xf]
    %v135 = vld [vmem:[%s1 + $0x28] sm:$0xf]
    %v136 = vld [vmem:[%s1 + $0x2c] sm:$0xf]
    %v137 = vld [vmem:[%s1 + $0x30] sm:$0xf]
    %v138 = vld [vmem:[%s1 + $0x34] sm:$0xf]
    %v139 = vld [vmem:[%s1 + $0x38] sm:$0xf]
    %v140 = vld [vmem:[%s1 + $0x3c] sm:$0xf]
    %v141 = vpack.c.bf16 %v94, %v93
    %v142 = vpack.c.bf16 %v96, %v95
    %v143 = vpack.c.bf16 %v98, %v97
    %v144 = vpack.c.bf16 %v100, %v99
    %v145 = vpack.c.bf16 %v102, %v101
    %v146 = vpack.c.bf16 %v104, %v103
    %v147 = vpack.c.bf16 %v106, %v105
    %v148 = vpack.c.bf16 %v108, %v107
    %v149 = vpack.c.bf16 %v110, %v109
    %v150 = vpack.c.bf16 %v112, %v111
    %v151 = vpack.c.bf16 %v114, %v113
    %v152 = vpack.c.bf16 %v116, %v115
    %v153 = vpack.c.bf16 %v118, %v117
    %v154 = vpack.c.bf16 %v120, %v119
    %v155 = vpack.c.bf16 %v122, %v121
    %v156 = vpack.c.bf16 %v124, %v123
    %v157 = vld [vmem:[%s6] ss:$0 sm:$0xff]
    %v174 = vunpack.c.l.b16 %v125
    %v175 = vunpack.c.l.b16 %v126
    %v176 = vunpack.c.l.b16 %v127
    %v177 = vunpack.c.l.b16 %v128
    %v178 = vunpack.c.l.b16 %v129
    %v179 = vunpack.c.l.b16 %v130
    %v180 = vunpack.c.l.b16 %v131
    %v181 = vunpack.c.l.b16 %v132
    %v182 = vunpack.c.l.b16 %v133
    %v183 = vunpack.c.l.b16 %v134
    %v184 = vunpack.c.l.b16 %v135
    %v185 = vunpack.c.l.b16 %v136
    %v186 = vunpack.c.l.b16 %v137
    %v187 = vunpack.c.l.b16 %v138
    %v188 = vunpack.c.l.b16 %v139
    %v189 = vunpack.c.l.b16 %v140
    %v190 = vpack.c.b16 %v175, %v174
    %v191 = vpack.c.b16 %v177, %v176
    %v192 = vpack.c.b16 %v179, %v178
    %v193 = vpack.c.b16 %v181, %v180
    %v194 = vpack.c.b16 %v183, %v182
    %v195 = vpack.c.b16 %v185, %v184
    %v196 = vpack.c.b16 %v187, %v186
    %v197 = vpack.c.b16 %v189, %v188
    %206 = vmatprep.subr.bf16.mxu0 0
    %207 = vmatpush1.bf16.msra.mxu0 %v190
    %208 = vmatprep.subr.bf16.mxu0 0
    %209 = vmatpush1.bf16.msra.mxu0 %v191
    %210 = vmatprep.subr.bf16.mxu0 0
    %211 = vmatpush1.bf16.msra.mxu0 %v192
    %212 = vmatprep.subr.bf16.mxu0 0
    %213 = vmatpush1.bf16.msra.mxu0 %v193
    %214 = vmatprep.subr.bf16.mxu0 0
    %215 = vmatpush1.bf16.msra.mxu0 %v194
    %216 = vmatprep.subr.bf16.mxu0 0
    %217 = vmatpush1.bf16.msra.mxu0 %v195
    %218 = vmatprep.subr.bf16.mxu0 0
    %219 = vmatpush1.bf16.msra.mxu0 %v196
    %220 = vmatprep.subr.bf16.mxu0 0
    %221 = vmatpush1.bf16.msra.mxu0 %v197
    %222 = vmatprep.subr.bf16.mxu0 0
    %223 = vmatpush1.bf16.msra.mxu0 0
    %224 = vmatprep.subr.bf16.mxu0 0
    %225 = vmatpush1.bf16.msra.mxu0 0
    %226 = vmatprep.subr.bf16.mxu0 0
    %227 = vmatpush1.bf16.msra.mxu0 0
    %228 = vmatprep.subr.bf16.mxu0 0
    %229 = vmatpush1.bf16.msra.mxu0 0
    %230 = vmatprep.subr.bf16.mxu0 0
    %231 = vmatpush1.bf16.msra.mxu0 0
    %232 = vmatprep.subr.bf16.mxu0 0
    %233 = vmatpush1.bf16.msra.mxu0 0
    %234 = vmatprep.subr.bf16.mxu0 0
    %235 = vmatpush1.bf16.msra.mxu0 0
    %236 = vmatprep.subr.bf16.mxu0 0
    %237 = vmatpush1.bf16.msra.mxu0 0
    %238 = vmatprep.mubr.bf16.mxu0 0
    %239 = vmatmul.mubr.bf16.gmra.mrb[0].mxu0 %v141
    %v240 = vpop.f32.mrb[0].mxu0
    %v241 = vadd.f32 %v157, %v240
    %v242 = vpop.f32.mrb[0].mxu0
    %v243 = vpop.f32.mrb[0].mxu0
    %v244 = vadd.f32 %v157, %v243
    %v245 = vpop.f32.mrb[0].mxu0
    %246 = vmatprep.mubr.bf16.mxu0 0
    %247 = vmatmul.mubr.bf16.gmra.mrb[0].mxu0 %v142
    %v248 = vpop.f32.mrb[0].mxu0
    %v249 = vadd.f32 %v157, %v248
    %v250 = vpop.f32.mrb[0].mxu0
    %v251 = vpop.f32.mrb[0].mxu0
    %v252 = vadd.f32 %v157, %v251
    %v253 = vpop.f32.mrb[0].mxu0
    %254 = vmatprep.mubr.bf16.mxu0 0
    %255 = vmatmul.mubr.bf16.gmra.mrb[0].mxu0 %v143
    %v256 = vpop.f32.mrb[0].mxu0
    %v257 = vadd.f32 %v157, %v256
    %v258 = vpop.f32.mrb[0].mxu0
    %v259 = vpop.f32.mrb[0].mxu0
    %v260 = vadd.f32 %v157, %v259
    %v261 = vpop.f32.mrb[0].mxu0
    %262 = vmatprep.mubr.bf16.mxu0 0
    %263 = vmatmul.mubr.bf16.gmra.mrb[0].mxu0 %v144
    %v264 = vpop.f32.mrb[0].mxu0
    %v265 = vadd.f32 %v157, %v264
    %v266 = vpop.f32.mrb[0].mxu0
    %v267 = vpop.f32.mrb[0].mxu0
    %v268 = vadd.f32 %v157, %v267
    %v269 = vpop.f32.mrb[0].mxu0
    %270 = vmatprep.mubr.bf16.mxu0 0
    %271 = vmatmul.mubr.bf16.gmra.mrb[0].mxu0 %v145
    %v272 = vpop.f32.mrb[0].mxu0
    %v273 = vadd.f32 %v157, %v272
    %v274 = vpop.f32.mrb[0].mxu0
    %v275 = vpop.f32.mrb[0].mxu0
    %v276 = vadd.f32 %v157, %v275
    %v277 = vpop.f32.mrb[0].mxu0
    %278 = vmatprep.mubr.bf16.mxu0 0
    %279 = vmatmul.mubr.bf16.gmra.mrb[0].mxu0 %v146
    %v280 = vpop.f32.mrb[0].mxu0
    %v281 = vadd.f32 %v157, %v280
    %v282 = vpop.f32.mrb[0].mxu0
    %v283 = vpop.f32.mrb[0].mxu0
    %v284 = vadd.f32 %v157, %v283
    %v285 = vpop.f32.mrb[0].mxu0
    %286 = vmatprep.mubr.bf16.mxu0 0
    %287 = vmatmul.mubr.bf16.gmra.mrb[0].mxu0 %v147
    %v288 = vpop.f32.mrb[0].mxu0
    %v289 = vadd.f32 %v157, %v288
    %v290 = vpop.f32.mrb[0].mxu0
    %v291 = vpop.f32.mrb[0].mxu0
    %v292 = vadd.f32 %v157, %v291
    %v293 = vpop.f32.mrb[0].mxu0
    %294 = vmatprep.mubr.bf16.mxu0 0
    %295 = vmatmul.mubr.bf16.gmra.mrb[0].mxu0 %v148
    %v296 = vpop.f32.mrb[0].mxu0
    %v297 = vadd.f32 %v157, %v296
    %v298 = vpop.f32.mrb[0].mxu0
    %v299 = vpop.f32.mrb[0].mxu0
    %v300 = vadd.f32 %v157, %v299
    %v301 = vpop.f32.mrb[0].mxu0
    %302 = vmatprep.mubr.bf16.mxu0 0
    %303 = vmatmul.mubr.bf16.gmra.mrb[0].mxu0 %v149
    %v304 = vpop.f32.mrb[0].mxu0
    %v305 = vadd.f32 %v157, %v304
    %v306 = vpop.f32.mrb[0].mxu0
    %v307 = vpop.f32.mrb[0].mxu0
    %v308 = vadd.f32 %v157, %v307
    %v309 = vpop.f32.mrb[0].mxu0
    %310 = vmatprep.mubr.bf16.mxu0 0
    %311 = vmatmul.mubr.bf16.gmra.mrb[0].mxu0 %v150
    %v312 = vpop.f32.mrb[0].mxu0
    %v313 = vadd.f32 %v157, %v312
    %v314 = vpop.f32.mrb[0].mxu0
    %v315 = vpop.f32.mrb[0].mxu0
    %v316 = vadd.f32 %v157, %v315
    %v317 = vpop.f32.mrb[0].mxu0
    %318 = vmatprep.mubr.bf16.mxu0 0
    %319 = vmatmul.mubr.bf16.gmra.mrb[0].mxu0 %v151
    %v320 = vpop.f32.mrb[0].mxu0
    %v321 = vadd.f32 %v157, %v320
    %v322 = vpop.f32.mrb[0].mxu0
    %v323 = vpop.f32.mrb[0].mxu0
    %v324 = vadd.f32 %v157, %v323
    %v325 = vpop.f32.mrb[0].mxu0
    %326 = vmatprep.mubr.bf16.mxu0 0
    %327 = vmatmul.mubr.bf16.gmra.mrb[0].mxu0 %v152
    %v328 = vpop.f32.mrb[0].mxu0
    %v329 = vadd.f32 %v157, %v328
    %v330 = vpop.f32.mrb[0].mxu0
    %v331 = vpop.f32.mrb[0].mxu0
    %v332 = vadd.f32 %v157, %v331
    %v333 = vpop.f32.mrb[0].mxu0
    %334 = vmatprep.mubr.bf16.mxu0 0
    %335 = vmatmul.mubr.bf16.gmra.mrb[0].mxu0 %v153
    %v336 = vpop.f32.mrb[0].mxu0
    %v337 = vadd.f32 %v157, %v336
    %v338 = vpop.f32.mrb[0].mxu0
    %v339 = vpop.f32.mrb[0].mxu0
    %v340 = vadd.f32 %v157, %v339
    %v341 = vpop.f32.mrb[0].mxu0
    %342 = vmatprep.mubr.bf16.mxu0 0
    %343 = vmatmul.mubr.bf16.gmra.mrb[0].mxu0 %v154
    %v344 = vpop.f32.mrb[0].mxu0
    %v345 = vadd.f32 %v157, %v344
    %v346 = vpop.f32.mrb[0].mxu0
    %v347 = vpop.f32.mrb[0].mxu0
    %v348 = vadd.f32 %v157, %v347
    %v349 = vpop.f32.mrb[0].mxu0
    %350 = vmatprep.mubr.bf16.mxu0 0
    %351 = vmatmul.mubr.bf16.gmra.mrb[0].mxu0 %v155
    %v352 = vpop.f32.mrb[0].mxu0
    %v353 = vadd.f32 %v157, %v352
    %v354 = vpop.f32.mrb[0].mxu0
    %v355 = vpop.f32.mrb[0].mxu0
    %v356 = vadd.f32 %v157, %v355
    %v357 = vpop.f32.mrb[0].mxu0
    %358 = vmatprep.mubr.bf16.mxu0 0
    %359 = vmatmul.mubr.bf16.gmra.mrb[0].mxu0 %v156
    %v360 = vpop.f32.mrb[0].mxu0
    %v361 = vadd.f32 %v157, %v360
    %v362 = vpop.f32.mrb[0].mxu0
    %v363 = vpop.f32.mrb[0].mxu0
    %v364 = vadd.f32 %v157, %v363
    %v365 = vpop.f32.mrb[0].mxu0
    %366 = vdwg.mxu0
    %v367 = vmax.f32 %v241, 0.0
    %v368 = vmax.f32 %v244, 0.0
    %v369 = vmax.f32 %v249, 0.0
    %v370 = vmax.f32 %v252, 0.0
    %v371 = vmax.f32 %v257, 0.0
    %v372 = vmax.f32 %v260, 0.0
    %v373 = vmax.f32 %v265, 0.0
    %v374 = vmax.f32 %v268, 0.0
    %v375 = vmax.f32 %v273, 0.0
    %v376 = vmax.f32 %v276, 0.0
    %v377 = vmax.f32 %v281, 0.0
    %v378 = vmax.f32 %v284, 0.0
    %v379 = vmax.f32 %v289, 0.0
    %v380 = vmax.f32 %v292, 0.0
    %v381 = vmax.f32 %v297, 0.0
    %v382 = vmax.f32 %v300, 0.0
    %v383 = vmax.f32 %v305, 0.0
    %v384 = vmax.f32 %v308, 0.0
    %v385 = vmax.f32 %v313, 0.0
    %v386 = vmax.f32 %v316, 0.0
    %v387 = vmax.f32 %v321, 0.0
    %v388 = vmax.f32 %v324, 0.0
    %v389 = vmax.f32 %v329, 0.0
    %v390 = vmax.f32 %v332, 0.0
    %v391 = vmax.f32 %v337, 0.0
    %v392 = vmax.f32 %v340, 0.0
    %v393 = vmax.f32 %v345, 0.0
    %v394 = vmax.f32 %v348, 0.0
    %v395 = vmax.f32 %v353, 0.0
    %v396 = vmax.f32 %v356, 0.0
    %v397 = vmax.f32 %v361, 0.0
    %v398 = vmax.f32 %v364, 0.0
    %s399 = scalar_lea.vmem %s1, 64
    %v400 = vld [vmem:[%s399] sm:$0xf]
    %v401 = vld [vmem:[%s399 + $0x4] sm:$0xf]
    %v402 = vld [vmem:[%s399 + $0x8] sm:$0xf]
    %v403 = vld [vmem:[%s399 + $0xc] sm:$0xf]
    %v404 = vld [vmem:[%s399 + $0x10] sm:$0xf]
    %v405 = vld [vmem:[%s399 + $0x14] sm:$0xf]
    %v406 = vld [vmem:[%s399 + $0x18] sm:$0xf]
    %v407 = vld [vmem:[%s399 + $0x1c] sm:$0xf]
    %v408 = vld [vmem:[%s399 + $0x20] sm:$0xf]
    %v409 = vld [vmem:[%s399 + $0x24] sm:$0xf]
    %v410 = vld [vmem:[%s399 + $0x28] sm:$0xf]
    %v411 = vld [vmem:[%s399 + $0x2c] sm:$0xf]
    %v412 = vld [vmem:[%s399 + $0x30] sm:$0xf]
    %v413 = vld [vmem:[%s399 + $0x34] sm:$0xf]
    %v414 = vld [vmem:[%s399 + $0x38] sm:$0xf]
    %v415 = vld [vmem:[%s399 + $0x3c] sm:$0xf]
    %v416 = vpack.c.bf16 %v368, %v367
    %v417 = vpack.c.bf16 %v370, %v369
    %v418 = vpack.c.bf16 %v372, %v371
    %v419 = vpack.c.bf16 %v374, %v373
    %v420 = vpack.c.bf16 %v376, %v375
    %v421 = vpack.c.bf16 %v378, %v377
    %v422 = vpack.c.bf16 %v380, %v379
    %v423 = vpack.c.bf16 %v382, %v381
    %v424 = vpack.c.bf16 %v384, %v383
    %v425 = vpack.c.bf16 %v386, %v385
    %v426 = vpack.c.bf16 %v388, %v387
    %v427 = vpack.c.bf16 %v390, %v389
    %v428 = vpack.c.bf16 %v392, %v391
    %v429 = vpack.c.bf16 %v394, %v393
    %v430 = vpack.c.bf16 %v396, %v395
    %v431 = vpack.c.bf16 %v398, %v397
    %v432 = vld [vmem:[%s6 + $0x1] ss:$0 sm:$0xff]
    %v449 = vunpack.c.l.b16 %v400
    %v450 = vunpack.c.l.b16 %v401
    %v451 = vunpack.c.l.b16 %v402
    %v452 = vunpack.c.l.b16 %v403
    %v453 = vunpack.c.l.b16 %v404
    %v454 = vunpack.c.l.b16 %v405
    %v455 = vunpack.c.l.b16 %v406
    %v456 = vunpack.c.l.b16 %v407
    %v457 = vunpack.c.l.b16 %v408
    %v458 = vunpack.c.l.b16 %v409
    %v459 = vunpack.c.l.b16 %v410
    %v460 = vunpack.c.l.b16 %v411
    %v461 = vunpack.c.l.b16 %v412
    %v462 = vunpack.c.l.b16 %v413
    %v463 = vunpack.c.l.b16 %v414
    %v464 = vunpack.c.l.b16 %v415
    %v465 = vpack.c.b16 %v450, %v449
    %v466 = vpack.c.b16 %v452, %v451
    %v467 = vpack.c.b16 %v454, %v453
    %v468 = vpack.c.b16 %v456, %v455
    %v469 = vpack.c.b16 %v458, %v457
    %v470 = vpack.c.b16 %v460, %v459
    %v471 = vpack.c.b16 %v462, %v461
    %v472 = vpack.c.b16 %v464, %v463
    %481 = vmatprep.subr.bf16.mxu0 0
    %482 = vmatpush1.bf16.msra.mxu0 %v465
    %483 = vmatprep.subr.bf16.mxu0 0
    %484 = vmatpush1.bf16.msra.mxu0 %v466
    %485 = vmatprep.subr.bf16.mxu0 0
    %486 = vmatpush1.bf16.msra.mxu0 %v467
    %487 = vmatprep.subr.bf16.mxu0 0
    %488 = vmatpush1.bf16.msra.mxu0 %v468
    %489 = vmatprep.subr.bf16.mxu0 0
    %490 = vmatpush1.bf16.msra.mxu0 %v469
    %491 = vmatprep.subr.bf16.mxu0 0
    %492 = vmatpush1.bf16.msra.mxu0 %v470
    %493 = vmatprep.subr.bf16.mxu0 0
    %494 = vmatpush1.bf16.msra.mxu0 %v471
    %495 = vmatprep.subr.bf16.mxu0 0
    %496 = vmatpush1.bf16.msra.mxu0 %v472
    %497 = vmatprep.subr.bf16.mxu0 0
    %498 = vmatpush1.bf16.msra.mxu0 0
    %499 = vmatprep.subr.bf16.mxu0 0
    %500 = vmatpush1.bf16.msra.mxu0 0
    %501 = vmatprep.subr.bf16.mxu0 0
    %502 = vmatpush1.bf16.msra.mxu0 0
    %503 = vmatprep.subr.bf16.mxu0 0
    %504 = vmatpush1.bf16.msra.mxu0 0
    %505 = vmatprep.subr.bf16.mxu0 0
    %506 = vmatpush1.bf16.msra.mxu0 0
    %507 = vmatprep.subr.bf16.mxu0 0
    %508 = vmatpush1.bf16.msra.mxu0 0
    %509 = vmatprep.subr.bf16.mxu0 0
    %510 = vmatpush1.bf16.msra.mxu0 0
    %511 = vmatprep.subr.bf16.mxu0 0
    %512 = vmatpush1.bf16.msra.mxu0 0
    %513 = vmatprep.mubr.bf16.mxu0 0
    %514 = vmatmul.mubr.bf16.gmra.mrb[0].mxu0 %v416
    %v515 = vpop.f32.mrb[0].mxu0
    %v516 = vadd.f32 %v432, %v515
    %v517 = vpop.f32.mrb[0].mxu0
    %v518 = vpop.f32.mrb[0].mxu0
    %v519 = vadd.f32 %v432, %v518
    %v520 = vpop.f32.mrb[0].mxu0
    %521 = vmatprep.mubr.bf16.mxu0 0
    %522 = vmatmul.mubr.bf16.gmra.mrb[0].mxu0 %v417
    %v523 = vpop.f32.mrb[0].mxu0
    %v524 = vadd.f32 %v432, %v523
    %v525 = vpop.f32.mrb[0].mxu0
    %v526 = vpop.f32.mrb[0].mxu0
    %v527 = vadd.f32 %v432, %v526
    %v528 = vpop.f32.mrb[0].mxu0
    %529 = vmatprep.mubr.bf16.mxu0 0
    %530 = vmatmul.mubr.bf16.gmra.mrb[0].mxu0 %v418
    %v531 = vpop.f32.mrb[0].mxu0
    %v532 = vadd.f32 %v432, %v531
    %v533 = vpop.f32.mrb[0].mxu0
    %v534 = vpop.f32.mrb[0].mxu0
    %v535 = vadd.f32 %v432, %v534
    %v536 = vpop.f32.mrb[0].mxu0
    %537 = vmatprep.mubr.bf16.mxu0 0
    %538 = vmatmul.mubr.bf16.gmra.mrb[0].mxu0 %v419
    %v539 = vpop.f32.mrb[0].mxu0
    %v540 = vadd.f32 %v432, %v539
    %v541 = vpop.f32.mrb[0].mxu0
    %v542 = vpop.f32.mrb[0].mxu0
    %v543 = vadd.f32 %v432, %v542
    %v544 = vpop.f32.mrb[0].mxu0
    %545 = vmatprep.mubr.bf16.mxu0 0
    %546 = vmatmul.mubr.bf16.gmra.mrb[0].mxu0 %v420
    %v547 = vpop.f32.mrb[0].mxu0
    %v548 = vadd.f32 %v432, %v547
    %v549 = vpop.f32.mrb[0].mxu0
    %v550 = vpop.f32.mrb[0].mxu0
    %v551 = vadd.f32 %v432, %v550
    %v552 = vpop.f32.mrb[0].mxu0
    %553 = vmatprep.mubr.bf16.mxu0 0
    %554 = vmatmul.mubr.bf16.gmra.mrb[0].mxu0 %v421
    %v555 = vpop.f32.mrb[0].mxu0
    %v556 = vadd.f32 %v432, %v555
    %v557 = vpop.f32.mrb[0].mxu0
    %v558 = vpop.f32.mrb[0].mxu0
    %v559 = vadd.f32 %v432, %v558
    %v560 = vpop.f32.mrb[0].mxu0
    %561 = vmatprep.mubr.bf16.mxu0 0
    %562 = vmatmul.mubr.bf16.gmra.mrb[0].mxu0 %v422
    %v563 = vpop.f32.mrb[0].mxu0
    %v564 = vadd.f32 %v432, %v563
    %v565 = vpop.f32.mrb[0].mxu0
    %v566 = vpop.f32.mrb[0].mxu0
    %v567 = vadd.f32 %v432, %v566
    %v568 = vpop.f32.mrb[0].mxu0
    %569 = vmatprep.mubr.bf16.mxu0 0
    %570 = vmatmul.mubr.bf16.gmra.mrb[0].mxu0 %v423
    %v571 = vpop.f32.mrb[0].mxu0
    %v572 = vadd.f32 %v432, %v571
    %v573 = vpop.f32.mrb[0].mxu0
    %v574 = vpop.f32.mrb[0].mxu0
    %v575 = vadd.f32 %v432, %v574
    %v576 = vpop.f32.mrb[0].mxu0
    %577 = vmatprep.mubr.bf16.mxu0 0
    %578 = vmatmul.mubr.bf16.gmra.mrb[0].mxu0 %v424
    %v579 = vpop.f32.mrb[0].mxu0
    %v580 = vadd.f32 %v432, %v579
    %v581 = vpop.f32.mrb[0].mxu0
    %v582 = vpop.f32.mrb[0].mxu0
    %v583 = vadd.f32 %v432, %v582
    %v584 = vpop.f32.mrb[0].mxu0
    %585 = vmatprep.mubr.bf16.mxu0 0
    %586 = vmatmul.mubr.bf16.gmra.mrb[0].mxu0 %v425
    %v587 = vpop.f32.mrb[0].mxu0
    %v588 = vadd.f32 %v432, %v587
    %v589 = vpop.f32.mrb[0].mxu0
    %v590 = vpop.f32.mrb[0].mxu0
    %v591 = vadd.f32 %v432, %v590
    %v592 = vpop.f32.mrb[0].mxu0
    %593 = vmatprep.mubr.bf16.mxu0 0
    %594 = vmatmul.mubr.bf16.gmra.mrb[0].mxu0 %v426
    %v595 = vpop.f32.mrb[0].mxu0
    %v596 = vadd.f32 %v432, %v595
    %v597 = vpop.f32.mrb[0].mxu0
    %v598 = vpop.f32.mrb[0].mxu0
    %v599 = vadd.f32 %v432, %v598
    %v600 = vpop.f32.mrb[0].mxu0
    %601 = vmatprep.mubr.bf16.mxu0 0
    %602 = vmatmul.mubr.bf16.gmra.mrb[0].mxu0 %v427
    %v603 = vpop.f32.mrb[0].mxu0
    %v604 = vadd.f32 %v432, %v603
    %v605 = vpop.f32.mrb[0].mxu0
    %v606 = vpop.f32.mrb[0].mxu0
    %v607 = vadd.f32 %v432, %v606
    %v608 = vpop.f32.mrb[0].mxu0
    %609 = vmatprep.mubr.bf16.mxu0 0
    %610 = vmatmul.mubr.bf16.gmra.mrb[0].mxu0 %v428
    %v611 = vpop.f32.mrb[0].mxu0
    %v612 = vadd.f32 %v432, %v611
    %v613 = vpop.f32.mrb[0].mxu0
    %v614 = vpop.f32.mrb[0].mxu0
    %v615 = vadd.f32 %v432, %v614
    %v616 = vpop.f32.mrb[0].mxu0
    %617 = vmatprep.mubr.bf16.mxu0 0
    %618 = vmatmul.mubr.bf16.gmra.mrb[0].mxu0 %v429
    %v619 = vpop.f32.mrb[0].mxu0
    %v620 = vadd.f32 %v432, %v619
    %v621 = vpop.f32.mrb[0].mxu0
    %v622 = vpop.f32.mrb[0].mxu0
    %v623 = vadd.f32 %v432, %v622
    %v624 = vpop.f32.mrb[0].mxu0
    %625 = vmatprep.mubr.bf16.mxu0 0
    %626 = vmatmul.mubr.bf16.gmra.mrb[0].mxu0 %v430
    %v627 = vpop.f32.mrb[0].mxu0
    %v628 = vadd.f32 %v432, %v627
    %v629 = vpop.f32.mrb[0].mxu0
    %v630 = vpop.f32.mrb[0].mxu0
    %v631 = vadd.f32 %v432, %v630
    %v632 = vpop.f32.mrb[0].mxu0
    %633 = vmatprep.mubr.bf16.mxu0 0
    %634 = vmatmul.mubr.bf16.gmra.mrb[0].mxu0 %v431
    %v635 = vpop.f32.mrb[0].mxu0
    %v636 = vadd.f32 %v432, %v635
    %v637 = vpop.f32.mrb[0].mxu0
    %v638 = vpop.f32.mrb[0].mxu0
    %v639 = vadd.f32 %v432, %v638
    %v640 = vpop.f32.mrb[0].mxu0
    %641 = vdwg.mxu0
    %v642 = vmax.f32 %v516, 0.0
    %v643 = vmax.f32 %v519, 0.0
    %v644 = vmax.f32 %v524, 0.0
    %v645 = vmax.f32 %v527, 0.0
    %v646 = vmax.f32 %v532, 0.0
    %v647 = vmax.f32 %v535, 0.0
    %v648 = vmax.f32 %v540, 0.0
    %v649 = vmax.f32 %v543, 0.0
    %v650 = vmax.f32 %v548, 0.0
    %v651 = vmax.f32 %v551, 0.0
    %v652 = vmax.f32 %v556, 0.0
    %v653 = vmax.f32 %v559, 0.0
    %v654 = vmax.f32 %v564, 0.0
    %v655 = vmax.f32 %v567, 0.0
    %v656 = vmax.f32 %v572, 0.0
    %v657 = vmax.f32 %v575, 0.0
    %v658 = vmax.f32 %v580, 0.0
    %v659 = vmax.f32 %v583, 0.0
    %v660 = vmax.f32 %v588, 0.0
    %v661 = vmax.f32 %v591, 0.0
    %v662 = vmax.f32 %v596, 0.0
    %v663 = vmax.f32 %v599, 0.0
    %v664 = vmax.f32 %v604, 0.0
    %v665 = vmax.f32 %v607, 0.0
    %v666 = vmax.f32 %v612, 0.0
    %v667 = vmax.f32 %v615, 0.0
    %v668 = vmax.f32 %v620, 0.0
    %v669 = vmax.f32 %v623, 0.0
    %v670 = vmax.f32 %v628, 0.0
    %v671 = vmax.f32 %v631, 0.0
    %v672 = vmax.f32 %v636, 0.0
    %v673 = vmax.f32 %v639, 0.0
    %v674 = vld [vmem:[%s2] sm:$0xff]
    %v675 = vld [vmem:[%s2 + $0x8] sm:$0xff]
    %v676 = vld [vmem:[%s2 + $0x10] sm:$0xff]
    %v677 = vld [vmem:[%s2 + $0x18] sm:$0xff]
    %v678 = vld [vmem:[%s2 + $0x20] sm:$0xff]
    %v679 = vld [vmem:[%s2 + $0x28] sm:$0xff]
    %v680 = vld [vmem:[%s2 + $0x30] sm:$0xff]
    %v681 = vld [vmem:[%s2 + $0x38] sm:$0xff]
    %v682 = vld [vmem:[%s2 + $0x40] sm:$0xff]
    %v683 = vld [vmem:[%s2 + $0x48] sm:$0xff]
    %v684 = vld [vmem:[%s2 + $0x50] sm:$0xff]
    %v685 = vld [vmem:[%s2 + $0x58] sm:$0xff]
    %v686 = vld [vmem:[%s2 + $0x60] sm:$0xff]
    %v687 = vld [vmem:[%s2 + $0x68] sm:$0xff]
    %v688 = vld [vmem:[%s2 + $0x70] sm:$0xff]
    %v689 = vld [vmem:[%s2 + $0x78] sm:$0xff]
    %v690 = vpack.c.bf16 %v643, %v642
    %v691 = vpack.c.bf16 %v645, %v644
    %v692 = vpack.c.bf16 %v647, %v646
    %v693 = vpack.c.bf16 %v649, %v648
    %v694 = vpack.c.bf16 %v651, %v650
    %v695 = vpack.c.bf16 %v653, %v652
    %v696 = vpack.c.bf16 %v655, %v654
    %v697 = vpack.c.bf16 %v657, %v656
    %v698 = vpack.c.bf16 %v659, %v658
    %v699 = vpack.c.bf16 %v661, %v660
    %v700 = vpack.c.bf16 %v663, %v662
    %v701 = vpack.c.bf16 %v665, %v664
    %v702 = vpack.c.bf16 %v667, %v666
    %v703 = vpack.c.bf16 %v669, %v668
    %v704 = vpack.c.bf16 %v671, %v670
    %v705 = vpack.c.bf16 %v673, %v672
    %s706 = scalar_lea.vmem %s6, 2
    %v707 = vld [vmem:[%s706] ss:$8 sm:$0x3]
    %v709 = vlaneseq
    %v710 = vshrl.u32 %v709, 7
    %v711 = vsub.s32 0, %v710
    %v712 = vrot.slane %v707, %v711
    %v713 = vlaneseq
    %v714 = vshrl.u32 %v713, 7
    %v715 = vsub.s32 1, %v714
    %v716 = vrot.slane %v707, %v715
    %v735 = vunpack.c.l.b16 %v674
    %v736 = vunpack.c.h.b16 %v674
    %v737 = vunpack.c.l.b16 %v675
    %v738 = vunpack.c.h.b16 %v675
    %v739 = vunpack.c.l.b16 %v676
    %v740 = vunpack.c.h.b16 %v676
    %v741 = vunpack.c.l.b16 %v677
    %v742 = vunpack.c.h.b16 %v677
    %v743 = vunpack.c.l.b16 %v678
    %v744 = vunpack.c.h.b16 %v678
    %v745 = vunpack.c.l.b16 %v679
    %v746 = vunpack.c.h.b16 %v679
    %v747 = vunpack.c.l.b16 %v680
    %v748 = vunpack.c.h.b16 %v680
    %v749 = vunpack.c.l.b16 %v681
    %v750 = vunpack.c.h.b16 %v681
    %v751 = vunpack.c.l.b16 %v682
    %v752 = vunpack.c.h.b16 %v682
    %v753 = vunpack.c.l.b16 %v683
    %v754 = vunpack.c.h.b16 %v683
    %v755 = vunpack.c.l.b16 %v684
    %v756 = vunpack.c.h.b16 %v684
    %v757 = vunpack.c.l.b16 %v685
    %v758 = vunpack.c.h.b16 %v685
    %v759 = vunpack.c.l.b16 %v686
    %v760 = vunpack.c.h.b16 %v686
    %v761 = vunpack.c.l.b16 %v687
    %v762 = vunpack.c.h.b16 %v687
    %v763 = vunpack.c.l.b16 %v688
    %v764 = vunpack.c.h.b16 %v688
    %v765 = vunpack.c.l.b16 %v689
    %v766 = vunpack.c.h.b16 %v689
    %v767 = vpack.c.b16 %v737, %v735
    %v768 = vpack.c.b16 %v738, %v736
    %v769 = vpack.c.b16 %v741, %v739
    %v770 = vpack.c.b16 %v742, %v740
    %v771 = vpack.c.b16 %v745, %v743
    %v772 = vpack.c.b16 %v746, %v744
    %v773 = vpack.c.b16 %v749, %v747
    %v774 = vpack.c.b16 %v750, %v748
    %v775 = vpack.c.b16 %v753, %v751
    %v776 = vpack.c.b16 %v754, %v752
    %v777 = vpack.c.b16 %v757, %v755
    %v778 = vpack.c.b16 %v758, %v756
    %v779 = vpack.c.b16 %v761, %v759
    %v780 = vpack.c.b16 %v762, %v760
    %v781 = vpack.c.b16 %v765, %v763
    %v782 = vpack.c.b16 %v766, %v764
    %799 = vmatprep.subr.bf16.mxu0 %v768
    %800 = vmatpush1.bf16.msra.mxu0 %v767
    %801 = vmatprep.subr.bf16.mxu0 %v770
    %802 = vmatpush1.bf16.msra.mxu0 %v769
    %803 = vmatprep.subr.bf16.mxu0 %v772
    %804 = vmatpush1.bf16.msra.mxu0 %v771
    %805 = vmatprep.subr.bf16.mxu0 %v774
    %806 = vmatpush1.bf16.msra.mxu0 %v773
    %807 = vmatprep.subr.bf16.mxu0 %v776
    %808 = vmatpush1.bf16.msra.mxu0 %v775
    %809 = vmatprep.subr.bf16.mxu0 %v778
    %810 = vmatpush1.bf16.msra.mxu0 %v777
    %811 = vmatprep.subr.bf16.mxu0 %v780
    %812 = vmatpush1.bf16.msra.mxu0 %v779
    %813 = vmatprep.subr.bf16.mxu0 %v782
    %814 = vmatpush1.bf16.msra.mxu0 %v781
    %815 = vmatprep.subr.bf16.mxu0 0
    %816 = vmatpush1.bf16.msra.mxu0 0
    %817 = vmatprep.subr.bf16.mxu0 0
    %818 = vmatpush1.bf16.msra.mxu0 0
    %819 = vmatprep.subr.bf16.mxu0 0
    %820 = vmatpush1.bf16.msra.mxu0 0
    %821 = vmatprep.subr.bf16.mxu0 0
    %822 = vmatpush1.bf16.msra.mxu0 0
    %823 = vmatprep.subr.bf16.mxu0 0
    %824 = vmatpush1.bf16.msra.mxu0 0
    %825 = vmatprep.subr.bf16.mxu0 0
    %826 = vmatpush1.bf16.msra.mxu0 0
    %827 = vmatprep.subr.bf16.mxu0 0
    %828 = vmatpush1.bf16.msra.mxu0 0
    %829 = vmatprep.subr.bf16.mxu0 0
    %830 = vmatpush1.bf16.msra.mxu0 0
    %831 = vmatprep.mubr.bf16.mxu0 0
    %832 = vmatmul.mubr.bf16.gmra.mrb[0].mxu0 %v690
    %v833 = vpop.f32.mrb[0].mxu0
    %v834 = vadd.f32 %v712, %v833
    %v835 = vpop.f32.mrb[0].mxu0
    %v836 = vadd.f32 %v716, %v835
    %v837 = vpop.f32.mrb[0].mxu0
    %v838 = vadd.f32 %v712, %v837
    %v839 = vpop.f32.mrb[0].mxu0
    %v840 = vadd.f32 %v716, %v839
    %841 = vmatprep.mubr.bf16.mxu0 0
    %842 = vmatmul.mubr.bf16.gmra.mrb[0].mxu0 %v691
    %v843 = vpop.f32.mrb[0].mxu0
    %v844 = vadd.f32 %v712, %v843
    %v845 = vpop.f32.mrb[0].mxu0
    %v846 = vadd.f32 %v716, %v845
    %v847 = vpop.f32.mrb[0].mxu0
    %v848 = vadd.f32 %v712, %v847
    %v849 = vpop.f32.mrb[0].mxu0
    %v850 = vadd.f32 %v716, %v849
    %851 = vmatprep.mubr.bf16.mxu0 0
    %852 = vmatmul.mubr.bf16.gmra.mrb[0].mxu0 %v692
    %v853 = vpop.f32.mrb[0].mxu0
    %v854 = vadd.f32 %v712, %v853
    %v855 = vpop.f32.mrb[0].mxu0
    %v856 = vadd.f32 %v716, %v855
    %v857 = vpop.f32.mrb[0].mxu0
    %v858 = vadd.f32 %v712, %v857
    %v859 = vpop.f32.mrb[0].mxu0
    %v860 = vadd.f32 %v716, %v859
    %861 = vmatprep.mubr.bf16.mxu0 0
    %862 = vmatmul.mubr.bf16.gmra.mrb[0].mxu0 %v693
    %v863 = vpop.f32.mrb[0].mxu0
    %v864 = vadd.f32 %v712, %v863
    %v865 = vpop.f32.mrb[0].mxu0
    %v866 = vadd.f32 %v716, %v865
    %v867 = vpop.f32.mrb[0].mxu0
    %v868 = vadd.f32 %v712, %v867
    %v869 = vpop.f32.mrb[0].mxu0
    %v870 = vadd.f32 %v716, %v869
    %871 = vmatprep.mubr.bf16.mxu0 0
    %872 = vmatmul.mubr.bf16.gmra.mrb[0].mxu0 %v694
    %v873 = vpop.f32.mrb[0].mxu0
    %v874 = vadd.f32 %v712, %v873
    %v875 = vpop.f32.mrb[0].mxu0
    %v876 = vadd.f32 %v716, %v875
    %v877 = vpop.f32.mrb[0].mxu0
    %v878 = vadd.f32 %v712, %v877
    %v879 = vpop.f32.mrb[0].mxu0
    %v880 = vadd.f32 %v716, %v879
    %881 = vmatprep.mubr.bf16.mxu0 0
    %882 = vmatmul.mubr.bf16.gmra.mrb[0].mxu0 %v695
    %v883 = vpop.f32.mrb[0].mxu0
    %v884 = vadd.f32 %v712, %v883
    %v885 = vpop.f32.mrb[0].mxu0
    %v886 = vadd.f32 %v716, %v885
    %v887 = vpop.f32.mrb[0].mxu0
    %v888 = vadd.f32 %v712, %v887
    %v889 = vpop.f32.mrb[0].mxu0
    %v890 = vadd.f32 %v716, %v889
    %891 = vmatprep.mubr.bf16.mxu0 0
    %892 = vmatmul.mubr.bf16.gmra.mrb[0].mxu0 %v696
    %v893 = vpop.f32.mrb[0].mxu0
    %v894 = vadd.f32 %v712, %v893
    %v895 = vpop.f32.mrb[0].mxu0
    %v896 = vadd.f32 %v716, %v895
    %v897 = vpop.f32.mrb[0].mxu0
    %v898 = vadd.f32 %v712, %v897
    %v899 = vpop.f32.mrb[0].mxu0
    %v900 = vadd.f32 %v716, %v899
    %901 = vmatprep.mubr.bf16.mxu0 0
    %902 = vmatmul.mubr.bf16.gmra.mrb[0].mxu0 %v697
    %v903 = vpop.f32.mrb[0].mxu0
    %v904 = vadd.f32 %v712, %v903
    %v905 = vpop.f32.mrb[0].mxu0
    %v906 = vadd.f32 %v716, %v905
    %v907 = vpop.f32.mrb[0].mxu0
    %v908 = vadd.f32 %v712, %v907
    %v909 = vpop.f32.mrb[0].mxu0
    %v910 = vadd.f32 %v716, %v909
    %911 = vmatprep.mubr.bf16.mxu0 0
    %912 = vmatmul.mubr.bf16.gmra.mrb[0].mxu0 %v698
    %v913 = vpop.f32.mrb[0].mxu0
    %v914 = vadd.f32 %v712, %v913
    %v915 = vpop.f32.mrb[0].mxu0
    %v916 = vadd.f32 %v716, %v915
    %v917 = vpop.f32.mrb[0].mxu0
    %v918 = vadd.f32 %v712, %v917
    %v919 = vpop.f32.mrb[0].mxu0
    %v920 = vadd.f32 %v716, %v919
    %921 = vmatprep.mubr.bf16.mxu0 0
    %922 = vmatmul.mubr.bf16.gmra.mrb[0].mxu0 %v699
    %v923 = vpop.f32.mrb[0].mxu0
    %v924 = vadd.f32 %v712, %v923
    %v925 = vpop.f32.mrb[0].mxu0
    %v926 = vadd.f32 %v716, %v925
    %v927 = vpop.f32.mrb[0].mxu0
    %v928 = vadd.f32 %v712, %v927
    %v929 = vpop.f32.mrb[0].mxu0
    %v930 = vadd.f32 %v716, %v929
    %931 = vmatprep.mubr.bf16.mxu0 0
    %932 = vmatmul.mubr.bf16.gmra.mrb[0].mxu0 %v700
    %v933 = vpop.f32.mrb[0].mxu0
    %v934 = vadd.f32 %v712, %v933
    %v935 = vpop.f32.mrb[0].mxu0
    %v936 = vadd.f32 %v716, %v935
    %v937 = vpop.f32.mrb[0].mxu0
    %v938 = vadd.f32 %v712, %v937
    %v939 = vpop.f32.mrb[0].mxu0
    %v940 = vadd.f32 %v716, %v939
    %941 = vmatprep.mubr.bf16.mxu0 0
    %942 = vmatmul.mubr.bf16.gmra.mrb[0].mxu0 %v701
    %v943 = vpop.f32.mrb[0].mxu0
    %v944 = vadd.f32 %v712, %v943
    %v945 = vpop.f32.mrb[0].mxu0
    %v946 = vadd.f32 %v716, %v945
    %v947 = vpop.f32.mrb[0].mxu0
    %v948 = vadd.f32 %v712, %v947
    %v949 = vpop.f32.mrb[0].mxu0
    %v950 = vadd.f32 %v716, %v949
    %951 = vmatprep.mubr.bf16.mxu0 0
    %952 = vmatmul.mubr.bf16.gmra.mrb[0].mxu0 %v702
    %v953 = vpop.f32.mrb[0].mxu0
    %v954 = vadd.f32 %v712, %v953
    %v955 = vpop.f32.mrb[0].mxu0
    %v956 = vadd.f32 %v716, %v955
    %v957 = vpop.f32.mrb[0].mxu0
    %v958 = vadd.f32 %v712, %v957
    %v959 = vpop.f32.mrb[0].mxu0
    %v960 = vadd.f32 %v716, %v959
    %961 = vmatprep.mubr.bf16.mxu0 0
    %962 = vmatmul.mubr.bf16.gmra.mrb[0].mxu0 %v703
    %v963 = vpop.f32.mrb[0].mxu0
    %v964 = vadd.f32 %v712, %v963
    %v965 = vpop.f32.mrb[0].mxu0
    %v966 = vadd.f32 %v716, %v965
    %v967 = vpop.f32.mrb[0].mxu0
    %v968 = vadd.f32 %v712, %v967
    %v969 = vpop.f32.mrb[0].mxu0
    %v970 = vadd.f32 %v716, %v969
    %971 = vmatprep.mubr.bf16.mxu0 0
    %972 = vmatmul.mubr.bf16.gmra.mrb[0].mxu0 %v704
    %v973 = vpop.f32.mrb[0].mxu0
    %v974 = vadd.f32 %v712, %v973
    %v975 = vpop.f32.mrb[0].mxu0
    %v976 = vadd.f32 %v716, %v975
    %v977 = vpop.f32.mrb[0].mxu0
    %v978 = vadd.f32 %v712, %v977
    %v979 = vpop.f32.mrb[0].mxu0
    %v980 = vadd.f32 %v716, %v979
    %981 = vmatprep.mubr.bf16.mxu0 0
    %982 = vmatmul.mubr.bf16.gmra.mrb[0].mxu0 %v705
    %v983 = vpop.f32.mrb[0].mxu0
    %v984 = vadd.f32 %v712, %v983
    %v985 = vpop.f32.mrb[0].mxu0
    %v986 = vadd.f32 %v716, %v985
    %v987 = vpop.f32.mrb[0].mxu0
    %v988 = vadd.f32 %v712, %v987
    %v989 = vpop.f32.mrb[0].mxu0
    %v990 = vadd.f32 %v716, %v989
    %991 = vdwg.mxu0
    %v992 = vmax.f32 %v834, 0.0
    %v993 = vmax.f32 %v836, 0.0
    %v994 = vmax.f32 %v838, 0.0
    %v995 = vmax.f32 %v840, 0.0
    %v996 = vmax.f32 %v844, 0.0
    %v997 = vmax.f32 %v846, 0.0
    %v998 = vmax.f32 %v848, 0.0
    %v999 = vmax.f32 %v850, 0.0
    %v1000 = vmax.f32 %v854, 0.0
    %v1001 = vmax.f32 %v856, 0.0
    %v1002 = vmax.f32 %v858, 0.0
    %v1003 = vmax.f32 %v860, 0.0
    %v1004 = vmax.f32 %v864, 0.0
    %v1005 = vmax.f32 %v866, 0.0
    %v1006 = vmax.f32 %v868, 0.0
    %v1007 = vmax.f32 %v870, 0.0
    %v1008 = vmax.f32 %v874, 0.0
    %v1009 = vmax.f32 %v876, 0.0
    %v1010 = vmax.f32 %v878, 0.0
    %v1011 = vmax.f32 %v880, 0.0
    %v1012 = vmax.f32 %v884, 0.0
    %v1013 = vmax.f32 %v886, 0.0
    %v1014 = vmax.f32 %v888, 0.0
    %v1015 = vmax.f32 %v890, 0.0
    %v1016 = vmax.f32 %v894, 0.0
    %v1017 = vmax.f32 %v896, 0.0
    %v1018 = vmax.f32 %v898, 0.0
    %v1019 = vmax.f32 %v900, 0.0
    %v1020 = vmax.f32 %v904, 0.0
    %v1021 = vmax.f32 %v906, 0.0
    %v1022 = vmax.f32 %v908, 0.0
    %v1023 = vmax.f32 %v910, 0.0
    %v1024 = vmax.f32 %v914, 0.0
    %v1025 = vmax.f32 %v916, 0.0
    %v1026 = vmax.f32 %v918, 0.0
    %v1027 = vmax.f32 %v920, 0.0
    %v1028 = vmax.f32 %v924, 0.0
    %v1029 = vmax.f32 %v926, 0.0
    %v1030 = vmax.f32 %v928, 0.0
    %v1031 = vmax.f32 %v930, 0.0
    %v1032 = vmax.f32 %v934, 0.0
    %v1033 = vmax.f32 %v936, 0.0
    %v1034 = vmax.f32 %v938, 0.0
    %v1035 = vmax.f32 %v940, 0.0
    %v1036 = vmax.f32 %v944, 0.0
    %v1037 = vmax.f32 %v946, 0.0
    %v1038 = vmax.f32 %v948, 0.0
    %v1039 = vmax.f32 %v950, 0.0
    %v1040 = vmax.f32 %v954, 0.0
    %v1041 = vmax.f32 %v956, 0.0
    %v1042 = vmax.f32 %v958, 0.0
    %v1043 = vmax.f32 %v960, 0.0
    %v1044 = vmax.f32 %v964, 0.0
    %v1045 = vmax.f32 %v966, 0.0
    %v1046 = vmax.f32 %v968, 0.0
    %v1047 = vmax.f32 %v970, 0.0
    %v1048 = vmax.f32 %v974, 0.0
    %v1049 = vmax.f32 %v976, 0.0
    %v1050 = vmax.f32 %v978, 0.0
    %v1051 = vmax.f32 %v980, 0.0
    %v1052 = vmax.f32 %v984, 0.0
    %v1053 = vmax.f32 %v986, 0.0
    %v1054 = vmax.f32 %v988, 0.0
    %v1055 = vmax.f32 %v990, 0.0
    %s1056 = smul.u32 4, 32
    %s1057 = smul.u32 %s1056, 8
    %s1058 = sshll.u32 %s1057, 4
    %1059 = dma.done [#allocation4], %s1058
    %v1060 = vld [vmem:[#allocation2] sm:$0xff]
    %v1061 = vld [vmem:[#allocation2 + $0x8] sm:$0xff]
    %v1062 = vld [vmem:[#allocation2 + $0x10] sm:$0xff]
    %v1063 = vld [vmem:[#allocation2 + $0x18] sm:$0xff]
    %v1064 = vld [vmem:[#allocation2 + $0x20] sm:$0xff]
    %v1065 = vld [vmem:[#allocation2 + $0x28] sm:$0xff]
    %v1066 = vld [vmem:[#allocation2 + $0x30] sm:$0xff]
    %v1067 = vld [vmem:[#allocation2 + $0x38] sm:$0xff]
    %v1068 = vld [vmem:[#allocation2 + $0x40] sm:$0xff]
    %v1069 = vld [vmem:[#allocation2 + $0x48] sm:$0xff]
    %v1070 = vld [vmem:[#allocation2 + $0x50] sm:$0xff]
    %v1071 = vld [vmem:[#allocation2 + $0x58] sm:$0xff]
    %v1072 = vld [vmem:[#allocation2 + $0x60] sm:$0xff]
    %v1073 = vld [vmem:[#allocation2 + $0x68] sm:$0xff]
    %v1074 = vld [vmem:[#allocation2 + $0x70] sm:$0xff]
    %v1075 = vld [vmem:[#allocation2 + $0x78] sm:$0xff]
    %v1076 = vld [vmem:[#allocation2 + $0x80] sm:$0xff]
    %v1077 = vld [vmem:[#allocation2 + $0x88] sm:$0xff]
    %v1078 = vld [vmem:[#allocation2 + $0x90] sm:$0xff]
    %v1079 = vld [vmem:[#allocation2 + $0x98] sm:$0xff]
    %v1080 = vld [vmem:[#allocation2 + $0xa0] sm:$0xff]
    %v1081 = vld [vmem:[#allocation2 + $0xa8] sm:$0xff]
    %v1082 = vld [vmem:[#allocation2 + $0xb0] sm:$0xff]
    %v1083 = vld [vmem:[#allocation2 + $0xb8] sm:$0xff]
    %v1084 = vld [vmem:[#allocation2 + $0xc0] sm:$0xff]
    %v1085 = vld [vmem:[#allocation2 + $0xc8] sm:$0xff]
    %v1086 = vld [vmem:[#allocation2 + $0xd0] sm:$0xff]
    %v1087 = vld [vmem:[#allocation2 + $0xd8] sm:$0xff]
    %v1088 = vld [vmem:[#allocation2 + $0xe0] sm:$0xff]
    %v1089 = vld [vmem:[#allocation2 + $0xe8] sm:$0xff]
    %v1090 = vld [vmem:[#allocation2 + $0xf0] sm:$0xff]
    %v1091 = vld [vmem:[#allocation2 + $0xf8] sm:$0xff]
    %v1092 = vld [vmem:[#allocation2 + $0x100] sm:$0xff]
    %v1093 = vld [vmem:[#allocation2 + $0x108] sm:$0xff]
    %v1094 = vld [vmem:[#allocation2 + $0x110] sm:$0xff]
    %v1095 = vld [vmem:[#allocation2 + $0x118] sm:$0xff]
    %v1096 = vld [vmem:[#allocation2 + $0x120] sm:$0xff]
    %v1097 = vld [vmem:[#allocation2 + $0x128] sm:$0xff]
    %v1098 = vld [vmem:[#allocation2 + $0x130] sm:$0xff]
    %v1099 = vld [vmem:[#allocation2 + $0x138] sm:$0xff]
    %v1100 = vld [vmem:[#allocation2 + $0x140] sm:$0xff]
    %v1101 = vld [vmem:[#allocation2 + $0x148] sm:$0xff]
    %v1102 = vld [vmem:[#allocation2 + $0x150] sm:$0xff]
    %v1103 = vld [vmem:[#allocation2 + $0x158] sm:$0xff]
    %v1104 = vld [vmem:[#allocation2 + $0x160] sm:$0xff]
    %v1105 = vld [vmem:[#allocation2 + $0x168] sm:$0xff]
    %v1106 = vld [vmem:[#allocation2 + $0x170] sm:$0xff]
    %v1107 = vld [vmem:[#allocation2 + $0x178] sm:$0xff]
    %v1108 = vld [vmem:[#allocation2 + $0x180] sm:$0xff]
    %v1109 = vld [vmem:[#allocation2 + $0x188] sm:$0xff]
    %v1110 = vld [vmem:[#allocation2 + $0x190] sm:$0xff]
    %v1111 = vld [vmem:[#allocation2 + $0x198] sm:$0xff]
    %v1112 = vld [vmem:[#allocation2 + $0x1a0] sm:$0xff]
    %v1113 = vld [vmem:[#allocation2 + $0x1a8] sm:$0xff]
    %v1114 = vld [vmem:[#allocation2 + $0x1b0] sm:$0xff]
    %v1115 = vld [vmem:[#allocation2 + $0x1b8] sm:$0xff]
    %v1116 = vld [vmem:[#allocation2 + $0x1c0] sm:$0xff]
    %v1117 = vld [vmem:[#allocation2 + $0x1c8] sm:$0xff]
    %v1118 = vld [vmem:[#allocation2 + $0x1d0] sm:$0xff]
    %v1119 = vld [vmem:[#allocation2 + $0x1d8] sm:$0xff]
    %v1120 = vld [vmem:[#allocation2 + $0x1e0] sm:$0xff]
    %v1121 = vld [vmem:[#allocation2 + $0x1e8] sm:$0xff]
    %v1122 = vld [vmem:[#allocation2 + $0x1f0] sm:$0xff]
    %v1123 = vld [vmem:[#allocation2 + $0x1f8] sm:$0xff]
    %v1124 = vld [vmem:[#allocation2 + $0x200] sm:$0xff]
    %v1125 = vld [vmem:[#allocation2 + $0x208] sm:$0xff]
    %v1126 = vld [vmem:[#allocation2 + $0x210] sm:$0xff]
    %v1127 = vld [vmem:[#allocation2 + $0x218] sm:$0xff]
    %v1128 = vld [vmem:[#allocation2 + $0x220] sm:$0xff]
    %v1129 = vld [vmem:[#allocation2 + $0x228] sm:$0xff]
    %v1130 = vld [vmem:[#allocation2 + $0x230] sm:$0xff]
    %v1131 = vld [vmem:[#allocation2 + $0x238] sm:$0xff]
    %v1132 = vld [vmem:[#allocation2 + $0x240] sm:$0xff]
    %v1133 = vld [vmem:[#allocation2 + $0x248] sm:$0xff]
    %v1134 = vld [vmem:[#allocation2 + $0x250] sm:$0xff]
    %v1135 = vld [vmem:[#allocation2 + $0x258] sm:$0xff]
    %v1136 = vld [vmem:[#allocation2 + $0x260] sm:$0xff]
    %v1137 = vld [vmem:[#allocation2 + $0x268] sm:$0xff]
    %v1138 = vld [vmem:[#allocation2 + $0x270] sm:$0xff]
    %v1139 = vld [vmem:[#allocation2 + $0x278] sm:$0xff]
    %v1140 = vld [vmem:[#allocation2 + $0x280] sm:$0xff]
    %v1141 = vld [vmem:[#allocation2 + $0x288] sm:$0xff]
    %v1142 = vld [vmem:[#allocation2 + $0x290] sm:$0xff]
    %v1143 = vld [vmem:[#allocation2 + $0x298] sm:$0xff]
    %v1144 = vld [vmem:[#allocation2 + $0x2a0] sm:$0xff]
    %v1145 = vld [vmem:[#allocation2 + $0x2a8] sm:$0xff]
    %v1146 = vld [vmem:[#allocation2 + $0x2b0] sm:$0xff]
    %v1147 = vld [vmem:[#allocation2 + $0x2b8] sm:$0xff]
    %v1148 = vld [vmem:[#allocation2 + $0x2c0] sm:$0xff]
    %v1149 = vld [vmem:[#allocation2 + $0x2c8] sm:$0xff]
    %v1150 = vld [vmem:[#allocation2 + $0x2d0] sm:$0xff]
    %v1151 = vld [vmem:[#allocation2 + $0x2d8] sm:$0xff]
    %v1152 = vld [vmem:[#allocation2 + $0x2e0] sm:$0xff]
    %v1153 = vld [vmem:[#allocation2 + $0x2e8] sm:$0xff]
    %v1154 = vld [vmem:[#allocation2 + $0x2f0] sm:$0xff]
    %v1155 = vld [vmem:[#allocation2 + $0x2f8] sm:$0xff]
    %v1156 = vld [vmem:[#allocation2 + $0x300] sm:$0xff]
    %v1157 = vld [vmem:[#allocation2 + $0x308] sm:$0xff]
    %v1158 = vld [vmem:[#allocation2 + $0x310] sm:$0xff]
    %v1159 = vld [vmem:[#allocation2 + $0x318] sm:$0xff]
    %v1160 = vld [vmem:[#allocation2 + $0x320] sm:$0xff]
    %v1161 = vld [vmem:[#allocation2 + $0x328] sm:$0xff]
    %v1162 = vld [vmem:[#allocation2 + $0x330] sm:$0xff]
    %v1163 = vld [vmem:[#allocation2 + $0x338] sm:$0xff]
    %v1164 = vld [vmem:[#allocation2 + $0x340] sm:$0xff]
    %v1165 = vld [vmem:[#allocation2 + $0x348] sm:$0xff]
    %v1166 = vld [vmem:[#allocation2 + $0x350] sm:$0xff]
    %v1167 = vld [vmem:[#allocation2 + $0x358] sm:$0xff]
    %v1168 = vld [vmem:[#allocation2 + $0x360] sm:$0xff]
    %v1169 = vld [vmem:[#allocation2 + $0x368] sm:$0xff]
    %v1170 = vld [vmem:[#allocation2 + $0x370] sm:$0xff]
    %v1171 = vld [vmem:[#allocation2 + $0x378] sm:$0xff]
    %v1172 = vld [vmem:[#allocation2 + $0x380] sm:$0xff]
    %v1173 = vld [vmem:[#allocation2 + $0x388] sm:$0xff]
    %v1174 = vld [vmem:[#allocation2 + $0x390] sm:$0xff]
    %v1175 = vld [vmem:[#allocation2 + $0x398] sm:$0xff]
    %v1176 = vld [vmem:[#allocation2 + $0x3a0] sm:$0xff]
    %v1177 = vld [vmem:[#allocation2 + $0x3a8] sm:$0xff]
    %v1178 = vld [vmem:[#allocation2 + $0x3b0] sm:$0xff]
    %v1179 = vld [vmem:[#allocation2 + $0x3b8] sm:$0xff]
    %v1180 = vld [vmem:[#allocation2 + $0x3c0] sm:$0xff]
    %v1181 = vld [vmem:[#allocation2 + $0x3c8] sm:$0xff]
    %v1182 = vld [vmem:[#allocation2 + $0x3d0] sm:$0xff]
    %v1183 = vld [vmem:[#allocation2 + $0x3d8] sm:$0xff]
    %v1184 = vld [vmem:[#allocation2 + $0x3e0] sm:$0xff]
    %v1185 = vld [vmem:[#allocation2 + $0x3e8] sm:$0xff]
    %v1186 = vld [vmem:[#allocation2 + $0x3f0] sm:$0xff]
    %v1187 = vld [vmem:[#allocation2 + $0x3f8] sm:$0xff]
    %v1188 = vpack.c.bf16 %v994, %v992
    %v1189 = vpack.c.bf16 %v995, %v993
    %v1190 = vpack.c.bf16 %v998, %v996
    %v1191 = vpack.c.bf16 %v999, %v997
    %v1192 = vpack.c.bf16 %v1002, %v1000
    %v1193 = vpack.c.bf16 %v1003, %v1001
    %v1194 = vpack.c.bf16 %v1006, %v1004
    %v1195 = vpack.c.bf16 %v1007, %v1005
    %v1196 = vpack.c.bf16 %v1010, %v1008
    %v1197 = vpack.c.bf16 %v1011, %v1009
    %v1198 = vpack.c.bf16 %v1014, %v1012
    %v1199 = vpack.c.bf16 %v1015, %v1013
    %v1200 = vpack.c.bf16 %v1018, %v1016
    %v1201 = vpack.c.bf16 %v1019, %v1017
    %v1202 = vpack.c.bf16 %v1022, %v1020
    %v1203 = vpack.c.bf16 %v1023, %v1021
    %v1204 = vpack.c.bf16 %v1026, %v1024
    %v1205 = vpack.c.bf16 %v1027, %v1025
    %v1206 = vpack.c.bf16 %v1030, %v1028
    %v1207 = vpack.c.bf16 %v1031, %v1029
    %v1208 = vpack.c.bf16 %v1034, %v1032
    %v1209 = vpack.c.bf16 %v1035, %v1033
    %v1210 = vpack.c.bf16 %v1038, %v1036
    %v1211 = vpack.c.bf16 %v1039, %v1037
    %v1212 = vpack.c.bf16 %v1042, %v1040
    %v1213 = vpack.c.bf16 %v1043, %v1041
    %v1214 = vpack.c.bf16 %v1046, %v1044
    %v1215 = vpack.c.bf16 %v1047, %v1045
    %v1216 = vpack.c.bf16 %v1050, %v1048
    %v1217 = vpack.c.bf16 %v1051, %v1049
    %v1218 = vpack.c.bf16 %v1054, %v1052
    %v1219 = vpack.c.bf16 %v1055, %v1053
    %s1220 = scalar_lea.vmem %s6, 3
    %v1221 = vld [vmem:[%s1220] ss:$8 sm:$0xf]
    %v1222 = vld [vmem:[%s1220] ss:$8 sm:$0xf0]
    %v1223 = vor.u32 %v1221, %v1222
    %v1225 = vlaneseq
    %v1226 = vshrl.u32 %v1225, 7
    %v1227 = vsub.s32 0, %v1226
    %v1228 = vrot.slane %v1223, %v1227
    %v1229 = vlaneseq
    %v1230 = vshrl.u32 %v1229, 7
    %v1231 = vsub.s32 1, %v1230
    %v1232 = vrot.slane %v1223, %v1231
    %v1233 = vlaneseq
    %v1234 = vshrl.u32 %v1233, 7
    %v1235 = vsub.s32 2, %v1234
    %v1236 = vrot.slane %v1223, %v1235
    %v1237 = vlaneseq
    %v1238 = vshrl.u32 %v1237, 7
    %v1239 = vsub.s32 3, %v1238
    %v1240 = vrot.slane %v1223, %v1239
    %v1241 = vlaneseq
    %v1242 = vshrl.u32 %v1241, 7
    %v1243 = vsub.s32 4, %v1242
    %v1244 = vrot.slane %v1223, %v1243
    %v1245 = vlaneseq
    %v1246 = vshrl.u32 %v1245, 7
    %v1247 = vsub.s32 5, %v1246
    %v1248 = vrot.slane %v1223, %v1247
    %v1249 = vlaneseq
    %v1250 = vshrl.u32 %v1249, 7
    %v1251 = vsub.s32 6, %v1250
    %v1252 = vrot.slane %v1223, %v1251
    %v1253 = vlaneseq
    %v1254 = vshrl.u32 %v1253, 7
    %v1255 = vsub.s32 7, %v1254
    %v1256 = vrot.slane %v1223, %v1255
    %1265 = vmatprep.subr.bf16.mxu0 %v1061
    %1266 = vmatpush1.bf16.msra.mxu0 %v1060
    %1267 = vmatprep.subr.bf16.mxu0 %v1069
    %1268 = vmatpush1.bf16.msra.mxu0 %v1068
    %1269 = vmatprep.subr.bf16.mxu0 %v1077
    %1270 = vmatpush1.bf16.msra.mxu0 %v1076
    %1271 = vmatprep.subr.bf16.mxu0 %v1085
    %1272 = vmatpush1.bf16.msra.mxu0 %v1084
    %1273 = vmatprep.subr.bf16.mxu0 %v1093
    %1274 = vmatpush1.bf16.msra.mxu0 %v1092
    %1275 = vmatprep.subr.bf16.mxu0 %v1101
    %1276 = vmatpush1.bf16.msra.mxu0 %v1100
    %1277 = vmatprep.subr.bf16.mxu0 %v1109
    %1278 = vmatpush1.bf16.msra.mxu0 %v1108
    %1279 = vmatprep.subr.bf16.mxu0 %v1117
    %1280 = vmatpush1.bf16.msra.mxu0 %v1116
    %1281 = vmatprep.subr.bf16.mxu0 %v1125
    %1282 = vmatpush1.bf16.msra.mxu0 %v1124
    %1283 = vmatprep.subr.bf16.mxu0 %v1133
    %1284 = vmatpush1.bf16.msra.mxu0 %v1132
    %1285 = vmatprep.subr.bf16.mxu0 %v1141
    %1286 = vmatpush1.bf16.msra.mxu0 %v1140
    %1287 = vmatprep.subr.bf16.mxu0 %v1149
    %1288 = vmatpush1.bf16.msra.mxu0 %v1148
    %1289 = vmatprep.subr.bf16.mxu0 %v1157
    %1290 = vmatpush1.bf16.msra.mxu0 %v1156
    %1291 = vmatprep.subr.bf16.mxu0 %v1165
    %1292 = vmatpush1.bf16.msra.mxu0 %v1164
    %1293 = vmatprep.subr.bf16.mxu0 %v1173
    %1294 = vmatpush1.bf16.msra.mxu0 %v1172
    %1295 = vmatprep.subr.bf16.mxu0 %v1181
    %1296 = vmatpush1.bf16.msra.mxu0 %v1180
    %1297 = vmatprep.mubr.bf16.mxu0 %v1189
    %1298 = vmatmul.mubr.bf16.gmra.mrb[0].mxu0 %v1188
    %v1299 = vpop.f32.mrb[0].mxu0
    %v1300 = vadd.f32 %v1228, %v1299
    %v1301 = vpop.f32.mrb[0].mxu0
    %v1302 = vadd.f32 %v1232, %v1301
    %v1303 = vpop.f32.mrb[0].mxu0
    %v1304 = vadd.f32 %v1228, %v1303
    %v1305 = vpop.f32.mrb[0].mxu0
    %v1306 = vadd.f32 %v1232, %v1305
    %1307 = vmatprep.mubr.bf16.mxu0 %v1191
    %1308 = vmatmul.mubr.bf16.gmra.mrb[0].mxu0 %v1190
    %v1309 = vpop.f32.mrb[0].mxu0
    %v1310 = vadd.f32 %v1228, %v1309
    %v1311 = vpop.f32.mrb[0].mxu0
    %v1312 = vadd.f32 %v1232, %v1311
    %v1313 = vpop.f32.mrb[0].mxu0
    %v1314 = vadd.f32 %v1228, %v1313
    %v1315 = vpop.f32.mrb[0].mxu0
    %v1316 = vadd.f32 %v1232, %v1315
    %1317 = vmatprep.mubr.bf16.mxu0 %v1193
    %1318 = vmatmul.mubr.bf16.gmra.mrb[0].mxu0 %v1192
    %v1319 = vpop.f32.mrb[0].mxu0
    %v1320 = vadd.f32 %v1228, %v1319
    %v1321 = vpop.f32.mrb[0].mxu0
    %v1322 = vadd.f32 %v1232, %v1321
    %v1323 = vpop.f32.mrb[0].mxu0
    %v1324 = vadd.f32 %v1228, %v1323
    %v1325 = vpop.f32.mrb[0].mxu0
    %v1326 = vadd.f32 %v1232, %v1325
    %1327 = vmatprep.mubr.bf16.mxu0 %v1195
    %1328 = vmatmul.mubr.bf16.gmra.mrb[0].mxu0 %v1194
    %v1329 = vpop.f32.mrb[0].mxu0
    %v1330 = vadd.f32 %v1228, %v1329
    %v1331 = vpop.f32.mrb[0].mxu0
    %v1332 = vadd.f32 %v1232, %v1331
    %v1333 = vpop.f32.mrb[0].mxu0
    %v1334 = vadd.f32 %v1228, %v1333
    %v1335 = vpop.f32.mrb[0].mxu0
    %v1336 = vadd.f32 %v1232, %v1335
    %1337 = vmatprep.mubr.bf16.mxu0 %v1197
    %1338 = vmatmul.mubr.bf16.gmra.mrb[0].mxu0 %v1196
    %v1339 = vpop.f32.mrb[0].mxu0
    %v1340 = vadd.f32 %v1228, %v1339
    %v1341 = vpop.f32.mrb[0].mxu0
    %v1342 = vadd.f32 %v1232, %v1341
    %v1343 = vpop.f32.mrb[0].mxu0
    %v1344 = vadd.f32 %v1228, %v1343
    %v1345 = vpop.f32.mrb[0].mxu0
    %v1346 = vadd.f32 %v1232, %v1345
    %1347 = vmatprep.mubr.bf16.mxu0 %v1199
    %1348 = vmatmul.mubr.bf16.gmra.mrb[0].mxu0 %v1198
    %v1349 = vpop.f32.mrb[0].mxu0
    %v1350 = vadd.f32 %v1228, %v1349
    %v1351 = vpop.f32.mrb[0].mxu0
    %v1352 = vadd.f32 %v1232, %v1351
    %v1353 = vpop.f32.mrb[0].mxu0
    %v1354 = vadd.f32 %v1228, %v1353
    %v1355 = vpop.f32.mrb[0].mxu0
    %v1356 = vadd.f32 %v1232, %v1355
    %1357 = vmatprep.mubr.bf16.mxu0 %v1201
    %1358 = vmatmul.mubr.bf16.gmra.mrb[0].mxu0 %v1200
    %v1359 = vpop.f32.mrb[0].mxu0
    %v1360 = vadd.f32 %v1228, %v1359
    %v1361 = vpop.f32.mrb[0].mxu0
    %v1362 = vadd.f32 %v1232, %v1361
    %v1363 = vpop.f32.mrb[0].mxu0
    %v1364 = vadd.f32 %v1228, %v1363
    %v1365 = vpop.f32.mrb[0].mxu0
    %v1366 = vadd.f32 %v1232, %v1365
    %1367 = vmatprep.mubr.bf16.mxu0 %v1203
    %1368 = vmatmul.mubr.bf16.gmra.mrb[0].mxu0 %v1202
    %v1369 = vpop.f32.mrb[0].mxu0
    %v1370 = vadd.f32 %v1228, %v1369
    %v1371 = vpop.f32.mrb[0].mxu0
    %v1372 = vadd.f32 %v1232, %v1371
    %v1373 = vpop.f32.mrb[0].mxu0
    %v1374 = vadd.f32 %v1228, %v1373
    %v1375 = vpop.f32.mrb[0].mxu0
    %v1376 = vadd.f32 %v1232, %v1375
    %1377 = vmatprep.mubr.bf16.mxu0 %v1205
    %1378 = vmatmul.mubr.bf16.gmra.mrb[0].mxu0 %v1204
    %v1379 = vpop.f32.mrb[0].mxu0
    %v1380 = vadd.f32 %v1228, %v1379
    %v1381 = vpop.f32.mrb[0].mxu0
    %v1382 = vadd.f32 %v1232, %v1381
    %v1383 = vpop.f32.mrb[0].mxu0
    %v1384 = vadd.f32 %v1228, %v1383
    %v1385 = vpop.f32.mrb[0].mxu0
    %v1386 = vadd.f32 %v1232, %v1385
    %1387 = vmatprep.mubr.bf16.mxu0 %v1207
    %1388 = vmatmul.mubr.bf16.gmra.mrb[0].mxu0 %v1206
    %v1389 = vpop.f32.mrb[0].mxu0
    %v1390 = vadd.f32 %v1228, %v1389
    %v1391 = vpop.f32.mrb[0].mxu0
    %v1392 = vadd.f32 %v1232, %v1391
    %v1393 = vpop.f32.mrb[0].mxu0
    %v1394 = vadd.f32 %v1228, %v1393
    %v1395 = vpop.f32.mrb[0].mxu0
    %v1396 = vadd.f32 %v1232, %v1395
    %1397 = vmatprep.mubr.bf16.mxu0 %v1209
    %1398 = vmatmul.mubr.bf16.gmra.mrb[0].mxu0 %v1208
    %v1399 = vpop.f32.mrb[0].mxu0
    %v1400 = vadd.f32 %v1228, %v1399
    %v1401 = vpop.f32.mrb[0].mxu0
    %v1402 = vadd.f32 %v1232, %v1401
    %v1403 = vpop.f32.mrb[0].mxu0
    %v1404 = vadd.f32 %v1228, %v1403
    %v1405 = vpop.f32.mrb[0].mxu0
    %v1406 = vadd.f32 %v1232, %v1405
    %1407 = vmatprep.mubr.bf16.mxu0 %v1211
    %1408 = vmatmul.mubr.bf16.gmra.mrb[0].mxu0 %v1210
    %v1409 = vpop.f32.mrb[0].mxu0
    %v1410 = vadd.f32 %v1228, %v1409
    %v1411 = vpop.f32.mrb[0].mxu0
    %v1412 = vadd.f32 %v1232, %v1411
    %v1413 = vpop.f32.mrb[0].mxu0
    %v1414 = vadd.f32 %v1228, %v1413
    %v1415 = vpop.f32.mrb[0].mxu0
    %v1416 = vadd.f32 %v1232, %v1415
    %1417 = vmatprep.mubr.bf16.mxu0 %v1213
    %1418 = vmatmul.mubr.bf16.gmra.mrb[0].mxu0 %v1212
    %v1419 = vpop.f32.mrb[0].mxu0
    %v1420 = vadd.f32 %v1228, %v1419
    %v1421 = vpop.f32.mrb[0].mxu0
    %v1422 = vadd.f32 %v1232, %v1421
    %v1423 = vpop.f32.mrb[0].mxu0
    %v1424 = vadd.f32 %v1228, %v1423
    %v1425 = vpop.f32.mrb[0].mxu0
    %v1426 = vadd.f32 %v1232, %v1425
    %1427 = vmatprep.mubr.bf16.mxu0 %v1215
    %1428 = vmatmul.mubr.bf16.gmra.mrb[0].mxu0 %v1214
    %v1429 = vpop.f32.mrb[0].mxu0
    %v1430 = vadd.f32 %v1228, %v1429
    %v1431 = vpop.f32.mrb[0].mxu0
    %v1432 = vadd.f32 %v1232, %v1431
    %v1433 = vpop.f32.mrb[0].mxu0
    %v1434 = vadd.f32 %v1228, %v1433
    %v1435 = vpop.f32.mrb[0].mxu0
    %v1436 = vadd.f32 %v1232, %v1435
    %1437 = vmatprep.mubr.bf16.mxu0 %v1217
    %1438 = vmatmul.mubr.bf16.gmra.mrb[0].mxu0 %v1216
    %v1439 = vpop.f32.mrb[0].mxu0
    %v1440 = vadd.f32 %v1228, %v1439
    %v1441 = vpop.f32.mrb[0].mxu0
    %v1442 = vadd.f32 %v1232, %v1441
    %v1443 = vpop.f32.mrb[0].mxu0
    %v1444 = vadd.f32 %v1228, %v1443
    %v1445 = vpop.f32.mrb[0].mxu0
    %v1446 = vadd.f32 %v1232, %v1445
    %1447 = vmatprep.mubr.bf16.mxu0 %v1219
    %1448 = vmatmul.mubr.bf16.gmra.mrb[0].mxu0 %v1218
    %v1449 = vpop.f32.mrb[0].mxu0
    %v1450 = vadd.f32 %v1228, %v1449
    %v1451 = vpop.f32.mrb[0].mxu0
    %v1452 = vadd.f32 %v1232, %v1451
    %v1453 = vpop.f32.mrb[0].mxu0
    %v1454 = vadd.f32 %v1228, %v1453
    %v1455 = vpop.f32.mrb[0].mxu0
    %v1456 = vadd.f32 %v1232, %v1455
    %1457 = vdwg.mxu0
    %1458 = vmatprep.subr.bf16.mxu0 %v1063
    %1459 = vmatpush1.bf16.msra.mxu0 %v1062
    %1460 = vmatprep.subr.bf16.mxu0 %v1071
    %1461 = vmatpush1.bf16.msra.mxu0 %v1070
    %1462 = vmatprep.subr.bf16.mxu0 %v1079
    %1463 = vmatpush1.bf16.msra.mxu0 %v1078
    %1464 = vmatprep.subr.bf16.mxu0 %v1087
    %1465 = vmatpush1.bf16.msra.mxu0 %v1086
    %1466 = vmatprep.subr.bf16.mxu0 %v1095
    %1467 = vmatpush1.bf16.msra.mxu0 %v1094
    %1468 = vmatprep.subr.bf16.mxu0 %v1103
    %1469 = vmatpush1.bf16.msra.mxu0 %v1102
    %1470 = vmatprep.subr.bf16.mxu0 %v1111
    %1471 = vmatpush1.bf16.msra.mxu0 %v1110
    %1472 = vmatprep.subr.bf16.mxu0 %v1119
    %1473 = vmatpush1.bf16.msra.mxu0 %v1118
    %1474 = vmatprep.subr.bf16.mxu0 %v1127
    %1475 = vmatpush1.bf16.msra.mxu0 %v1126
    %1476 = vmatprep.subr.bf16.mxu0 %v1135
    %1477 = vmatpush1.bf16.msra.mxu0 %v1134
    %1478 = vmatprep.subr.bf16.mxu0 %v1143
    %1479 = vmatpush1.bf16.msra.mxu0 %v1142
    %1480 = vmatprep.subr.bf16.mxu0 %v1151
    %1481 = vmatpush1.bf16.msra.mxu0 %v1150
    %1482 = vmatprep.subr.bf16.mxu0 %v1159
    %1483 = vmatpush1.bf16.msra.mxu0 %v1158
    %1484 = vmatprep.subr.bf16.mxu0 %v1167
    %1485 = vmatpush1.bf16.msra.mxu0 %v1166
    %1486 = vmatprep.subr.bf16.mxu0 %v1175
    %1487 = vmatpush1.bf16.msra.mxu0 %v1174
    %1488 = vmatprep.subr.bf16.mxu0 %v1183
    %1489 = vmatpush1.bf16.msra.mxu0 %v1182
    %1490 = vmatprep.mubr.bf16.mxu0 %v1189
    %1491 = vmatmul.mubr.bf16.gmra.mrb[0].mxu0 %v1188
    %v1492 = vpop.f32.mrb[0].mxu0
    %v1493 = vadd.f32 %v1236, %v1492
    %v1494 = vpop.f32.mrb[0].mxu0
    %v1495 = vadd.f32 %v1240, %v1494
    %v1496 = vpop.f32.mrb[0].mxu0
    %v1497 = vadd.f32 %v1236, %v1496
    %v1498 = vpop.f32.mrb[0].mxu0
    %v1499 = vadd.f32 %v1240, %v1498
    %1500 = vmatprep.mubr.bf16.mxu0 %v1191
    %1501 = vmatmul.mubr.bf16.gmra.mrb[0].mxu0 %v1190
    %v1502 = vpop.f32.mrb[0].mxu0
    %v1503 = vadd.f32 %v1236, %v1502
    %v1504 = vpop.f32.mrb[0].mxu0
    %v1505 = vadd.f32 %v1240, %v1504
    %v1506 = vpop.f32.mrb[0].mxu0
    %v1507 = vadd.f32 %v1236, %v1506
    %v1508 = vpop.f32.mrb[0].mxu0
    %v1509 = vadd.f32 %v1240, %v1508
    %1510 = vmatprep.mubr.bf16.mxu0 %v1193
    %1511 = vmatmul.mubr.bf16.gmra.mrb[0].mxu0 %v1192
    %v1512 = vpop.f32.mrb[0].mxu0
    %v1513 = vadd.f32 %v1236, %v1512
    %v1514 = vpop.f32.mrb[0].mxu0
    %v1515 = vadd.f32 %v1240, %v1514
    %v1516 = vpop.f32.mrb[0].mxu0
    %v1517 = vadd.f32 %v1236, %v1516
    %v1518 = vpop.f32.mrb[0].mxu0
    %v1519 = vadd.f32 %v1240, %v1518
    %1520 = vmatprep.mubr.bf16.mxu0 %v1195
    %1521 = vmatmul.mubr.bf16.gmra.mrb[0].mxu0 %v1194
    %v1522 = vpop.f32.mrb[0].mxu0
    %v1523 = vadd.f32 %v1236, %v1522
    %v1524 = vpop.f32.mrb[0].mxu0
    %v1525 = vadd.f32 %v1240, %v1524
    %v1526 = vpop.f32.mrb[0].mxu0
    %v1527 = vadd.f32 %v1236, %v1526
    %v1528 = vpop.f32.mrb[0].mxu0
    %v1529 = vadd.f32 %v1240, %v1528
    %1530 = vmatprep.mubr.bf16.mxu0 %v1197
    %1531 = vmatmul.mubr.bf16.gmra.mrb[0].mxu0 %v1196
    %v1532 = vpop.f32.mrb[0].mxu0
    %v1533 = vadd.f32 %v1236, %v1532
    %v1534 = vpop.f32.mrb[0].mxu0
    %v1535 = vadd.f32 %v1240, %v1534
    %v1536 = vpop.f32.mrb[0].mxu0
    %v1537 = vadd.f32 %v1236, %v1536
    %v1538 = vpop.f32.mrb[0].mxu0
    %v1539 = vadd.f32 %v1240, %v1538
    %1540 = vmatprep.mubr.bf16.mxu0 %v1199
    %1541 = vmatmul.mubr.bf16.gmra.mrb[0].mxu0 %v1198
    %v1542 = vpop.f32.mrb[0].mxu0
    %v1543 = vadd.f32 %v1236, %v1542
    %v1544 = vpop.f32.mrb[0].mxu0
    %v1545 = vadd.f32 %v1240, %v1544
    %v1546 = vpop.f32.mrb[0].mxu0
    %v1547 = vadd.f32 %v1236, %v1546
    %v1548 = vpop.f32.mrb[0].mxu0
    %v1549 = vadd.f32 %v1240, %v1548
    %1550 = vmatprep.mubr.bf16.mxu0 %v1201
    %1551 = vmatmul.mubr.bf16.gmra.mrb[0].mxu0 %v1200
    %v1552 = vpop.f32.mrb[0].mxu0
    %v1553 = vadd.f32 %v1236, %v1552
    %v1554 = vpop.f32.mrb[0].mxu0
    %v1555 = vadd.f32 %v1240, %v1554
    %v1556 = vpop.f32.mrb[0].mxu0
    %v1557 = vadd.f32 %v1236, %v1556
    %v1558 = vpop.f32.mrb[0].mxu0
    %v1559 = vadd.f32 %v1240, %v1558
    %1560 = vmatprep.mubr.bf16.mxu0 %v1203
    %1561 = vmatmul.mubr.bf16.gmra.mrb[0].mxu0 %v1202
    %v1562 = vpop.f32.mrb[0].mxu0
    %v1563 = vadd.f32 %v1236, %v1562
    %v1564 = vpop.f32.mrb[0].mxu0
    %v1565 = vadd.f32 %v1240, %v1564
    %v1566 = vpop.f32.mrb[0].mxu0
    %v1567 = vadd.f32 %v1236, %v1566
    %v1568 = vpop.f32.mrb[0].mxu0
    %v1569 = vadd.f32 %v1240, %v1568
    %1570 = vmatprep.mubr.bf16.mxu0 %v1205
    %1571 = vmatmul.mubr.bf16.gmra.mrb[0].mxu0 %v1204
    %v1572 = vpop.f32.mrb[0].mxu0
    %v1573 = vadd.f32 %v1236, %v1572
    %v1574 = vpop.f32.mrb[0].mxu0
    %v1575 = vadd.f32 %v1240, %v1574
    %v1576 = vpop.f32.mrb[0].mxu0
    %v1577 = vadd.f32 %v1236, %v1576
    %v1578 = vpop.f32.mrb[0].mxu0
    %v1579 = vadd.f32 %v1240, %v1578
    %1580 = vmatprep.mubr.bf16.mxu0 %v1207
    %1581 = vmatmul.mubr.bf16.gmra.mrb[0].mxu0 %v1206
    %v1582 = vpop.f32.mrb[0].mxu0
    %v1583 = vadd.f32 %v1236, %v1582
    %v1584 = vpop.f32.mrb[0].mxu0
    %v1585 = vadd.f32 %v1240, %v1584
    %v1586 = vpop.f32.mrb[0].mxu0
    %v1587 = vadd.f32 %v1236, %v1586
    %v1588 = vpop.f32.mrb[0].mxu0
    %v1589 = vadd.f32 %v1240, %v1588
    %1590 = vmatprep.mubr.bf16.mxu0 %v1209
    %1591 = vmatmul.mubr.bf16.gmra.mrb[0].mxu0 %v1208
    %v1592 = vpop.f32.mrb[0].mxu0
    %v1593 = vadd.f32 %v1236, %v1592
    %v1594 = vpop.f32.mrb[0].mxu0
    %v1595 = vadd.f32 %v1240, %v1594
    %v1596 = vpop.f32.mrb[0].mxu0
    %v1597 = vadd.f32 %v1236, %v1596
    %v1598 = vpop.f32.mrb[0].mxu0
    %v1599 = vadd.f32 %v1240, %v1598
    %1600 = vmatprep.mubr.bf16.mxu0 %v1211
    %1601 = vmatmul.mubr.bf16.gmra.mrb[0].mxu0 %v1210
    %v1602 = vpop.f32.mrb[0].mxu0
    %v1603 = vadd.f32 %v1236, %v1602
    %v1604 = vpop.f32.mrb[0].mxu0
    %v1605 = vadd.f32 %v1240, %v1604
    %v1606 = vpop.f32.mrb[0].mxu0
    %v1607 = vadd.f32 %v1236, %v1606
    %v1608 = vpop.f32.mrb[0].mxu0
    %v1609 = vadd.f32 %v1240, %v1608
    %1610 = vmatprep.mubr.bf16.mxu0 %v1213
    %1611 = vmatmul.mubr.bf16.gmra.mrb[0].mxu0 %v1212
    %v1612 = vpop.f32.mrb[0].mxu0
    %v1613 = vadd.f32 %v1236, %v1612
    %v1614 = vpop.f32.mrb[0].mxu0
    %v1615 = vadd.f32 %v1240, %v1614
    %v1616 = vpop.f32.mrb[0].mxu0
    %v1617 = vadd.f32 %v1236, %v1616
    %v1618 = vpop.f32.mrb[0].mxu0
    %v1619 = vadd.f32 %v1240, %v1618
    %1620 = vmatprep.mubr.bf16.mxu0 %v1215
    %1621 = vmatmul.mubr.bf16.gmra.mrb[0].mxu0 %v1214
    %v1622 = vpop.f32.mrb[0].mxu0
    %v1623 = vadd.f32 %v1236, %v1622
    %v1624 = vpop.f32.mrb[0].mxu0
    %v1625 = vadd.f32 %v1240, %v1624
    %v1626 = vpop.f32.mrb[0].mxu0
    %v1627 = vadd.f32 %v1236, %v1626
    %v1628 = vpop.f32.mrb[0].mxu0
    %v1629 = vadd.f32 %v1240, %v1628
    %1630 = vmatprep.mubr.bf16.mxu0 %v1217
    %1631 = vmatmul.mubr.bf16.gmra.mrb[0].mxu0 %v1216
    %v1632 = vpop.f32.mrb[0].mxu0
    %v1633 = vadd.f32 %v1236, %v1632
    %v1634 = vpop.f32.mrb[0].mxu0
    %v1635 = vadd.f32 %v1240, %v1634
    %v1636 = vpop.f32.mrb[0].mxu0
    %v1637 = vadd.f32 %v1236, %v1636
    %v1638 = vpop.f32.mrb[0].mxu0
    %v1639 = vadd.f32 %v1240, %v1638
    %1640 = vmatprep.mubr.bf16.mxu0 %v1219
    %1641 = vmatmul.mubr.bf16.gmra.mrb[0].mxu0 %v1218
    %v1642 = vpop.f32.mrb[0].mxu0
    %v1643 = vadd.f32 %v1236, %v1642
    %v1644 = vpop.f32.mrb[0].mxu0
    %v1645 = vadd.f32 %v1240, %v1644
    %v1646 = vpop.f32.mrb[0].mxu0
    %v1647 = vadd.f32 %v1236, %v1646
    %v1648 = vpop.f32.mrb[0].mxu0
    %v1649 = vadd.f32 %v1240, %v1648
    %1650 = vdwg.mxu0
    %1651 = vmatprep.subr.bf16.mxu0 %v1065
    %1652 = vmatpush1.bf16.msra.mxu0 %v1064
    %1653 = vmatprep.subr.bf16.mxu0 %v1073
    %1654 = vmatpush1.bf16.msra.mxu0 %v1072
    %1655 = vmatprep.subr.bf16.mxu0 %v1081
    %1656 = vmatpush1.bf16.msra.mxu0 %v1080
    %1657 = vmatprep.subr.bf16.mxu0 %v1089
    %1658 = vmatpush1.bf16.msra.mxu0 %v1088
    %1659 = vmatprep.subr.bf16.mxu0 %v1097
    %1660 = vmatpush1.bf16.msra.mxu0 %v1096
    %1661 = vmatprep.subr.bf16.mxu0 %v1105
    %1662 = vmatpush1.bf16.msra.mxu0 %v1104
    %1663 = vmatprep.subr.bf16.mxu0 %v1113
    %1664 = vmatpush1.bf16.msra.mxu0 %v1112
    %1665 = vmatprep.subr.bf16.mxu0 %v1121
    %1666 = vmatpush1.bf16.msra.mxu0 %v1120
    %1667 = vmatprep.subr.bf16.mxu0 %v1129
    %1668 = vmatpush1.bf16.msra.mxu0 %v1128
    %1669 = vmatprep.subr.bf16.mxu0 %v1137
    %1670 = vmatpush1.bf16.msra.mxu0 %v1136
    %1671 = vmatprep.subr.bf16.mxu0 %v1145
    %1672 = vmatpush1.bf16.msra.mxu0 %v1144
    %1673 = vmatprep.subr.bf16.mxu0 %v1153
    %1674 = vmatpush1.bf16.msra.mxu0 %v1152
    %1675 = vmatprep.subr.bf16.mxu0 %v1161
    %1676 = vmatpush1.bf16.msra.mxu0 %v1160
    %1677 = vmatprep.subr.bf16.mxu0 %v1169
    %1678 = vmatpush1.bf16.msra.mxu0 %v1168
    %1679 = vmatprep.subr.bf16.mxu0 %v1177
    %1680 = vmatpush1.bf16.msra.mxu0 %v1176
    %1681 = vmatprep.subr.bf16.mxu0 %v1185
    %1682 = vmatpush1.bf16.msra.mxu0 %v1184
    %1683 = vmatprep.mubr.bf16.mxu0 %v1189
    %1684 = vmatmul.mubr.bf16.gmra.mrb[0].mxu0 %v1188
    %v1685 = vpop.f32.mrb[0].mxu0
    %v1686 = vadd.f32 %v1244, %v1685
    %v1687 = vpop.f32.mrb[0].mxu0
    %v1688 = vadd.f32 %v1248, %v1687
    %v1689 = vpop.f32.mrb[0].mxu0
    %v1690 = vadd.f32 %v1244, %v1689
    %v1691 = vpop.f32.mrb[0].mxu0
    %v1692 = vadd.f32 %v1248, %v1691
    %1693 = vmatprep.mubr.bf16.mxu0 %v1191
    %1694 = vmatmul.mubr.bf16.gmra.mrb[0].mxu0 %v1190
    %v1695 = vpop.f32.mrb[0].mxu0
    %v1696 = vadd.f32 %v1244, %v1695
    %v1697 = vpop.f32.mrb[0].mxu0
    %v1698 = vadd.f32 %v1248, %v1697
    %v1699 = vpop.f32.mrb[0].mxu0
    %v1700 = vadd.f32 %v1244, %v1699
    %v1701 = vpop.f32.mrb[0].mxu0
    %v1702 = vadd.f32 %v1248, %v1701
    %1703 = vmatprep.mubr.bf16.mxu0 %v1193
    %1704 = vmatmul.mubr.bf16.gmra.mrb[0].mxu0 %v1192
    %v1705 = vpop.f32.mrb[0].mxu0
    %v1706 = vadd.f32 %v1244, %v1705
    %v1707 = vpop.f32.mrb[0].mxu0
    %v1708 = vadd.f32 %v1248, %v1707
    %v1709 = vpop.f32.mrb[0].mxu0
    %v1710 = vadd.f32 %v1244, %v1709
    %v1711 = vpop.f32.mrb[0].mxu0
    %v1712 = vadd.f32 %v1248, %v1711
    %1713 = vmatprep.mubr.bf16.mxu0 %v1195
    %1714 = vmatmul.mubr.bf16.gmra.mrb[0].mxu0 %v1194
    %v1715 = vpop.f32.mrb[0].mxu0
    %v1716 = vadd.f32 %v1244, %v1715
    %v1717 = vpop.f32.mrb[0].mxu0
    %v1718 = vadd.f32 %v1248, %v1717
    %v1719 = vpop.f32.mrb[0].mxu0
    %v1720 = vadd.f32 %v1244, %v1719
    %v1721 = vpop.f32.mrb[0].mxu0
    %v1722 = vadd.f32 %v1248, %v1721
    %1723 = vmatprep.mubr.bf16.mxu0 %v1197
    %1724 = vmatmul.mubr.bf16.gmra.mrb[0].mxu0 %v1196
    %v1725 = vpop.f32.mrb[0].mxu0
    %v1726 = vadd.f32 %v1244, %v1725
    %v1727 = vpop.f32.mrb[0].mxu0
    %v1728 = vadd.f32 %v1248, %v1727
    %v1729 = vpop.f32.mrb[0].mxu0
    %v1730 = vadd.f32 %v1244, %v1729
    %v1731 = vpop.f32.mrb[0].mxu0
    %v1732 = vadd.f32 %v1248, %v1731
    %1733 = vmatprep.mubr.bf16.mxu0 %v1199
    %1734 = vmatmul.mubr.bf16.gmra.mrb[0].mxu0 %v1198
    %v1735 = vpop.f32.mrb[0].mxu0
    %v1736 = vadd.f32 %v1244, %v1735
    %v1737 = vpop.f32.mrb[0].mxu0
    %v1738 = vadd.f32 %v1248, %v1737
    %v1739 = vpop.f32.mrb[0].mxu0
    %v1740 = vadd.f32 %v1244, %v1739
    %v1741 = vpop.f32.mrb[0].mxu0
    %v1742 = vadd.f32 %v1248, %v1741
    %1743 = vmatprep.mubr.bf16.mxu0 %v1201
    %1744 = vmatmul.mubr.bf16.gmra.mrb[0].mxu0 %v1200
    %v1745 = vpop.f32.mrb[0].mxu0
    %v1746 = vadd.f32 %v1244, %v1745
    %v1747 = vpop.f32.mrb[0].mxu0
    %v1748 = vadd.f32 %v1248, %v1747
    %v1749 = vpop.f32.mrb[0].mxu0
    %v1750 = vadd.f32 %v1244, %v1749
    %v1751 = vpop.f32.mrb[0].mxu0
    %v1752 = vadd.f32 %v1248, %v1751
    %1753 = vmatprep.mubr.bf16.mxu0 %v1203
    %1754 = vmatmul.mubr.bf16.gmra.mrb[0].mxu0 %v1202
    %v1755 = vpop.f32.mrb[0].mxu0
    %v1756 = vadd.f32 %v1244, %v1755
    %v1757 = vpop.f32.mrb[0].mxu0
    %v1758 = vadd.f32 %v1248, %v1757
    %v1759 = vpop.f32.mrb[0].mxu0
    %v1760 = vadd.f32 %v1244, %v1759
    %v1761 = vpop.f32.mrb[0].mxu0
    %v1762 = vadd.f32 %v1248, %v1761
    %1763 = vmatprep.mubr.bf16.mxu0 %v1205
    %1764 = vmatmul.mubr.bf16.gmra.mrb[0].mxu0 %v1204
    %v1765 = vpop.f32.mrb[0].mxu0
    %v1766 = vadd.f32 %v1244, %v1765
    %v1767 = vpop.f32.mrb[0].mxu0
    %v1768 = vadd.f32 %v1248, %v1767
    %v1769 = vpop.f32.mrb[0].mxu0
    %v1770 = vadd.f32 %v1244, %v1769
    %v1771 = vpop.f32.mrb[0].mxu0
    %v1772 = vadd.f32 %v1248, %v1771
    %1773 = vmatprep.mubr.bf16.mxu0 %v1207
    %1774 = vmatmul.mubr.bf16.gmra.mrb[0].mxu0 %v1206
    %v1775 = vpop.f32.mrb[0].mxu0
    %v1776 = vadd.f32 %v1244, %v1775
    %v1777 = vpop.f32.mrb[0].mxu0
    %v1778 = vadd.f32 %v1248, %v1777
    %v1779 = vpop.f32.mrb[0].mxu0
    %v1780 = vadd.f32 %v1244, %v1779
    %v1781 = vpop.f32.mrb[0].mxu0
    %v1782 = vadd.f32 %v1248, %v1781
    %1783 = vmatprep.mubr.bf16.mxu0 %v1209
    %1784 = vmatmul.mubr.bf16.gmra.mrb[0].mxu0 %v1208
    %v1785 = vpop.f32.mrb[0].mxu0
    %v1786 = vadd.f32 %v1244, %v1785
    %v1787 = vpop.f32.mrb[0].mxu0
    %v1788 = vadd.f32 %v1248, %v1787
    %v1789 = vpop.f32.mrb[0].mxu0
    %v1790 = vadd.f32 %v1244, %v1789
    %v1791 = vpop.f32.mrb[0].mxu0
    %v1792 = vadd.f32 %v1248, %v1791
    %1793 = vmatprep.mubr.bf16.mxu0 %v1211
    %1794 = vmatmul.mubr.bf16.gmra.mrb[0].mxu0 %v1210
    %v1795 = vpop.f32.mrb[0].mxu0
    %v1796 = vadd.f32 %v1244, %v1795
    %v1797 = vpop.f32.mrb[0].mxu0
    %v1798 = vadd.f32 %v1248, %v1797
    %v1799 = vpop.f32.mrb[0].mxu0
    %v1800 = vadd.f32 %v1244, %v1799
    %v1801 = vpop.f32.mrb[0].mxu0
    %v1802 = vadd.f32 %v1248, %v1801
    %1803 = vmatprep.mubr.bf16.mxu0 %v1213
    %1804 = vmatmul.mubr.bf16.gmra.mrb[0].mxu0 %v1212
    %v1805 = vpop.f32.mrb[0].mxu0
    %v1806 = vadd.f32 %v1244, %v1805
    %v1807 = vpop.f32.mrb[0].mxu0
    %v1808 = vadd.f32 %v1248, %v1807
    %v1809 = vpop.f32.mrb[0].mxu0
    %v1810 = vadd.f32 %v1244, %v1809
    %v1811 = vpop.f32.mrb[0].mxu0
    %v1812 = vadd.f32 %v1248, %v1811
    %1813 = vmatprep.mubr.bf16.mxu0 %v1215
    %1814 = vmatmul.mubr.bf16.gmra.mrb[0].mxu0 %v1214
    %v1815 = vpop.f32.mrb[0].mxu0
    %v1816 = vadd.f32 %v1244, %v1815
    %v1817 = vpop.f32.mrb[0].mxu0
    %v1818 = vadd.f32 %v1248, %v1817
    %v1819 = vpop.f32.mrb[0].mxu0
    %v1820 = vadd.f32 %v1244, %v1819
    %v1821 = vpop.f32.mrb[0].mxu0
    %v1822 = vadd.f32 %v1248, %v1821
    %1823 = vmatprep.mubr.bf16.mxu0 %v1217
    %1824 = vmatmul.mubr.bf16.gmra.mrb[0].mxu0 %v1216
    %v1825 = vpop.f32.mrb[0].mxu0
    %v1826 = vadd.f32 %v1244, %v1825
    %v1827 = vpop.f32.mrb[0].mxu0
    %v1828 = vadd.f32 %v1248, %v1827
    %v1829 = vpop.f32.mrb[0].mxu0
    %v1830 = vadd.f32 %v1244, %v1829
    %v1831 = vpop.f32.mrb[0].mxu0
    %v1832 = vadd.f32 %v1248, %v1831
    %1833 = vmatprep.mubr.bf16.mxu0 %v1219
    %1834 = vmatmul.mubr.bf16.gmra.mrb[0].mxu0 %v1218
    %v1835 = vpop.f32.mrb[0].mxu0
    %v1836 = vadd.f32 %v1244, %v1835
    %v1837 = vpop.f32.mrb[0].mxu0
    %v1838 = vadd.f32 %v1248, %v1837
    %v1839 = vpop.f32.mrb[0].mxu0
    %v1840 = vadd.f32 %v1244, %v1839
    %v1841 = vpop.f32.mrb[0].mxu0
    %v1842 = vadd.f32 %v1248, %v1841
    %1843 = vdwg.mxu0
    %1844 = vmatprep.subr.bf16.mxu0 %v1067
    %1845 = vmatpush1.bf16.msra.mxu0 %v1066
    %1846 = vmatprep.subr.bf16.mxu0 %v1075
    %1847 = vmatpush1.bf16.msra.mxu0 %v1074
    %1848 = vmatprep.subr.bf16.mxu0 %v1083
    %1849 = vmatpush1.bf16.msra.mxu0 %v1082
    %1850 = vmatprep.subr.bf16.mxu0 %v1091
    %1851 = vmatpush1.bf16.msra.mxu0 %v1090
    %1852 = vmatprep.subr.bf16.mxu0 %v1099
    %1853 = vmatpush1.bf16.msra.mxu0 %v1098
    %1854 = vmatprep.subr.bf16.mxu0 %v1107
    %1855 = vmatpush1.bf16.msra.mxu0 %v1106
    %1856 = vmatprep.subr.bf16.mxu0 %v1115
    %1857 = vmatpush1.bf16.msra.mxu0 %v1114
    %1858 = vmatprep.subr.bf16.mxu0 %v1123
    %1859 = vmatpush1.bf16.msra.mxu0 %v1122
    %1860 = vmatprep.subr.bf16.mxu0 %v1131
    %1861 = vmatpush1.bf16.msra.mxu0 %v1130
    %1862 = vmatprep.subr.bf16.mxu0 %v1139
    %1863 = vmatpush1.bf16.msra.mxu0 %v1138
    %1864 = vmatprep.subr.bf16.mxu0 %v1147
    %1865 = vmatpush1.bf16.msra.mxu0 %v1146
    %1866 = vmatprep.subr.bf16.mxu0 %v1155
    %1867 = vmatpush1.bf16.msra.mxu0 %v1154
    %1868 = vmatprep.subr.bf16.mxu0 %v1163
    %1869 = vmatpush1.bf16.msra.mxu0 %v1162
    %1870 = vmatprep.subr.bf16.mxu0 %v1171
    %1871 = vmatpush1.bf16.msra.mxu0 %v1170
    %1872 = vmatprep.subr.bf16.mxu0 %v1179
    %1873 = vmatpush1.bf16.msra.mxu0 %v1178
    %1874 = vmatprep.subr.bf16.mxu0 %v1187
    %1875 = vmatpush1.bf16.msra.mxu0 %v1186
    %1876 = vmatprep.mubr.bf16.mxu0 %v1189
    %1877 = vmatmul.mubr.bf16.gmra.mrb[0].mxu0 %v1188
    %v1878 = vpop.f32.mrb[0].mxu0
    %v1879 = vadd.f32 %v1252, %v1878
    %v1880 = vpop.f32.mrb[0].mxu0
    %v1881 = vadd.f32 %v1256, %v1880
    %v1882 = vpop.f32.mrb[0].mxu0
    %v1883 = vadd.f32 %v1252, %v1882
    %v1884 = vpop.f32.mrb[0].mxu0
    %v1885 = vadd.f32 %v1256, %v1884
    %1886 = vmatprep.mubr.bf16.mxu0 %v1191
    %1887 = vmatmul.mubr.bf16.gmra.mrb[0].mxu0 %v1190
    %v1888 = vpop.f32.mrb[0].mxu0
    %v1889 = vadd.f32 %v1252, %v1888
    %v1890 = vpop.f32.mrb[0].mxu0
    %v1891 = vadd.f32 %v1256, %v1890
    %v1892 = vpop.f32.mrb[0].mxu0
    %v1893 = vadd.f32 %v1252, %v1892
    %v1894 = vpop.f32.mrb[0].mxu0
    %v1895 = vadd.f32 %v1256, %v1894
    %1896 = vmatprep.mubr.bf16.mxu0 %v1193
    %1897 = vmatmul.mubr.bf16.gmra.mrb[0].mxu0 %v1192
    %v1898 = vpop.f32.mrb[0].mxu0
    %v1899 = vadd.f32 %v1252, %v1898
    %v1900 = vpop.f32.mrb[0].mxu0
    %v1901 = vadd.f32 %v1256, %v1900
    %v1902 = vpop.f32.mrb[0].mxu0
    %v1903 = vadd.f32 %v1252, %v1902
    %v1904 = vpop.f32.mrb[0].mxu0
    %v1905 = vadd.f32 %v1256, %v1904
    %1906 = vmatprep.mubr.bf16.mxu0 %v1195
    %1907 = vmatmul.mubr.bf16.gmra.mrb[0].mxu0 %v1194
    %v1908 = vpop.f32.mrb[0].mxu0
    %v1909 = vadd.f32 %v1252, %v1908
    %v1910 = vpop.f32.mrb[0].mxu0
    %v1911 = vadd.f32 %v1256, %v1910
    %v1912 = vpop.f32.mrb[0].mxu0
    %v1913 = vadd.f32 %v1252, %v1912
    %v1914 = vpop.f32.mrb[0].mxu0
    %v1915 = vadd.f32 %v1256, %v1914
    %1916 = vmatprep.mubr.bf16.mxu0 %v1197
    %1917 = vmatmul.mubr.bf16.gmra.mrb[0].mxu0 %v1196
    %v1918 = vpop.f32.mrb[0].mxu0
    %v1919 = vadd.f32 %v1252, %v1918
    %v1920 = vpop.f32.mrb[0].mxu0
    %v1921 = vadd.f32 %v1256, %v1920
    %v1922 = vpop.f32.mrb[0].mxu0
    %v1923 = vadd.f32 %v1252, %v1922
    %v1924 = vpop.f32.mrb[0].mxu0
    %v1925 = vadd.f32 %v1256, %v1924
    %1926 = vmatprep.mubr.bf16.mxu0 %v1199
    %1927 = vmatmul.mubr.bf16.gmra.mrb[0].mxu0 %v1198
    %v1928 = vpop.f32.mrb[0].mxu0
    %v1929 = vadd.f32 %v1252, %v1928
    %v1930 = vpop.f32.mrb[0].mxu0
    %v1931 = vadd.f32 %v1256, %v1930
    %v1932 = vpop.f32.mrb[0].mxu0
    %v1933 = vadd.f32 %v1252, %v1932
    %v1934 = vpop.f32.mrb[0].mxu0
    %v1935 = vadd.f32 %v1256, %v1934
    %1936 = vmatprep.mubr.bf16.mxu0 %v1201
    %1937 = vmatmul.mubr.bf16.gmra.mrb[0].mxu0 %v1200
    %v1938 = vpop.f32.mrb[0].mxu0
    %v1939 = vadd.f32 %v1252, %v1938
    %v1940 = vpop.f32.mrb[0].mxu0
    %v1941 = vadd.f32 %v1256, %v1940
    %v1942 = vpop.f32.mrb[0].mxu0
    %v1943 = vadd.f32 %v1252, %v1942
    %v1944 = vpop.f32.mrb[0].mxu0
    %v1945 = vadd.f32 %v1256, %v1944
    %1946 = vmatprep.mubr.bf16.mxu0 %v1203
    %1947 = vmatmul.mubr.bf16.gmra.mrb[0].mxu0 %v1202
    %v1948 = vpop.f32.mrb[0].mxu0
    %v1949 = vadd.f32 %v1252, %v1948
    %v1950 = vpop.f32.mrb[0].mxu0
    %v1951 = vadd.f32 %v1256, %v1950
    %v1952 = vpop.f32.mrb[0].mxu0
    %v1953 = vadd.f32 %v1252, %v1952
    %v1954 = vpop.f32.mrb[0].mxu0
    %v1955 = vadd.f32 %v1256, %v1954
    %1956 = vmatprep.mubr.bf16.mxu0 %v1205
    %1957 = vmatmul.mubr.bf16.gmra.mrb[0].mxu0 %v1204
    %v1958 = vpop.f32.mrb[0].mxu0
    %v1959 = vadd.f32 %v1252, %v1958
    %v1960 = vpop.f32.mrb[0].mxu0
    %v1961 = vadd.f32 %v1256, %v1960
    %v1962 = vpop.f32.mrb[0].mxu0
    %v1963 = vadd.f32 %v1252, %v1962
    %v1964 = vpop.f32.mrb[0].mxu0
    %v1965 = vadd.f32 %v1256, %v1964
    %1966 = vmatprep.mubr.bf16.mxu0 %v1207
    %1967 = vmatmul.mubr.bf16.gmra.mrb[0].mxu0 %v1206
    %v1968 = vpop.f32.mrb[0].mxu0
    %v1969 = vadd.f32 %v1252, %v1968
    %v1970 = vpop.f32.mrb[0].mxu0
    %v1971 = vadd.f32 %v1256, %v1970
    %v1972 = vpop.f32.mrb[0].mxu0
    %v1973 = vadd.f32 %v1252, %v1972
    %v1974 = vpop.f32.mrb[0].mxu0
    %v1975 = vadd.f32 %v1256, %v1974
    %1976 = vmatprep.mubr.bf16.mxu0 %v1209
    %1977 = vmatmul.mubr.bf16.gmra.mrb[0].mxu0 %v1208
    %v1978 = vpop.f32.mrb[0].mxu0
    %v1979 = vadd.f32 %v1252, %v1978
    %v1980 = vpop.f32.mrb[0].mxu0
    %v1981 = vadd.f32 %v1256, %v1980
    %v1982 = vpop.f32.mrb[0].mxu0
    %v1983 = vadd.f32 %v1252, %v1982
    %v1984 = vpop.f32.mrb[0].mxu0
    %v1985 = vadd.f32 %v1256, %v1984
    %1986 = vmatprep.mubr.bf16.mxu0 %v1211
    %1987 = vmatmul.mubr.bf16.gmra.mrb[0].mxu0 %v1210
    %v1988 = vpop.f32.mrb[0].mxu0
    %v1989 = vadd.f32 %v1252, %v1988
    %v1990 = vpop.f32.mrb[0].mxu0
    %v1991 = vadd.f32 %v1256, %v1990
    %v1992 = vpop.f32.mrb[0].mxu0
    %v1993 = vadd.f32 %v1252, %v1992
    %v1994 = vpop.f32.mrb[0].mxu0
    %v1995 = vadd.f32 %v1256, %v1994
    %1996 = vmatprep.mubr.bf16.mxu0 %v1213
    %1997 = vmatmul.mubr.bf16.gmra.mrb[0].mxu0 %v1212
    %v1998 = vpop.f32.mrb[0].mxu0
    %v1999 = vadd.f32 %v1252, %v1998
    %v2000 = vpop.f32.mrb[0].mxu0
    %v2001 = vadd.f32 %v1256, %v2000
    %v2002 = vpop.f32.mrb[0].mxu0
    %v2003 = vadd.f32 %v1252, %v2002
    %v2004 = vpop.f32.mrb[0].mxu0
    %v2005 = vadd.f32 %v1256, %v2004
    %2006 = vmatprep.mubr.bf16.mxu0 %v1215
    %2007 = vmatmul.mubr.bf16.gmra.mrb[0].mxu0 %v1214
    %v2008 = vpop.f32.mrb[0].mxu0
    %v2009 = vadd.f32 %v1252, %v2008
    %v2010 = vpop.f32.mrb[0].mxu0
    %v2011 = vadd.f32 %v1256, %v2010
    %v2012 = vpop.f32.mrb[0].mxu0
    %v2013 = vadd.f32 %v1252, %v2012
    %v2014 = vpop.f32.mrb[0].mxu0
    %v2015 = vadd.f32 %v1256, %v2014
    %2016 = vmatprep.mubr.bf16.mxu0 %v1217
    %2017 = vmatmul.mubr.bf16.gmra.mrb[0].mxu0 %v1216
    %v2018 = vpop.f32.mrb[0].mxu0
    %v2019 = vadd.f32 %v1252, %v2018
    %v2020 = vpop.f32.mrb[0].mxu0
    %v2021 = vadd.f32 %v1256, %v2020
    %v2022 = vpop.f32.mrb[0].mxu0
    %v2023 = vadd.f32 %v1252, %v2022
    %v2024 = vpop.f32.mrb[0].mxu0
    %v2025 = vadd.f32 %v1256, %v2024
    %2026 = vmatprep.mubr.bf16.mxu0 %v1219
    %2027 = vmatmul.mubr.bf16.gmra.mrb[0].mxu0 %v1218
    %v2028 = vpop.f32.mrb[0].mxu0
    %v2029 = vadd.f32 %v1252, %v2028
    %v2030 = vpop.f32.mrb[0].mxu0
    %v2031 = vadd.f32 %v1256, %v2030
    %v2032 = vpop.f32.mrb[0].mxu0
    %v2033 = vadd.f32 %v1252, %v2032
    %v2034 = vpop.f32.mrb[0].mxu0
    %v2035 = vadd.f32 %v1256, %v2034
    %2036 = vdwg.mxu0
    %v2037 = vmax.f32 %v1300, 0.0
    %v2038 = vmax.f32 %v1302, 0.0
    %v2039 = vmax.f32 %v1493, 0.0
    %v2040 = vmax.f32 %v1495, 0.0
    %v2041 = vmax.f32 %v1686, 0.0
    %v2042 = vmax.f32 %v1688, 0.0
    %v2043 = vmax.f32 %v1879, 0.0
    %v2044 = vmax.f32 %v1881, 0.0
    %v2045 = vmax.f32 %v1304, 0.0
    %v2046 = vmax.f32 %v1306, 0.0
    %v2047 = vmax.f32 %v1497, 0.0
    %v2048 = vmax.f32 %v1499, 0.0
    %v2049 = vmax.f32 %v1690, 0.0
    %v2050 = vmax.f32 %v1692, 0.0
    %v2051 = vmax.f32 %v1883, 0.0
    %v2052 = vmax.f32 %v1885, 0.0
    %v2053 = vmax.f32 %v1310, 0.0
    %v2054 = vmax.f32 %v1312, 0.0
    %v2055 = vmax.f32 %v1503, 0.0
    %v2056 = vmax.f32 %v1505, 0.0
    %v2057 = vmax.f32 %v1696, 0.0
    %v2058 = vmax.f32 %v1698, 0.0
    %v2059 = vmax.f32 %v1889, 0.0
    %v2060 = vmax.f32 %v1891, 0.0
    %v2061 = vmax.f32 %v1314, 0.0
    %v2062 = vmax.f32 %v1316, 0.0
    %v2063 = vmax.f32 %v1507, 0.0
    %v2064 = vmax.f32 %v1509, 0.0
    %v2065 = vmax.f32 %v1700, 0.0
    %v2066 = vmax.f32 %v1702, 0.0
    %v2067 = vmax.f32 %v1893, 0.0
    %v2068 = vmax.f32 %v1895, 0.0
    %v2069 = vmax.f32 %v1320, 0.0
    %v2070 = vmax.f32 %v1322, 0.0
    %v2071 = vmax.f32 %v1513, 0.0
    %v2072 = vmax.f32 %v1515, 0.0
    %v2073 = vmax.f32 %v1706, 0.0
    %v2074 = vmax.f32 %v1708, 0.0
    %v2075 = vmax.f32 %v1899, 0.0
    %v2076 = vmax.f32 %v1901, 0.0
    %v2077 = vmax.f32 %v1324, 0.0
    %v2078 = vmax.f32 %v1326, 0.0
    %v2079 = vmax.f32 %v1517, 0.0
    %v2080 = vmax.f32 %v1519, 0.0
    %v2081 = vmax.f32 %v1710, 0.0
    %v2082 = vmax.f32 %v1712, 0.0
    %v2083 = vmax.f32 %v1903, 0.0
    %v2084 = vmax.f32 %v1905, 0.0
    %v2085 = vmax.f32 %v1330, 0.0
    %v2086 = vmax.f32 %v1332, 0.0
    %v2087 = vmax.f32 %v1523, 0.0
    %v2088 = vmax.f32 %v1525, 0.0
    %v2089 = vmax.f32 %v1716, 0.0
    %v2090 = vmax.f32 %v1718, 0.0
    %v2091 = vmax.f32 %v1909, 0.0
    %v2092 = vmax.f32 %v1911, 0.0
    %v2093 = vmax.f32 %v1334, 0.0
    %v2094 = vmax.f32 %v1336, 0.0
    %v2095 = vmax.f32 %v1527, 0.0
    %v2096 = vmax.f32 %v1529, 0.0
    %v2097 = vmax.f32 %v1720, 0.0
    %v2098 = vmax.f32 %v1722, 0.0
    %v2099 = vmax.f32 %v1913, 0.0
    %v2100 = vmax.f32 %v1915, 0.0
    %v2101 = vmax.f32 %v1340, 0.0
    %v2102 = vmax.f32 %v1342, 0.0
    %v2103 = vmax.f32 %v1533, 0.0
    %v2104 = vmax.f32 %v1535, 0.0
    %v2105 = vmax.f32 %v1726, 0.0
    %v2106 = vmax.f32 %v1728, 0.0
    %v2107 = vmax.f32 %v1919, 0.0
    %v2108 = vmax.f32 %v1921, 0.0
    %v2109 = vmax.f32 %v1344, 0.0
    %v2110 = vmax.f32 %v1346, 0.0
    %v2111 = vmax.f32 %v1537, 0.0
    %v2112 = vmax.f32 %v1539, 0.0
    %v2113 = vmax.f32 %v1730, 0.0
    %v2114 = vmax.f32 %v1732, 0.0
    %v2115 = vmax.f32 %v1923, 0.0
    %v2116 = vmax.f32 %v1925, 0.0
    %v2117 = vmax.f32 %v1350, 0.0
    %v2118 = vmax.f32 %v1352, 0.0
    %v2119 = vmax.f32 %v1543, 0.0
    %v2120 = vmax.f32 %v1545, 0.0
    %v2121 = vmax.f32 %v1736, 0.0
    %v2122 = vmax.f32 %v1738, 0.0
    %v2123 = vmax.f32 %v1929, 0.0
    %v2124 = vmax.f32 %v1931, 0.0
    %v2125 = vmax.f32 %v1354, 0.0
    %v2126 = vmax.f32 %v1356, 0.0
    %v2127 = vmax.f32 %v1547, 0.0
    %v2128 = vmax.f32 %v1549, 0.0
    %v2129 = vmax.f32 %v1740, 0.0
    %v2130 = vmax.f32 %v1742, 0.0
    %v2131 = vmax.f32 %v1933, 0.0
    %v2132 = vmax.f32 %v1935, 0.0
    %v2133 = vmax.f32 %v1360, 0.0
    %v2134 = vmax.f32 %v1362, 0.0
    %v2135 = vmax.f32 %v1553, 0.0
    %v2136 = vmax.f32 %v1555, 0.0
    %v2137 = vmax.f32 %v1746, 0.0
    %v2138 = vmax.f32 %v1748, 0.0
    %v2139 = vmax.f32 %v1939, 0.0
    %v2140 = vmax.f32 %v1941, 0.0
    %v2141 = vmax.f32 %v1364, 0.0
    %v2142 = vmax.f32 %v1366, 0.0
    %v2143 = vmax.f32 %v1557, 0.0
    %v2144 = vmax.f32 %v1559, 0.0
    %v2145 = vmax.f32 %v1750, 0.0
    %v2146 = vmax.f32 %v1752, 0.0
    %v2147 = vmax.f32 %v1943, 0.0
    %v2148 = vmax.f32 %v1945, 0.0
    %v2149 = vmax.f32 %v1370, 0.0
    %v2150 = vmax.f32 %v1372, 0.0
    %v2151 = vmax.f32 %v1563, 0.0
    %v2152 = vmax.f32 %v1565, 0.0
    %v2153 = vmax.f32 %v1756, 0.0
    %v2154 = vmax.f32 %v1758, 0.0
    %v2155 = vmax.f32 %v1949, 0.0
    %v2156 = vmax.f32 %v1951, 0.0
    %v2157 = vmax.f32 %v1374, 0.0
    %v2158 = vmax.f32 %v1376, 0.0
    %v2159 = vmax.f32 %v1567, 0.0
    %v2160 = vmax.f32 %v1569, 0.0
    %v2161 = vmax.f32 %v1760, 0.0
    %v2162 = vmax.f32 %v1762, 0.0
    %v2163 = vmax.f32 %v1953, 0.0
    %v2164 = vmax.f32 %v1955, 0.0
    %v2165 = vmax.f32 %v1380, 0.0
    %v2166 = vmax.f32 %v1382, 0.0
    %v2167 = vmax.f32 %v1573, 0.0
    %v2168 = vmax.f32 %v1575, 0.0
    %v2169 = vmax.f32 %v1766, 0.0
    %v2170 = vmax.f32 %v1768, 0.0
    %v2171 = vmax.f32 %v1959, 0.0
    %v2172 = vmax.f32 %v1961, 0.0
    %v2173 = vmax.f32 %v1384, 0.0
    %v2174 = vmax.f32 %v1386, 0.0
    %v2175 = vmax.f32 %v1577, 0.0
    %v2176 = vmax.f32 %v1579, 0.0
    %v2177 = vmax.f32 %v1770, 0.0
    %v2178 = vmax.f32 %v1772, 0.0
    %v2179 = vmax.f32 %v1963, 0.0
    %v2180 = vmax.f32 %v1965, 0.0
    %v2181 = vmax.f32 %v1390, 0.0
    %v2182 = vmax.f32 %v1392, 0.0
    %v2183 = vmax.f32 %v1583, 0.0
    %v2184 = vmax.f32 %v1585, 0.0
    %v2185 = vmax.f32 %v1776, 0.0
    %v2186 = vmax.f32 %v1778, 0.0
    %v2187 = vmax.f32 %v1969, 0.0
    %v2188 = vmax.f32 %v1971, 0.0
    %v2189 = vmax.f32 %v1394, 0.0
    %v2190 = vmax.f32 %v1396, 0.0
    %v2191 = vmax.f32 %v1587, 0.0
    %v2192 = vmax.f32 %v1589, 0.0
    %v2193 = vmax.f32 %v1780, 0.0
    %v2194 = vmax.f32 %v1782, 0.0
    %v2195 = vmax.f32 %v1973, 0.0
    %v2196 = vmax.f32 %v1975, 0.0
    %v2197 = vmax.f32 %v1400, 0.0
    %v2198 = vmax.f32 %v1402, 0.0
    %v2199 = vmax.f32 %v1593, 0.0
    %v2200 = vmax.f32 %v1595, 0.0
    %v2201 = vmax.f32 %v1786, 0.0
    %v2202 = vmax.f32 %v1788, 0.0
    %v2203 = vmax.f32 %v1979, 0.0
    %v2204 = vmax.f32 %v1981, 0.0
    %v2205 = vmax.f32 %v1404, 0.0
    %v2206 = vmax.f32 %v1406, 0.0
    %v2207 = vmax.f32 %v1597, 0.0
    %v2208 = vmax.f32 %v1599, 0.0
    %v2209 = vmax.f32 %v1790, 0.0
    %v2210 = vmax.f32 %v1792, 0.0
    %v2211 = vmax.f32 %v1983, 0.0
    %v2212 = vmax.f32 %v1985, 0.0
    %v2213 = vmax.f32 %v1410, 0.0
    %v2214 = vmax.f32 %v1412, 0.0
    %v2215 = vmax.f32 %v1603, 0.0
    %v2216 = vmax.f32 %v1605, 0.0
    %v2217 = vmax.f32 %v1796, 0.0
    %v2218 = vmax.f32 %v1798, 0.0
    %v2219 = vmax.f32 %v1989, 0.0
    %v2220 = vmax.f32 %v1991, 0.0
    %v2221 = vmax.f32 %v1414, 0.0
    %v2222 = vmax.f32 %v1416, 0.0
    %v2223 = vmax.f32 %v1607, 0.0
    %v2224 = vmax.f32 %v1609, 0.0
    %v2225 = vmax.f32 %v1800, 0.0
    %v2226 = vmax.f32 %v1802, 0.0
    %v2227 = vmax.f32 %v1993, 0.0
    %v2228 = vmax.f32 %v1995, 0.0
    %v2229 = vmax.f32 %v1420, 0.0
    %v2230 = vmax.f32 %v1422, 0.0
    %v2231 = vmax.f32 %v1613, 0.0
    %v2232 = vmax.f32 %v1615, 0.0
    %v2233 = vmax.f32 %v1806, 0.0
    %v2234 = vmax.f32 %v1808, 0.0
    %v2235 = vmax.f32 %v1999, 0.0
    %v2236 = vmax.f32 %v2001, 0.0
    %v2237 = vmax.f32 %v1424, 0.0
    %v2238 = vmax.f32 %v1426, 0.0
    %v2239 = vmax.f32 %v1617, 0.0
    %v2240 = vmax.f32 %v1619, 0.0
    %v2241 = vmax.f32 %v1810, 0.0
    %v2242 = vmax.f32 %v1812, 0.0
    %v2243 = vmax.f32 %v2003, 0.0
    %v2244 = vmax.f32 %v2005, 0.0
    %v2245 = vmax.f32 %v1430, 0.0
    %v2246 = vmax.f32 %v1432, 0.0
    %v2247 = vmax.f32 %v1623, 0.0
    %v2248 = vmax.f32 %v1625, 0.0
    %v2249 = vmax.f32 %v1816, 0.0
    %v2250 = vmax.f32 %v1818, 0.0
    %v2251 = vmax.f32 %v2009, 0.0
    %v2252 = vmax.f32 %v2011, 0.0
    %v2253 = vmax.f32 %v1434, 0.0
    %v2254 = vmax.f32 %v1436, 0.0
    %v2255 = vmax.f32 %v1627, 0.0
    %v2256 = vmax.f32 %v1629, 0.0
    %v2257 = vmax.f32 %v1820, 0.0
    %v2258 = vmax.f32 %v1822, 0.0
    %v2259 = vmax.f32 %v2013, 0.0
    %v2260 = vmax.f32 %v2015, 0.0
    %v2261 = vmax.f32 %v1440, 0.0
    %v2262 = vmax.f32 %v1442, 0.0
    %v2263 = vmax.f32 %v1633, 0.0
    %v2264 = vmax.f32 %v1635, 0.0
    %v2265 = vmax.f32 %v1826, 0.0
    %v2266 = vmax.f32 %v1828, 0.0
    %v2267 = vmax.f32 %v2019, 0.0
    %v2268 = vmax.f32 %v2021, 0.0
    %v2269 = vmax.f32 %v1444, 0.0
    %v2270 = vmax.f32 %v1446, 0.0
    %v2271 = vmax.f32 %v1637, 0.0
    %v2272 = vmax.f32 %v1639, 0.0
    %v2273 = vmax.f32 %v1830, 0.0
    %v2274 = vmax.f32 %v1832, 0.0
    %v2275 = vmax.f32 %v2023, 0.0
    %v2276 = vmax.f32 %v2025, 0.0
    %v2277 = vmax.f32 %v1450, 0.0
    %v2278 = vmax.f32 %v1452, 0.0
    %v2279 = vmax.f32 %v1643, 0.0
    %v2280 = vmax.f32 %v1645, 0.0
    %v2281 = vmax.f32 %v1836, 0.0
    %v2282 = vmax.f32 %v1838, 0.0
    %v2283 = vmax.f32 %v2029, 0.0
    %v2284 = vmax.f32 %v2031, 0.0
    %v2285 = vmax.f32 %v1454, 0.0
    %v2286 = vmax.f32 %v1456, 0.0
    %v2287 = vmax.f32 %v1647, 0.0
    %v2288 = vmax.f32 %v1649, 0.0
    %v2289 = vmax.f32 %v1840, 0.0
    %v2290 = vmax.f32 %v1842, 0.0
    %v2291 = vmax.f32 %v2033, 0.0
    %v2292 = vmax.f32 %v2035, 0.0
    %s2293 = smul.u32 4, 128
    %s2294 = smul.u32 %s2293, 2
    %s2295 = sshll.u32 %s2294, 4
    %2296 = dma.done %s58, %s2295
    %v2297 = vld [vmem:[#allocation3] sm:$0xff]
    %v2298 = vld [vmem:[#allocation3 + $0x8] sm:$0xff]
    %v2299 = vld [vmem:[#allocation3 + $0x10] sm:$0xff]
    %v2300 = vld [vmem:[#allocation3 + $0x18] sm:$0xff]
    %v2301 = vld [vmem:[#allocation3 + $0x20] sm:$0xff]
    %v2302 = vld [vmem:[#allocation3 + $0x28] sm:$0xff]
    %v2303 = vld [vmem:[#allocation3 + $0x30] sm:$0xff]
    %v2304 = vld [vmem:[#allocation3 + $0x38] sm:$0xff]
    %v2305 = vld [vmem:[#allocation3 + $0x40] sm:$0xff]
    %v2306 = vld [vmem:[#allocation3 + $0x48] sm:$0xff]
    %v2307 = vld [vmem:[#allocation3 + $0x50] sm:$0xff]
    %v2308 = vld [vmem:[#allocation3 + $0x58] sm:$0xff]
    %v2309 = vld [vmem:[#allocation3 + $0x60] sm:$0xff]
    %v2310 = vld [vmem:[#allocation3 + $0x68] sm:$0xff]
    %v2311 = vld [vmem:[#allocation3 + $0x70] sm:$0xff]
    %v2312 = vld [vmem:[#allocation3 + $0x78] sm:$0xff]
    %v2313 = vld [vmem:[#allocation3 + $0x80] sm:$0xff]
    %v2314 = vld [vmem:[#allocation3 + $0x88] sm:$0xff]
    %v2315 = vld [vmem:[#allocation3 + $0x90] sm:$0xff]
    %v2316 = vld [vmem:[#allocation3 + $0x98] sm:$0xff]
    %v2317 = vld [vmem:[#allocation3 + $0xa0] sm:$0xff]
    %v2318 = vld [vmem:[#allocation3 + $0xa8] sm:$0xff]
    %v2319 = vld [vmem:[#allocation3 + $0xb0] sm:$0xff]
    %v2320 = vld [vmem:[#allocation3 + $0xb8] sm:$0xff]
    %v2321 = vld [vmem:[#allocation3 + $0xc0] sm:$0xff]
    %v2322 = vld [vmem:[#allocation3 + $0xc8] sm:$0xff]
    %v2323 = vld [vmem:[#allocation3 + $0xd0] sm:$0xff]
    %v2324 = vld [vmem:[#allocation3 + $0xd8] sm:$0xff]
    %v2325 = vld [vmem:[#allocation3 + $0xe0] sm:$0xff]
    %v2326 = vld [vmem:[#allocation3 + $0xe8] sm:$0xff]
    %v2327 = vld [vmem:[#allocation3 + $0xf0] sm:$0xff]
    %v2328 = vld [vmem:[#allocation3 + $0xf8] sm:$0xff]
    %v2329 = vld [vmem:[#allocation3 + $0x100] sm:$0xff]
    %v2330 = vld [vmem:[#allocation3 + $0x108] sm:$0xff]
    %v2331 = vld [vmem:[#allocation3 + $0x110] sm:$0xff]
    %v2332 = vld [vmem:[#allocation3 + $0x118] sm:$0xff]
    %v2333 = vld [vmem:[#allocation3 + $0x120] sm:$0xff]
    %v2334 = vld [vmem:[#allocation3 + $0x128] sm:$0xff]
    %v2335 = vld [vmem:[#allocation3 + $0x130] sm:$0xff]
    %v2336 = vld [vmem:[#allocation3 + $0x138] sm:$0xff]
    %v2337 = vld [vmem:[#allocation3 + $0x140] sm:$0xff]
    %v2338 = vld [vmem:[#allocation3 + $0x148] sm:$0xff]
    %v2339 = vld [vmem:[#allocation3 + $0x150] sm:$0xff]
    %v2340 = vld [vmem:[#allocation3 + $0x158] sm:$0xff]
    %v2341 = vld [vmem:[#allocation3 + $0x160] sm:$0xff]
    %v2342 = vld [vmem:[#allocation3 + $0x168] sm:$0xff]
    %v2343 = vld [vmem:[#allocation3 + $0x170] sm:$0xff]
    %v2344 = vld [vmem:[#allocation3 + $0x178] sm:$0xff]
    %v2345 = vld [vmem:[#allocation3 + $0x180] sm:$0xff]
    %v2346 = vld [vmem:[#allocation3 + $0x188] sm:$0xff]
    %v2347 = vld [vmem:[#allocation3 + $0x190] sm:$0xff]
    %v2348 = vld [vmem:[#allocation3 + $0x198] sm:$0xff]
    %v2349 = vld [vmem:[#allocation3 + $0x1a0] sm:$0xff]
    %v2350 = vld [vmem:[#allocation3 + $0x1a8] sm:$0xff]
    %v2351 = vld [vmem:[#allocation3 + $0x1b0] sm:$0xff]
    %v2352 = vld [vmem:[#allocation3 + $0x1b8] sm:$0xff]
    %v2353 = vld [vmem:[#allocation3 + $0x1c0] sm:$0xff]
    %v2354 = vld [vmem:[#allocation3 + $0x1c8] sm:$0xff]
    %v2355 = vld [vmem:[#allocation3 + $0x1d0] sm:$0xff]
    %v2356 = vld [vmem:[#allocation3 + $0x1d8] sm:$0xff]
    %v2357 = vld [vmem:[#allocation3 + $0x1e0] sm:$0xff]
    %v2358 = vld [vmem:[#allocation3 + $0x1e8] sm:$0xff]
    %v2359 = vld [vmem:[#allocation3 + $0x1f0] sm:$0xff]
    %v2360 = vld [vmem:[#allocation3 + $0x1f8] sm:$0xff]
    %v2361 = vld [vmem:[#allocation3 + $0x200] sm:$0xff]
    %v2362 = vld [vmem:[#allocation3 + $0x208] sm:$0xff]
    %v2363 = vld [vmem:[#allocation3 + $0x210] sm:$0xff]
    %v2364 = vld [vmem:[#allocation3 + $0x218] sm:$0xff]
    %v2365 = vld [vmem:[#allocation3 + $0x220] sm:$0xff]
    %v2366 = vld [vmem:[#allocation3 + $0x228] sm:$0xff]
    %v2367 = vld [vmem:[#allocation3 + $0x230] sm:$0xff]
    %v2368 = vld [vmem:[#allocation3 + $0x238] sm:$0xff]
    %v2369 = vld [vmem:[#allocation3 + $0x240] sm:$0xff]
    %v2370 = vld [vmem:[#allocation3 + $0x248] sm:$0xff]
    %v2371 = vld [vmem:[#allocation3 + $0x250] sm:$0xff]
    %v2372 = vld [vmem:[#allocation3 + $0x258] sm:$0xff]
    %v2373 = vld [vmem:[#allocation3 + $0x260] sm:$0xff]
    %v2374 = vld [vmem:[#allocation3 + $0x268] sm:$0xff]
    %v2375 = vld [vmem:[#allocation3 + $0x270] sm:$0xff]
    %v2376 = vld [vmem:[#allocation3 + $0x278] sm:$0xff]
    %v2377 = vld [vmem:[#allocation3 + $0x280] sm:$0xff]
    %v2378 = vld [vmem:[#allocation3 + $0x288] sm:$0xff]
    %v2379 = vld [vmem:[#allocation3 + $0x290] sm:$0xff]
    %v2380 = vld [vmem:[#allocation3 + $0x298] sm:$0xff]
    %v2381 = vld [vmem:[#allocation3 + $0x2a0] sm:$0xff]
    %v2382 = vld [vmem:[#allocation3 + $0x2a8] sm:$0xff]
    %v2383 = vld [vmem:[#allocation3 + $0x2b0] sm:$0xff]
    %v2384 = vld [vmem:[#allocation3 + $0x2b8] sm:$0xff]
    %v2385 = vld [vmem:[#allocation3 + $0x2c0] sm:$0xff]
    %v2386 = vld [vmem:[#allocation3 + $0x2c8] sm:$0xff]
    %v2387 = vld [vmem:[#allocation3 + $0x2d0] sm:$0xff]
    %v2388 = vld [vmem:[#allocation3 + $0x2d8] sm:$0xff]
    %v2389 = vld [vmem:[#allocation3 + $0x2e0] sm:$0xff]
    %v2390 = vld [vmem:[#allocation3 + $0x2e8] sm:$0xff]
    %v2391 = vld [vmem:[#allocation3 + $0x2f0] sm:$0xff]
    %v2392 = vld [vmem:[#allocation3 + $0x2f8] sm:$0xff]
    %v2393 = vld [vmem:[#allocation3 + $0x300] sm:$0xff]
    %v2394 = vld [vmem:[#allocation3 + $0x308] sm:$0xff]
    %v2395 = vld [vmem:[#allocation3 + $0x310] sm:$0xff]
    %v2396 = vld [vmem:[#allocation3 + $0x318] sm:$0xff]
    %v2397 = vld [vmem:[#allocation3 + $0x320] sm:$0xff]
    %v2398 = vld [vmem:[#allocation3 + $0x328] sm:$0xff]
    %v2399 = vld [vmem:[#allocation3 + $0x330] sm:$0xff]
    %v2400 = vld [vmem:[#allocation3 + $0x338] sm:$0xff]
    %v2401 = vld [vmem:[#allocation3 + $0x340] sm:$0xff]
    %v2402 = vld [vmem:[#allocation3 + $0x348] sm:$0xff]
    %v2403 = vld [vmem:[#allocation3 + $0x350] sm:$0xff]
    %v2404 = vld [vmem:[#allocation3 + $0x358] sm:$0xff]
    %v2405 = vld [vmem:[#allocation3 + $0x360] sm:$0xff]
    %v2406 = vld [vmem:[#allocation3 + $0x368] sm:$0xff]
    %v2407 = vld [vmem:[#allocation3 + $0x370] sm:$0xff]
    %v2408 = vld [vmem:[#allocation3 + $0x378] sm:$0xff]
    %v2409 = vld [vmem:[#allocation3 + $0x380] sm:$0xff]
    %v2410 = vld [vmem:[#allocation3 + $0x388] sm:$0xff]
    %v2411 = vld [vmem:[#allocation3 + $0x390] sm:$0xff]
    %v2412 = vld [vmem:[#allocation3 + $0x398] sm:$0xff]
    %v2413 = vld [vmem:[#allocation3 + $0x3a0] sm:$0xff]
    %v2414 = vld [vmem:[#allocation3 + $0x3a8] sm:$0xff]
    %v2415 = vld [vmem:[#allocation3 + $0x3b0] sm:$0xff]
    %v2416 = vld [vmem:[#allocation3 + $0x3b8] sm:$0xff]
    %v2417 = vld [vmem:[#allocation3 + $0x3c0] sm:$0xff]
    %v2418 = vld [vmem:[#allocation3 + $0x3c8] sm:$0xff]
    %v2419 = vld [vmem:[#allocation3 + $0x3d0] sm:$0xff]
    %v2420 = vld [vmem:[#allocation3 + $0x3d8] sm:$0xff]
    %v2421 = vld [vmem:[#allocation3 + $0x3e0] sm:$0xff]
    %v2422 = vld [vmem:[#allocation3 + $0x3e8] sm:$0xff]
    %v2423 = vld [vmem:[#allocation3 + $0x3f0] sm:$0xff]
    %v2424 = vld [vmem:[#allocation3 + $0x3f8] sm:$0xff]
    %v2425 = vpack.c.bf16 %v2045, %v2037
    %v2426 = vpack.c.bf16 %v2046, %v2038
    %v2427 = vpack.c.bf16 %v2047, %v2039
    %v2428 = vpack.c.bf16 %v2048, %v2040
    %v2429 = vpack.c.bf16 %v2049, %v2041
    %v2430 = vpack.c.bf16 %v2050, %v2042
    %v2431 = vpack.c.bf16 %v2051, %v2043
    %v2432 = vpack.c.bf16 %v2052, %v2044
    %v2433 = vpack.c.bf16 %v2061, %v2053
    %v2434 = vpack.c.bf16 %v2062, %v2054
    %v2435 = vpack.c.bf16 %v2063, %v2055
    %v2436 = vpack.c.bf16 %v2064, %v2056
    %v2437 = vpack.c.bf16 %v2065, %v2057
    %v2438 = vpack.c.bf16 %v2066, %v2058
    %v2439 = vpack.c.bf16 %v2067, %v2059
    %v2440 = vpack.c.bf16 %v2068, %v2060
    %v2441 = vpack.c.bf16 %v2077, %v2069
    %v2442 = vpack.c.bf16 %v2078, %v2070
    %v2443 = vpack.c.bf16 %v2079, %v2071
    %v2444 = vpack.c.bf16 %v2080, %v2072
    %v2445 = vpack.c.bf16 %v2081, %v2073
    %v2446 = vpack.c.bf16 %v2082, %v2074
    %v2447 = vpack.c.bf16 %v2083, %v2075
    %v2448 = vpack.c.bf16 %v2084, %v2076
    %v2449 = vpack.c.bf16 %v2093, %v2085
    %v2450 = vpack.c.bf16 %v2094, %v2086
    %v2451 = vpack.c.bf16 %v2095, %v2087
    %v2452 = vpack.c.bf16 %v2096, %v2088
    %v2453 = vpack.c.bf16 %v2097, %v2089
    %v2454 = vpack.c.bf16 %v2098, %v2090
    %v2455 = vpack.c.bf16 %v2099, %v2091
    %v2456 = vpack.c.bf16 %v2100, %v2092
    %v2457 = vpack.c.bf16 %v2109, %v2101
    %v2458 = vpack.c.bf16 %v2110, %v2102
    %v2459 = vpack.c.bf16 %v2111, %v2103
    %v2460 = vpack.c.bf16 %v2112, %v2104
    %v2461 = vpack.c.bf16 %v2113, %v2105
    %v2462 = vpack.c.bf16 %v2114, %v2106
    %v2463 = vpack.c.bf16 %v2115, %v2107
    %v2464 = vpack.c.bf16 %v2116, %v2108
    %v2465 = vpack.c.bf16 %v2125, %v2117
    %v2466 = vpack.c.bf16 %v2126, %v2118
    %v2467 = vpack.c.bf16 %v2127, %v2119
    %v2468 = vpack.c.bf16 %v2128, %v2120
    %v2469 = vpack.c.bf16 %v2129, %v2121
    %v2470 = vpack.c.bf16 %v2130, %v2122
    %v2471 = vpack.c.bf16 %v2131, %v2123
    %v2472 = vpack.c.bf16 %v2132, %v2124
    %v2473 = vpack.c.bf16 %v2141, %v2133
    %v2474 = vpack.c.bf16 %v2142, %v2134
    %v2475 = vpack.c.bf16 %v2143, %v2135
    %v2476 = vpack.c.bf16 %v2144, %v2136
    %v2477 = vpack.c.bf16 %v2145, %v2137
    %v2478 = vpack.c.bf16 %v2146, %v2138
    %v2479 = vpack.c.bf16 %v2147, %v2139
    %v2480 = vpack.c.bf16 %v2148, %v2140
    %v2481 = vpack.c.bf16 %v2157, %v2149
    %v2482 = vpack.c.bf16 %v2158, %v2150
    %v2483 = vpack.c.bf16 %v2159, %v2151
    %v2484 = vpack.c.bf16 %v2160, %v2152
    %v2485 = vpack.c.bf16 %v2161, %v2153
    %v2486 = vpack.c.bf16 %v2162, %v2154
    %v2487 = vpack.c.bf16 %v2163, %v2155
    %v2488 = vpack.c.bf16 %v2164, %v2156
    %v2489 = vpack.c.bf16 %v2173, %v2165
    %v2490 = vpack.c.bf16 %v2174, %v2166
    %v2491 = vpack.c.bf16 %v2175, %v2167
    %v2492 = vpack.c.bf16 %v2176, %v2168
    %v2493 = vpack.c.bf16 %v2177, %v2169
    %v2494 = vpack.c.bf16 %v2178, %v2170
    %v2495 = vpack.c.bf16 %v2179, %v2171
    %v2496 = vpack.c.bf16 %v2180, %v2172
    %v2497 = vpack.c.bf16 %v2189, %v2181
    %v2498 = vpack.c.bf16 %v2190, %v2182
    %v2499 = vpack.c.bf16 %v2191, %v2183
    %v2500 = vpack.c.bf16 %v2192, %v2184
    %v2501 = vpack.c.bf16 %v2193, %v2185
    %v2502 = vpack.c.bf16 %v2194, %v2186
    %v2503 = vpack.c.bf16 %v2195, %v2187
    %v2504 = vpack.c.bf16 %v2196, %v2188
    %v2505 = vpack.c.bf16 %v2205, %v2197
    %v2506 = vpack.c.bf16 %v2206, %v2198
    %v2507 = vpack.c.bf16 %v2207, %v2199
    %v2508 = vpack.c.bf16 %v2208, %v2200
    %v2509 = vpack.c.bf16 %v2209, %v2201
    %v2510 = vpack.c.bf16 %v2210, %v2202
    %v2511 = vpack.c.bf16 %v2211, %v2203
    %v2512 = vpack.c.bf16 %v2212, %v2204
    %v2513 = vpack.c.bf16 %v2221, %v2213
    %v2514 = vpack.c.bf16 %v2222, %v2214
    %v2515 = vpack.c.bf16 %v2223, %v2215
    %v2516 = vpack.c.bf16 %v2224, %v2216
    %v2517 = vpack.c.bf16 %v2225, %v2217
    %v2518 = vpack.c.bf16 %v2226, %v2218
    %v2519 = vpack.c.bf16 %v2227, %v2219
    %v2520 = vpack.c.bf16 %v2228, %v2220
    %v2521 = vpack.c.bf16 %v2237, %v2229
    %v2522 = vpack.c.bf16 %v2238, %v2230
    %v2523 = vpack.c.bf16 %v2239, %v2231
    %v2524 = vpack.c.bf16 %v2240, %v2232
    %v2525 = vpack.c.bf16 %v2241, %v2233
    %v2526 = vpack.c.bf16 %v2242, %v2234
    %v2527 = vpack.c.bf16 %v2243, %v2235
    %v2528 = vpack.c.bf16 %v2244, %v2236
    %v2529 = vpack.c.bf16 %v2253, %v2245
    %v2530 = vpack.c.bf16 %v2254, %v2246
    %v2531 = vpack.c.bf16 %v2255, %v2247
    %v2532 = vpack.c.bf16 %v2256, %v2248
    %v2533 = vpack.c.bf16 %v2257, %v2249
    %v2534 = vpack.c.bf16 %v2258, %v2250
    %v2535 = vpack.c.bf16 %v2259, %v2251
    %v2536 = vpack.c.bf16 %v2260, %v2252
    %v2537 = vpack.c.bf16 %v2269, %v2261
    %v2538 = vpack.c.bf16 %v2270, %v2262
    %v2539 = vpack.c.bf16 %v2271, %v2263
    %v2540 = vpack.c.bf16 %v2272, %v2264
    %v2541 = vpack.c.bf16 %v2273, %v2265
    %v2542 = vpack.c.bf16 %v2274, %v2266
    %v2543 = vpack.c.bf16 %v2275, %v2267
    %v2544 = vpack.c.bf16 %v2276, %v2268
    %v2545 = vpack.c.bf16 %v2285, %v2277
    %v2546 = vpack.c.bf16 %v2286, %v2278
    %v2547 = vpack.c.bf16 %v2287, %v2279
    %v2548 = vpack.c.bf16 %v2288, %v2280
    %v2549 = vpack.c.bf16 %v2289, %v2281
    %v2550 = vpack.c.bf16 %v2290, %v2282
    %v2551 = vpack.c.bf16 %v2291, %v2283
    %v2552 = vpack.c.bf16 %v2292, %v2284
    %s2553 = scalar_lea.vmem %s6, 4
    %v2554 = vld [vmem:[%s2553] ss:$8 sm:$0x3]
    %v2556 = vlaneseq
    %v2557 = vshrl.u32 %v2556, 7
    %v2558 = vsub.s32 0, %v2557
    %v2559 = vrot.slane %v2554, %v2558
    %v2560 = vlaneseq
    %v2561 = vshrl.u32 %v2560, 7
    %v2562 = vsub.s32 1, %v2561
    %v2563 = vrot.slane %v2554, %v2562
    %2566 = vmatprep.subr.bf16.mxu0 %v2298
    %2567 = vmatpush1.bf16.msra.mxu0 %v2297
    %2568 = vmatprep.subr.bf16.mxu0 %v2300
    %2569 = vmatpush1.bf16.msra.mxu0 %v2299
    %2570 = vmatprep.subr.bf16.mxu0 %v2302
    %2571 = vmatpush1.bf16.msra.mxu0 %v2301
    %2572 = vmatprep.subr.bf16.mxu0 %v2304
    %2573 = vmatpush1.bf16.msra.mxu0 %v2303
    %2574 = vmatprep.subr.bf16.mxu0 %v2306
    %2575 = vmatpush1.bf16.msra.mxu0 %v2305
    %2576 = vmatprep.subr.bf16.mxu0 %v2308
    %2577 = vmatpush1.bf16.msra.mxu0 %v2307
    %2578 = vmatprep.subr.bf16.mxu0 %v2310
    %2579 = vmatpush1.bf16.msra.mxu0 %v2309
    %2580 = vmatprep.subr.bf16.mxu0 %v2312
    %2581 = vmatpush1.bf16.msra.mxu0 %v2311
    %2582 = vmatprep.subr.bf16.mxu0 %v2314
    %2583 = vmatpush1.bf16.msra.mxu0 %v2313
    %2584 = vmatprep.subr.bf16.mxu0 %v2316
    %2585 = vmatpush1.bf16.msra.mxu0 %v2315
    %2586 = vmatprep.subr.bf16.mxu0 %v2318
    %2587 = vmatpush1.bf16.msra.mxu0 %v2317
    %2588 = vmatprep.subr.bf16.mxu0 %v2320
    %2589 = vmatpush1.bf16.msra.mxu0 %v2319
    %2590 = vmatprep.subr.bf16.mxu0 %v2322
    %2591 = vmatpush1.bf16.msra.mxu0 %v2321
    %2592 = vmatprep.subr.bf16.mxu0 %v2324
    %2593 = vmatpush1.bf16.msra.mxu0 %v2323
    %2594 = vmatprep.subr.bf16.mxu0 %v2326
    %2595 = vmatpush1.bf16.msra.mxu0 %v2325
    %2596 = vmatprep.subr.bf16.mxu0 %v2328
    %2597 = vmatpush1.bf16.msra.mxu0 %v2327
    %2598 = vmatprep.mubr.bf16.mxu0 %v2426
    %2599 = vmatmul.mubr.bf16.gmra.mrb[0].mxu0 %v2425
    %v2600 = vpop.f32.mrb[0].mxu0
    %v2601 = vadd.f32 %v2559, %v2600
    %v2602 = vpop.f32.mrb[0].mxu0
    %v2603 = vadd.f32 %v2563, %v2602
    %v2604 = vpop.f32.mrb[0].mxu0
    %v2605 = vadd.f32 %v2559, %v2604
    %v2606 = vpop.f32.mrb[0].mxu0
    %v2607 = vadd.f32 %v2563, %v2606
    %2608 = vmatprep.mubr.bf16.mxu0 %v2434
    %2609 = vmatmul.mubr.bf16.gmra.mrb[0].mxu0 %v2433
    %v2610 = vpop.f32.mrb[0].mxu0
    %v2611 = vadd.f32 %v2559, %v2610
    %v2612 = vpop.f32.mrb[0].mxu0
    %v2613 = vadd.f32 %v2563, %v2612
    %v2614 = vpop.f32.mrb[0].mxu0
    %v2615 = vadd.f32 %v2559, %v2614
    %v2616 = vpop.f32.mrb[0].mxu0
    %v2617 = vadd.f32 %v2563, %v2616
    %2618 = vmatprep.mubr.bf16.mxu0 %v2442
    %2619 = vmatmul.mubr.bf16.gmra.mrb[0].mxu0 %v2441
    %v2620 = vpop.f32.mrb[0].mxu0
    %v2621 = vadd.f32 %v2559, %v2620
    %v2622 = vpop.f32.mrb[0].mxu0
    %v2623 = vadd.f32 %v2563, %v2622
    %v2624 = vpop.f32.mrb[0].mxu0
    %v2625 = vadd.f32 %v2559, %v2624
    %v2626 = vpop.f32.mrb[0].mxu0
    %v2627 = vadd.f32 %v2563, %v2626
    %2628 = vmatprep.mubr.bf16.mxu0 %v2450
    %2629 = vmatmul.mubr.bf16.gmra.mrb[0].mxu0 %v2449
    %v2630 = vpop.f32.mrb[0].mxu0
    %v2631 = vadd.f32 %v2559, %v2630
    %v2632 = vpop.f32.mrb[0].mxu0
    %v2633 = vadd.f32 %v2563, %v2632
    %v2634 = vpop.f32.mrb[0].mxu0
    %v2635 = vadd.f32 %v2559, %v2634
    %v2636 = vpop.f32.mrb[0].mxu0
    %v2637 = vadd.f32 %v2563, %v2636
    %2638 = vmatprep.mubr.bf16.mxu0 %v2458
    %2639 = vmatmul.mubr.bf16.gmra.mrb[0].mxu0 %v2457
    %v2640 = vpop.f32.mrb[0].mxu0
    %v2641 = vadd.f32 %v2559, %v2640
    %v2642 = vpop.f32.mrb[0].mxu0
    %v2643 = vadd.f32 %v2563, %v2642
    %v2644 = vpop.f32.mrb[0].mxu0
    %v2645 = vadd.f32 %v2559, %v2644
    %v2646 = vpop.f32.mrb[0].mxu0
    %v2647 = vadd.f32 %v2563, %v2646
    %2648 = vmatprep.mubr.bf16.mxu0 %v2466
    %2649 = vmatmul.mubr.bf16.gmra.mrb[0].mxu0 %v2465
    %v2650 = vpop.f32.mrb[0].mxu0
    %v2651 = vadd.f32 %v2559, %v2650
    %v2652 = vpop.f32.mrb[0].mxu0
    %v2653 = vadd.f32 %v2563, %v2652
    %v2654 = vpop.f32.mrb[0].mxu0
    %v2655 = vadd.f32 %v2559, %v2654
    %v2656 = vpop.f32.mrb[0].mxu0
    %v2657 = vadd.f32 %v2563, %v2656
    %2658 = vmatprep.mubr.bf16.mxu0 %v2474
    %2659 = vmatmul.mubr.bf16.gmra.mrb[0].mxu0 %v2473
    %v2660 = vpop.f32.mrb[0].mxu0
    %v2661 = vadd.f32 %v2559, %v2660
    %v2662 = vpop.f32.mrb[0].mxu0
    %v2663 = vadd.f32 %v2563, %v2662
    %v2664 = vpop.f32.mrb[0].mxu0
    %v2665 = vadd.f32 %v2559, %v2664
    %v2666 = vpop.f32.mrb[0].mxu0
    %v2667 = vadd.f32 %v2563, %v2666
    %2668 = vmatprep.mubr.bf16.mxu0 %v2482
    %2669 = vmatmul.mubr.bf16.gmra.mrb[0].mxu0 %v2481
    %v2670 = vpop.f32.mrb[0].mxu0
    %v2671 = vadd.f32 %v2559, %v2670
    %v2672 = vpop.f32.mrb[0].mxu0
    %v2673 = vadd.f32 %v2563, %v2672
    %v2674 = vpop.f32.mrb[0].mxu0
    %v2675 = vadd.f32 %v2559, %v2674
    %v2676 = vpop.f32.mrb[0].mxu0
    %v2677 = vadd.f32 %v2563, %v2676
    %2678 = vmatprep.mubr.bf16.mxu0 %v2490
    %2679 = vmatmul.mubr.bf16.gmra.mrb[0].mxu0 %v2489
    %v2680 = vpop.f32.mrb[0].mxu0
    %v2681 = vadd.f32 %v2559, %v2680
    %v2682 = vpop.f32.mrb[0].mxu0
    %v2683 = vadd.f32 %v2563, %v2682
    %v2684 = vpop.f32.mrb[0].mxu0
    %v2685 = vadd.f32 %v2559, %v2684
    %v2686 = vpop.f32.mrb[0].mxu0
    %v2687 = vadd.f32 %v2563, %v2686
    %2688 = vmatprep.mubr.bf16.mxu0 %v2498
    %2689 = vmatmul.mubr.bf16.gmra.mrb[0].mxu0 %v2497
    %v2690 = vpop.f32.mrb[0].mxu0
    %v2691 = vadd.f32 %v2559, %v2690
    %v2692 = vpop.f32.mrb[0].mxu0
    %v2693 = vadd.f32 %v2563, %v2692
    %v2694 = vpop.f32.mrb[0].mxu0
    %v2695 = vadd.f32 %v2559, %v2694
    %v2696 = vpop.f32.mrb[0].mxu0
    %v2697 = vadd.f32 %v2563, %v2696
    %2698 = vmatprep.mubr.bf16.mxu0 %v2506
    %2699 = vmatmul.mubr.bf16.gmra.mrb[0].mxu0 %v2505
    %v2700 = vpop.f32.mrb[0].mxu0
    %v2701 = vadd.f32 %v2559, %v2700
    %v2702 = vpop.f32.mrb[0].mxu0
    %v2703 = vadd.f32 %v2563, %v2702
    %v2704 = vpop.f32.mrb[0].mxu0
    %v2705 = vadd.f32 %v2559, %v2704
    %v2706 = vpop.f32.mrb[0].mxu0
    %v2707 = vadd.f32 %v2563, %v2706
    %2708 = vmatprep.mubr.bf16.mxu0 %v2514
    %2709 = vmatmul.mubr.bf16.gmra.mrb[0].mxu0 %v2513
    %v2710 = vpop.f32.mrb[0].mxu0
    %v2711 = vadd.f32 %v2559, %v2710
    %v2712 = vpop.f32.mrb[0].mxu0
    %v2713 = vadd.f32 %v2563, %v2712
    %v2714 = vpop.f32.mrb[0].mxu0
    %v2715 = vadd.f32 %v2559, %v2714
    %v2716 = vpop.f32.mrb[0].mxu0
    %v2717 = vadd.f32 %v2563, %v2716
    %2718 = vmatprep.mubr.bf16.mxu0 %v2522
    %2719 = vmatmul.mubr.bf16.gmra.mrb[0].mxu0 %v2521
    %v2720 = vpop.f32.mrb[0].mxu0
    %v2721 = vadd.f32 %v2559, %v2720
    %v2722 = vpop.f32.mrb[0].mxu0
    %v2723 = vadd.f32 %v2563, %v2722
    %v2724 = vpop.f32.mrb[0].mxu0
    %v2725 = vadd.f32 %v2559, %v2724
    %v2726 = vpop.f32.mrb[0].mxu0
    %v2727 = vadd.f32 %v2563, %v2726
    %2728 = vmatprep.mubr.bf16.mxu0 %v2530
    %2729 = vmatmul.mubr.bf16.gmra.mrb[0].mxu0 %v2529
    %v2730 = vpop.f32.mrb[0].mxu0
    %v2731 = vadd.f32 %v2559, %v2730
    %v2732 = vpop.f32.mrb[0].mxu0
    %v2733 = vadd.f32 %v2563, %v2732
    %v2734 = vpop.f32.mrb[0].mxu0
    %v2735 = vadd.f32 %v2559, %v2734
    %v2736 = vpop.f32.mrb[0].mxu0
    %v2737 = vadd.f32 %v2563, %v2736
    %2738 = vmatprep.mubr.bf16.mxu0 %v2538
    %2739 = vmatmul.mubr.bf16.gmra.mrb[0].mxu0 %v2537
    %v2740 = vpop.f32.mrb[0].mxu0
    %v2741 = vadd.f32 %v2559, %v2740
    %v2742 = vpop.f32.mrb[0].mxu0
    %v2743 = vadd.f32 %v2563, %v2742
    %v2744 = vpop.f32.mrb[0].mxu0
    %v2745 = vadd.f32 %v2559, %v2744
    %v2746 = vpop.f32.mrb[0].mxu0
    %v2747 = vadd.f32 %v2563, %v2746
    %2748 = vmatprep.mubr.bf16.mxu0 %v2546
    %2749 = vmatmul.mubr.bf16.gmra.mrb[0].mxu0 %v2545
    %v2750 = vpop.f32.mrb[0].mxu0
    %v2751 = vadd.f32 %v2559, %v2750
    %v2752 = vpop.f32.mrb[0].mxu0
    %v2753 = vadd.f32 %v2563, %v2752
    %v2754 = vpop.f32.mrb[0].mxu0
    %v2755 = vadd.f32 %v2559, %v2754
    %v2756 = vpop.f32.mrb[0].mxu0
    %v2757 = vadd.f32 %v2563, %v2756
    %2758 = vdwg.mxu0
    %2759 = vmatprep.subr.bf16.mxu0 %v2330
    %2760 = vmatpush1.bf16.msra.mxu0 %v2329
    %2761 = vmatprep.subr.bf16.mxu0 %v2332
    %2762 = vmatpush1.bf16.msra.mxu0 %v2331
    %2763 = vmatprep.subr.bf16.mxu0 %v2334
    %2764 = vmatpush1.bf16.msra.mxu0 %v2333
    %2765 = vmatprep.subr.bf16.mxu0 %v2336
    %2766 = vmatpush1.bf16.msra.mxu0 %v2335
    %2767 = vmatprep.subr.bf16.mxu0 %v2338
    %2768 = vmatpush1.bf16.msra.mxu0 %v2337
    %2769 = vmatprep.subr.bf16.mxu0 %v2340
    %2770 = vmatpush1.bf16.msra.mxu0 %v2339
    %2771 = vmatprep.subr.bf16.mxu0 %v2342
    %2772 = vmatpush1.bf16.msra.mxu0 %v2341
    %2773 = vmatprep.subr.bf16.mxu0 %v2344
    %2774 = vmatpush1.bf16.msra.mxu0 %v2343
    %2775 = vmatprep.subr.bf16.mxu0 %v2346
    %2776 = vmatpush1.bf16.msra.mxu0 %v2345
    %2777 = vmatprep.subr.bf16.mxu0 %v2348
    %2778 = vmatpush1.bf16.msra.mxu0 %v2347
    %2779 = vmatprep.subr.bf16.mxu0 %v2350
    %2780 = vmatpush1.bf16.msra.mxu0 %v2349
    %2781 = vmatprep.subr.bf16.mxu0 %v2352
    %2782 = vmatpush1.bf16.msra.mxu0 %v2351
    %2783 = vmatprep.subr.bf16.mxu0 %v2354
    %2784 = vmatpush1.bf16.msra.mxu0 %v2353
    %2785 = vmatprep.subr.bf16.mxu0 %v2356
    %2786 = vmatpush1.bf16.msra.mxu0 %v2355
    %2787 = vmatprep.subr.bf16.mxu0 %v2358
    %2788 = vmatpush1.bf16.msra.mxu0 %v2357
    %2789 = vmatprep.subr.bf16.mxu0 %v2360
    %2790 = vmatpush1.bf16.msra.mxu0 %v2359
    %2791 = vmatprep.mubr.bf16.mxu0 %v2428
    %2792 = vmatmul.mubr.bf16.gmra.mrb[0].mxu0 %v2427
    %v2793 = vpop.f32.mrb[0].mxu0
    %v2794 = vadd.f32 %v2601, %v2793
    %v2795 = vpop.f32.mrb[0].mxu0
    %v2796 = vadd.f32 %v2603, %v2795
    %v2797 = vpop.f32.mrb[0].mxu0
    %v2798 = vadd.f32 %v2605, %v2797
    %v2799 = vpop.f32.mrb[0].mxu0
    %v2800 = vadd.f32 %v2607, %v2799
    %2801 = vmatprep.mubr.bf16.mxu0 %v2436
    %2802 = vmatmul.mubr.bf16.gmra.mrb[0].mxu0 %v2435
    %v2803 = vpop.f32.mrb[0].mxu0
    %v2804 = vadd.f32 %v2611, %v2803
    %v2805 = vpop.f32.mrb[0].mxu0
    %v2806 = vadd.f32 %v2613, %v2805
    %v2807 = vpop.f32.mrb[0].mxu0
    %v2808 = vadd.f32 %v2615, %v2807
    %v2809 = vpop.f32.mrb[0].mxu0
    %v2810 = vadd.f32 %v2617, %v2809
    %2811 = vmatprep.mubr.bf16.mxu0 %v2444
    %2812 = vmatmul.mubr.bf16.gmra.mrb[0].mxu0 %v2443
    %v2813 = vpop.f32.mrb[0].mxu0
    %v2814 = vadd.f32 %v2621, %v2813
    %v2815 = vpop.f32.mrb[0].mxu0
    %v2816 = vadd.f32 %v2623, %v2815
    %v2817 = vpop.f32.mrb[0].mxu0
    %v2818 = vadd.f32 %v2625, %v2817
    %v2819 = vpop.f32.mrb[0].mxu0
    %v2820 = vadd.f32 %v2627, %v2819
    %2821 = vmatprep.mubr.bf16.mxu0 %v2452
    %2822 = vmatmul.mubr.bf16.gmra.mrb[0].mxu0 %v2451
    %v2823 = vpop.f32.mrb[0].mxu0
    %v2824 = vadd.f32 %v2631, %v2823
    %v2825 = vpop.f32.mrb[0].mxu0
    %v2826 = vadd.f32 %v2633, %v2825
    %v2827 = vpop.f32.mrb[0].mxu0
    %v2828 = vadd.f32 %v2635, %v2827
    %v2829 = vpop.f32.mrb[0].mxu0
    %v2830 = vadd.f32 %v2637, %v2829
    %2831 = vmatprep.mubr.bf16.mxu0 %v2460
    %2832 = vmatmul.mubr.bf16.gmra.mrb[0].mxu0 %v2459
    %v2833 = vpop.f32.mrb[0].mxu0
    %v2834 = vadd.f32 %v2641, %v2833
    %v2835 = vpop.f32.mrb[0].mxu0
    %v2836 = vadd.f32 %v2643, %v2835
    %v2837 = vpop.f32.mrb[0].mxu0
    %v2838 = vadd.f32 %v2645, %v2837
    %v2839 = vpop.f32.mrb[0].mxu0
    %v2840 = vadd.f32 %v2647, %v2839
    %2841 = vmatprep.mubr.bf16.mxu0 %v2468
    %2842 = vmatmul.mubr.bf16.gmra.mrb[0].mxu0 %v2467
    %v2843 = vpop.f32.mrb[0].mxu0
    %v2844 = vadd.f32 %v2651, %v2843
    %v2845 = vpop.f32.mrb[0].mxu0
    %v2846 = vadd.f32 %v2653, %v2845
    %v2847 = vpop.f32.mrb[0].mxu0
    %v2848 = vadd.f32 %v2655, %v2847
    %v2849 = vpop.f32.mrb[0].mxu0
    %v2850 = vadd.f32 %v2657, %v2849
    %2851 = vmatprep.mubr.bf16.mxu0 %v2476
    %2852 = vmatmul.mubr.bf16.gmra.mrb[0].mxu0 %v2475
    %v2853 = vpop.f32.mrb[0].mxu0
    %v2854 = vadd.f32 %v2661, %v2853
    %v2855 = vpop.f32.mrb[0].mxu0
    %v2856 = vadd.f32 %v2663, %v2855
    %v2857 = vpop.f32.mrb[0].mxu0
    %v2858 = vadd.f32 %v2665, %v2857
    %v2859 = vpop.f32.mrb[0].mxu0
    %v2860 = vadd.f32 %v2667, %v2859
    %2861 = vmatprep.mubr.bf16.mxu0 %v2484
    %2862 = vmatmul.mubr.bf16.gmra.mrb[0].mxu0 %v2483
    %v2863 = vpop.f32.mrb[0].mxu0
    %v2864 = vadd.f32 %v2671, %v2863
    %v2865 = vpop.f32.mrb[0].mxu0
    %v2866 = vadd.f32 %v2673, %v2865
    %v2867 = vpop.f32.mrb[0].mxu0
    %v2868 = vadd.f32 %v2675, %v2867
    %v2869 = vpop.f32.mrb[0].mxu0
    %v2870 = vadd.f32 %v2677, %v2869
    %2871 = vmatprep.mubr.bf16.mxu0 %v2492
    %2872 = vmatmul.mubr.bf16.gmra.mrb[0].mxu0 %v2491
    %v2873 = vpop.f32.mrb[0].mxu0
    %v2874 = vadd.f32 %v2681, %v2873
    %v2875 = vpop.f32.mrb[0].mxu0
    %v2876 = vadd.f32 %v2683, %v2875
    %v2877 = vpop.f32.mrb[0].mxu0
    %v2878 = vadd.f32 %v2685, %v2877
    %v2879 = vpop.f32.mrb[0].mxu0
    %v2880 = vadd.f32 %v2687, %v2879
    %2881 = vmatprep.mubr.bf16.mxu0 %v2500
    %2882 = vmatmul.mubr.bf16.gmra.mrb[0].mxu0 %v2499
    %v2883 = vpop.f32.mrb[0].mxu0
    %v2884 = vadd.f32 %v2691, %v2883
    %v2885 = vpop.f32.mrb[0].mxu0
    %v2886 = vadd.f32 %v2693, %v2885
    %v2887 = vpop.f32.mrb[0].mxu0
    %v2888 = vadd.f32 %v2695, %v2887
    %v2889 = vpop.f32.mrb[0].mxu0
    %v2890 = vadd.f32 %v2697, %v2889
    %2891 = vmatprep.mubr.bf16.mxu0 %v2508
    %2892 = vmatmul.mubr.bf16.gmra.mrb[0].mxu0 %v2507
    %v2893 = vpop.f32.mrb[0].mxu0
    %v2894 = vadd.f32 %v2701, %v2893
    %v2895 = vpop.f32.mrb[0].mxu0
    %v2896 = vadd.f32 %v2703, %v2895
    %v2897 = vpop.f32.mrb[0].mxu0
    %v2898 = vadd.f32 %v2705, %v2897
    %v2899 = vpop.f32.mrb[0].mxu0
    %v2900 = vadd.f32 %v2707, %v2899
    %2901 = vmatprep.mubr.bf16.mxu0 %v2516
    %2902 = vmatmul.mubr.bf16.gmra.mrb[0].mxu0 %v2515
    %v2903 = vpop.f32.mrb[0].mxu0
    %v2904 = vadd.f32 %v2711, %v2903
    %v2905 = vpop.f32.mrb[0].mxu0
    %v2906 = vadd.f32 %v2713, %v2905
    %v2907 = vpop.f32.mrb[0].mxu0
    %v2908 = vadd.f32 %v2715, %v2907
    %v2909 = vpop.f32.mrb[0].mxu0
    %v2910 = vadd.f32 %v2717, %v2909
    %2911 = vmatprep.mubr.bf16.mxu0 %v2524
    %2912 = vmatmul.mubr.bf16.gmra.mrb[0].mxu0 %v2523
    %v2913 = vpop.f32.mrb[0].mxu0
    %v2914 = vadd.f32 %v2721, %v2913
    %v2915 = vpop.f32.mrb[0].mxu0
    %v2916 = vadd.f32 %v2723, %v2915
    %v2917 = vpop.f32.mrb[0].mxu0
    %v2918 = vadd.f32 %v2725, %v2917
    %v2919 = vpop.f32.mrb[0].mxu0
    %v2920 = vadd.f32 %v2727, %v2919
    %2921 = vmatprep.mubr.bf16.mxu0 %v2532
    %2922 = vmatmul.mubr.bf16.gmra.mrb[0].mxu0 %v2531
    %v2923 = vpop.f32.mrb[0].mxu0
    %v2924 = vadd.f32 %v2731, %v2923
    %v2925 = vpop.f32.mrb[0].mxu0
    %v2926 = vadd.f32 %v2733, %v2925
    %v2927 = vpop.f32.mrb[0].mxu0
    %v2928 = vadd.f32 %v2735, %v2927
    %v2929 = vpop.f32.mrb[0].mxu0
    %v2930 = vadd.f32 %v2737, %v2929
    %2931 = vmatprep.mubr.bf16.mxu0 %v2540
    %2932 = vmatmul.mubr.bf16.gmra.mrb[0].mxu0 %v2539
    %v2933 = vpop.f32.mrb[0].mxu0
    %v2934 = vadd.f32 %v2741, %v2933
    %v2935 = vpop.f32.mrb[0].mxu0
    %v2936 = vadd.f32 %v2743, %v2935
    %v2937 = vpop.f32.mrb[0].mxu0
    %v2938 = vadd.f32 %v2745, %v2937
    %v2939 = vpop.f32.mrb[0].mxu0
    %v2940 = vadd.f32 %v2747, %v2939
    %2941 = vmatprep.mubr.bf16.mxu0 %v2548
    %2942 = vmatmul.mubr.bf16.gmra.mrb[0].mxu0 %v2547
    %v2943 = vpop.f32.mrb[0].mxu0
    %v2944 = vadd.f32 %v2751, %v2943
    %v2945 = vpop.f32.mrb[0].mxu0
    %v2946 = vadd.f32 %v2753, %v2945
    %v2947 = vpop.f32.mrb[0].mxu0
    %v2948 = vadd.f32 %v2755, %v2947
    %v2949 = vpop.f32.mrb[0].mxu0
    %v2950 = vadd.f32 %v2757, %v2949
    %2951 = vdwg.mxu0
    %2952 = vmatprep.subr.bf16.mxu0 %v2362
    %2953 = vmatpush1.bf16.msra.mxu0 %v2361
    %2954 = vmatprep.subr.bf16.mxu0 %v2364
    %2955 = vmatpush1.bf16.msra.mxu0 %v2363
    %2956 = vmatprep.subr.bf16.mxu0 %v2366
    %2957 = vmatpush1.bf16.msra.mxu0 %v2365
    %2958 = vmatprep.subr.bf16.mxu0 %v2368
    %2959 = vmatpush1.bf16.msra.mxu0 %v2367
    %2960 = vmatprep.subr.bf16.mxu0 %v2370
    %2961 = vmatpush1.bf16.msra.mxu0 %v2369
    %2962 = vmatprep.subr.bf16.mxu0 %v2372
    %2963 = vmatpush1.bf16.msra.mxu0 %v2371
    %2964 = vmatprep.subr.bf16.mxu0 %v2374
    %2965 = vmatpush1.bf16.msra.mxu0 %v2373
    %2966 = vmatprep.subr.bf16.mxu0 %v2376
    %2967 = vmatpush1.bf16.msra.mxu0 %v2375
    %2968 = vmatprep.subr.bf16.mxu0 %v2378
    %2969 = vmatpush1.bf16.msra.mxu0 %v2377
    %2970 = vmatprep.subr.bf16.mxu0 %v2380
    %2971 = vmatpush1.bf16.msra.mxu0 %v2379
    %2972 = vmatprep.subr.bf16.mxu0 %v2382
    %2973 = vmatpush1.bf16.msra.mxu0 %v2381
    %2974 = vmatprep.subr.bf16.mxu0 %v2384
    %2975 = vmatpush1.bf16.msra.mxu0 %v2383
    %2976 = vmatprep.subr.bf16.mxu0 %v2386
    %2977 = vmatpush1.bf16.msra.mxu0 %v2385
    %2978 = vmatprep.subr.bf16.mxu0 %v2388
    %2979 = vmatpush1.bf16.msra.mxu0 %v2387
    %2980 = vmatprep.subr.bf16.mxu0 %v2390
    %2981 = vmatpush1.bf16.msra.mxu0 %v2389
    %2982 = vmatprep.subr.bf16.mxu0 %v2392
    %2983 = vmatpush1.bf16.msra.mxu0 %v2391
    %2984 = vmatprep.mubr.bf16.mxu0 %v2430
    %2985 = vmatmul.mubr.bf16.gmra.mrb[0].mxu0 %v2429
    %v2986 = vpop.f32.mrb[0].mxu0
    %v2987 = vadd.f32 %v2794, %v2986
    %v2988 = vpop.f32.mrb[0].mxu0
    %v2989 = vadd.f32 %v2796, %v2988
    %v2990 = vpop.f32.mrb[0].mxu0
    %v2991 = vadd.f32 %v2798, %v2990
    %v2992 = vpop.f32.mrb[0].mxu0
    %v2993 = vadd.f32 %v2800, %v2992
    %2994 = vmatprep.mubr.bf16.mxu0 %v2438
    %2995 = vmatmul.mubr.bf16.gmra.mrb[0].mxu0 %v2437
    %v2996 = vpop.f32.mrb[0].mxu0
    %v2997 = vadd.f32 %v2804, %v2996
    %v2998 = vpop.f32.mrb[0].mxu0
    %v2999 = vadd.f32 %v2806, %v2998
    %v3000 = vpop.f32.mrb[0].mxu0
    %v3001 = vadd.f32 %v2808, %v3000
    %v3002 = vpop.f32.mrb[0].mxu0
    %v3003 = vadd.f32 %v2810, %v3002
    %3004 = vmatprep.mubr.bf16.mxu0 %v2446
    %3005 = vmatmul.mubr.bf16.gmra.mrb[0].mxu0 %v2445
    %v3006 = vpop.f32.mrb[0].mxu0
    %v3007 = vadd.f32 %v2814, %v3006
    %v3008 = vpop.f32.mrb[0].mxu0
    %v3009 = vadd.f32 %v2816, %v3008
    %v3010 = vpop.f32.mrb[0].mxu0
    %v3011 = vadd.f32 %v2818, %v3010
    %v3012 = vpop.f32.mrb[0].mxu0
    %v3013 = vadd.f32 %v2820, %v3012
    %3014 = vmatprep.mubr.bf16.mxu0 %v2454
    %3015 = vmatmul.mubr.bf16.gmra.mrb[0].mxu0 %v2453
    %v3016 = vpop.f32.mrb[0].mxu0
    %v3017 = vadd.f32 %v2824, %v3016
    %v3018 = vpop.f32.mrb[0].mxu0
    %v3019 = vadd.f32 %v2826, %v3018
    %v3020 = vpop.f32.mrb[0].mxu0
    %v3021 = vadd.f32 %v2828, %v3020
    %v3022 = vpop.f32.mrb[0].mxu0
    %v3023 = vadd.f32 %v2830, %v3022
    %3024 = vmatprep.mubr.bf16.mxu0 %v2462
    %3025 = vmatmul.mubr.bf16.gmra.mrb[0].mxu0 %v2461
    %v3026 = vpop.f32.mrb[0].mxu0
    %v3027 = vadd.f32 %v2834, %v3026
    %v3028 = vpop.f32.mrb[0].mxu0
    %v3029 = vadd.f32 %v2836, %v3028
    %v3030 = vpop.f32.mrb[0].mxu0
    %v3031 = vadd.f32 %v2838, %v3030
    %v3032 = vpop.f32.mrb[0].mxu0
    %v3033 = vadd.f32 %v2840, %v3032
    %3034 = vmatprep.mubr.bf16.mxu0 %v2470
    %3035 = vmatmul.mubr.bf16.gmra.mrb[0].mxu0 %v2469
    %v3036 = vpop.f32.mrb[0].mxu0
    %v3037 = vadd.f32 %v2844, %v3036
    %v3038 = vpop.f32.mrb[0].mxu0
    %v3039 = vadd.f32 %v2846, %v3038
    %v3040 = vpop.f32.mrb[0].mxu0
    %v3041 = vadd.f32 %v2848, %v3040
    %v3042 = vpop.f32.mrb[0].mxu0
    %v3043 = vadd.f32 %v2850, %v3042
    %3044 = vmatprep.mubr.bf16.mxu0 %v2478
    %3045 = vmatmul.mubr.bf16.gmra.mrb[0].mxu0 %v2477
    %v3046 = vpop.f32.mrb[0].mxu0
    %v3047 = vadd.f32 %v2854, %v3046
    %v3048 = vpop.f32.mrb[0].mxu0
    %v3049 = vadd.f32 %v2856, %v3048
    %v3050 = vpop.f32.mrb[0].mxu0
    %v3051 = vadd.f32 %v2858, %v3050
    %v3052 = vpop.f32.mrb[0].mxu0
    %v3053 = vadd.f32 %v2860, %v3052
    %3054 = vmatprep.mubr.bf16.mxu0 %v2486
    %3055 = vmatmul.mubr.bf16.gmra.mrb[0].mxu0 %v2485
    %v3056 = vpop.f32.mrb[0].mxu0
    %v3057 = vadd.f32 %v2864, %v3056
    %v3058 = vpop.f32.mrb[0].mxu0
    %v3059 = vadd.f32 %v2866, %v3058
    %v3060 = vpop.f32.mrb[0].mxu0
    %v3061 = vadd.f32 %v2868, %v3060
    %v3062 = vpop.f32.mrb[0].mxu0
    %v3063 = vadd.f32 %v2870, %v3062
    %3064 = vmatprep.mubr.bf16.mxu0 %v2494
    %3065 = vmatmul.mubr.bf16.gmra.mrb[0].mxu0 %v2493
    %v3066 = vpop.f32.mrb[0].mxu0
    %v3067 = vadd.f32 %v2874, %v3066
    %v3068 = vpop.f32.mrb[0].mxu0
    %v3069 = vadd.f32 %v2876, %v3068
    %v3070 = vpop.f32.mrb[0].mxu0
    %v3071 = vadd.f32 %v2878, %v3070
    %v3072 = vpop.f32.mrb[0].mxu0
    %v3073 = vadd.f32 %v2880, %v3072
    %3074 = vmatprep.mubr.bf16.mxu0 %v2502
    %3075 = vmatmul.mubr.bf16.gmra.mrb[0].mxu0 %v2501
    %v3076 = vpop.f32.mrb[0].mxu0
    %v3077 = vadd.f32 %v2884, %v3076
    %v3078 = vpop.f32.mrb[0].mxu0
    %v3079 = vadd.f32 %v2886, %v3078
    %v3080 = vpop.f32.mrb[0].mxu0
    %v3081 = vadd.f32 %v2888, %v3080
    %v3082 = vpop.f32.mrb[0].mxu0
    %v3083 = vadd.f32 %v2890, %v3082
    %3084 = vmatprep.mubr.bf16.mxu0 %v2510
    %3085 = vmatmul.mubr.bf16.gmra.mrb[0].mxu0 %v2509
    %v3086 = vpop.f32.mrb[0].mxu0
    %v3087 = vadd.f32 %v2894, %v3086
    %v3088 = vpop.f32.mrb[0].mxu0
    %v3089 = vadd.f32 %v2896, %v3088
    %v3090 = vpop.f32.mrb[0].mxu0
    %v3091 = vadd.f32 %v2898, %v3090
    %v3092 = vpop.f32.mrb[0].mxu0
    %v3093 = vadd.f32 %v2900, %v3092
    %3094 = vmatprep.mubr.bf16.mxu0 %v2518
    %3095 = vmatmul.mubr.bf16.gmra.mrb[0].mxu0 %v2517
    %v3096 = vpop.f32.mrb[0].mxu0
    %v3097 = vadd.f32 %v2904, %v3096
    %v3098 = vpop.f32.mrb[0].mxu0
    %v3099 = vadd.f32 %v2906, %v3098
    %v3100 = vpop.f32.mrb[0].mxu0
    %v3101 = vadd.f32 %v2908, %v3100
    %v3102 = vpop.f32.mrb[0].mxu0
    %v3103 = vadd.f32 %v2910, %v3102
    %3104 = vmatprep.mubr.bf16.mxu0 %v2526
    %3105 = vmatmul.mubr.bf16.gmra.mrb[0].mxu0 %v2525
    %v3106 = vpop.f32.mrb[0].mxu0
    %v3107 = vadd.f32 %v2914, %v3106
    %v3108 = vpop.f32.mrb[0].mxu0
    %v3109 = vadd.f32 %v2916, %v3108
    %v3110 = vpop.f32.mrb[0].mxu0
    %v3111 = vadd.f32 %v2918, %v3110
    %v3112 = vpop.f32.mrb[0].mxu0
    %v3113 = vadd.f32 %v2920, %v3112
    %3114 = vmatprep.mubr.bf16.mxu0 %v2534
    %3115 = vmatmul.mubr.bf16.gmra.mrb[0].mxu0 %v2533
    %v3116 = vpop.f32.mrb[0].mxu0
    %v3117 = vadd.f32 %v2924, %v3116
    %v3118 = vpop.f32.mrb[0].mxu0
    %v3119 = vadd.f32 %v2926, %v3118
    %v3120 = vpop.f32.mrb[0].mxu0
    %v3121 = vadd.f32 %v2928, %v3120
    %v3122 = vpop.f32.mrb[0].mxu0
    %v3123 = vadd.f32 %v2930, %v3122
    %3124 = vmatprep.mubr.bf16.mxu0 %v2542
    %3125 = vmatmul.mubr.bf16.gmra.mrb[0].mxu0 %v2541
    %v3126 = vpop.f32.mrb[0].mxu0
    %v3127 = vadd.f32 %v2934, %v3126
    %v3128 = vpop.f32.mrb[0].mxu0
    %v3129 = vadd.f32 %v2936, %v3128
    %v3130 = vpop.f32.mrb[0].mxu0
    %v3131 = vadd.f32 %v2938, %v3130
    %v3132 = vpop.f32.mrb[0].mxu0
    %v3133 = vadd.f32 %v2940, %v3132
    %3134 = vmatprep.mubr.bf16.mxu0 %v2550
    %3135 = vmatmul.mubr.bf16.gmra.mrb[0].mxu0 %v2549
    %v3136 = vpop.f32.mrb[0].mxu0
    %v3137 = vadd.f32 %v2944, %v3136
    %v3138 = vpop.f32.mrb[0].mxu0
    %v3139 = vadd.f32 %v2946, %v3138
    %v3140 = vpop.f32.mrb[0].mxu0
    %v3141 = vadd.f32 %v2948, %v3140
    %v3142 = vpop.f32.mrb[0].mxu0
    %v3143 = vadd.f32 %v2950, %v3142
    %3144 = vdwg.mxu0
    %3145 = vmatprep.subr.bf16.mxu0 %v2394
    %3146 = vmatpush1.bf16.msra.mxu0 %v2393
    %3147 = vmatprep.subr.bf16.mxu0 %v2396
    %3148 = vmatpush1.bf16.msra.mxu0 %v2395
    %3149 = vmatprep.subr.bf16.mxu0 %v2398
    %3150 = vmatpush1.bf16.msra.mxu0 %v2397
    %3151 = vmatprep.subr.bf16.mxu0 %v2400
    %3152 = vmatpush1.bf16.msra.mxu0 %v2399
    %3153 = vmatprep.subr.bf16.mxu0 %v2402
    %3154 = vmatpush1.bf16.msra.mxu0 %v2401
    %3155 = vmatprep.subr.bf16.mxu0 %v2404
    %3156 = vmatpush1.bf16.msra.mxu0 %v2403
    %3157 = vmatprep.subr.bf16.mxu0 %v2406
    %3158 = vmatpush1.bf16.msra.mxu0 %v2405
    %3159 = vmatprep.subr.bf16.mxu0 %v2408
    %3160 = vmatpush1.bf16.msra.mxu0 %v2407
    %3161 = vmatprep.subr.bf16.mxu0 %v2410
    %3162 = vmatpush1.bf16.msra.mxu0 %v2409
    %3163 = vmatprep.subr.bf16.mxu0 %v2412
    %3164 = vmatpush1.bf16.msra.mxu0 %v2411
    %3165 = vmatprep.subr.bf16.mxu0 %v2414
    %3166 = vmatpush1.bf16.msra.mxu0 %v2413
    %3167 = vmatprep.subr.bf16.mxu0 %v2416
    %3168 = vmatpush1.bf16.msra.mxu0 %v2415
    %3169 = vmatprep.subr.bf16.mxu0 %v2418
    %3170 = vmatpush1.bf16.msra.mxu0 %v2417
    %3171 = vmatprep.subr.bf16.mxu0 %v2420
    %3172 = vmatpush1.bf16.msra.mxu0 %v2419
    %3173 = vmatprep.subr.bf16.mxu0 %v2422
    %3174 = vmatpush1.bf16.msra.mxu0 %v2421
    %3175 = vmatprep.subr.bf16.mxu0 %v2424
    %3176 = vmatpush1.bf16.msra.mxu0 %v2423
    %3177 = vmatprep.mubr.bf16.mxu0 %v2432
    %3178 = vmatmul.mubr.bf16.gmra.mrb[0].mxu0 %v2431
    %v3179 = vpop.f32.mrb[0].mxu0
    %v3180 = vadd.f32 %v2987, %v3179
    %v3181 = vpop.f32.mrb[0].mxu0
    %v3182 = vadd.f32 %v2989, %v3181
    %v3183 = vpop.f32.mrb[0].mxu0
    %v3184 = vadd.f32 %v2991, %v3183
    %v3185 = vpop.f32.mrb[0].mxu0
    %v3186 = vadd.f32 %v2993, %v3185
    %3187 = vmatprep.mubr.bf16.mxu0 %v2440
    %3188 = vmatmul.mubr.bf16.gmra.mrb[0].mxu0 %v2439
    %v3189 = vpop.f32.mrb[0].mxu0
    %v3190 = vadd.f32 %v2997, %v3189
    %v3191 = vpop.f32.mrb[0].mxu0
    %v3192 = vadd.f32 %v2999, %v3191
    %v3193 = vpop.f32.mrb[0].mxu0
    %v3194 = vadd.f32 %v3001, %v3193
    %v3195 = vpop.f32.mrb[0].mxu0
    %v3196 = vadd.f32 %v3003, %v3195
    %3197 = vmatprep.mubr.bf16.mxu0 %v2448
    %3198 = vmatmul.mubr.bf16.gmra.mrb[0].mxu0 %v2447
    %v3199 = vpop.f32.mrb[0].mxu0
    %v3200 = vadd.f32 %v3007, %v3199
    %v3201 = vpop.f32.mrb[0].mxu0
    %v3202 = vadd.f32 %v3009, %v3201
    %v3203 = vpop.f32.mrb[0].mxu0
    %v3204 = vadd.f32 %v3011, %v3203
    %v3205 = vpop.f32.mrb[0].mxu0
    %v3206 = vadd.f32 %v3013, %v3205
    %3207 = vmatprep.mubr.bf16.mxu0 %v2456
    %3208 = vmatmul.mubr.bf16.gmra.mrb[0].mxu0 %v2455
    %v3209 = vpop.f32.mrb[0].mxu0
    %v3210 = vadd.f32 %v3017, %v3209
    %v3211 = vpop.f32.mrb[0].mxu0
    %v3212 = vadd.f32 %v3019, %v3211
    %v3213 = vpop.f32.mrb[0].mxu0
    %v3214 = vadd.f32 %v3021, %v3213
    %v3215 = vpop.f32.mrb[0].mxu0
    %v3216 = vadd.f32 %v3023, %v3215
    %3217 = vmatprep.mubr.bf16.mxu0 %v2464
    %3218 = vmatmul.mubr.bf16.gmra.mrb[0].mxu0 %v2463
    %v3219 = vpop.f32.mrb[0].mxu0
    %v3220 = vadd.f32 %v3027, %v3219
    %v3221 = vpop.f32.mrb[0].mxu0
    %v3222 = vadd.f32 %v3029, %v3221
    %v3223 = vpop.f32.mrb[0].mxu0
    %v3224 = vadd.f32 %v3031, %v3223
    %v3225 = vpop.f32.mrb[0].mxu0
    %v3226 = vadd.f32 %v3033, %v3225
    %3227 = vmatprep.mubr.bf16.mxu0 %v2472
    %3228 = vmatmul.mubr.bf16.gmra.mrb[0].mxu0 %v2471
    %v3229 = vpop.f32.mrb[0].mxu0
    %v3230 = vadd.f32 %v3037, %v3229
    %v3231 = vpop.f32.mrb[0].mxu0
    %v3232 = vadd.f32 %v3039, %v3231
    %v3233 = vpop.f32.mrb[0].mxu0
    %v3234 = vadd.f32 %v3041, %v3233
    %v3235 = vpop.f32.mrb[0].mxu0
    %v3236 = vadd.f32 %v3043, %v3235
    %3237 = vmatprep.mubr.bf16.mxu0 %v2480
    %3238 = vmatmul.mubr.bf16.gmra.mrb[0].mxu0 %v2479
    %v3239 = vpop.f32.mrb[0].mxu0
    %v3240 = vadd.f32 %v3047, %v3239
    %v3241 = vpop.f32.mrb[0].mxu0
    %v3242 = vadd.f32 %v3049, %v3241
    %v3243 = vpop.f32.mrb[0].mxu0
    %v3244 = vadd.f32 %v3051, %v3243
    %v3245 = vpop.f32.mrb[0].mxu0
    %v3246 = vadd.f32 %v3053, %v3245
    %3247 = vmatprep.mubr.bf16.mxu0 %v2488
    %3248 = vmatmul.mubr.bf16.gmra.mrb[0].mxu0 %v2487
    %v3249 = vpop.f32.mrb[0].mxu0
    %v3250 = vadd.f32 %v3057, %v3249
    %v3251 = vpop.f32.mrb[0].mxu0
    %v3252 = vadd.f32 %v3059, %v3251
    %v3253 = vpop.f32.mrb[0].mxu0
    %v3254 = vadd.f32 %v3061, %v3253
    %v3255 = vpop.f32.mrb[0].mxu0
    %v3256 = vadd.f32 %v3063, %v3255
    %3257 = vmatprep.mubr.bf16.mxu0 %v2496
    %3258 = vmatmul.mubr.bf16.gmra.mrb[0].mxu0 %v2495
    %v3259 = vpop.f32.mrb[0].mxu0
    %v3260 = vadd.f32 %v3067, %v3259
    %v3261 = vpop.f32.mrb[0].mxu0
    %v3262 = vadd.f32 %v3069, %v3261
    %v3263 = vpop.f32.mrb[0].mxu0
    %v3264 = vadd.f32 %v3071, %v3263
    %v3265 = vpop.f32.mrb[0].mxu0
    %v3266 = vadd.f32 %v3073, %v3265
    %3267 = vmatprep.mubr.bf16.mxu0 %v2504
    %3268 = vmatmul.mubr.bf16.gmra.mrb[0].mxu0 %v2503
    %v3269 = vpop.f32.mrb[0].mxu0
    %v3270 = vadd.f32 %v3077, %v3269
    %v3271 = vpop.f32.mrb[0].mxu0
    %v3272 = vadd.f32 %v3079, %v3271
    %v3273 = vpop.f32.mrb[0].mxu0
    %v3274 = vadd.f32 %v3081, %v3273
    %v3275 = vpop.f32.mrb[0].mxu0
    %v3276 = vadd.f32 %v3083, %v3275
    %3277 = vmatprep.mubr.bf16.mxu0 %v2512
    %3278 = vmatmul.mubr.bf16.gmra.mrb[0].mxu0 %v2511
    %v3279 = vpop.f32.mrb[0].mxu0
    %v3280 = vadd.f32 %v3087, %v3279
    %v3281 = vpop.f32.mrb[0].mxu0
    %v3282 = vadd.f32 %v3089, %v3281
    %v3283 = vpop.f32.mrb[0].mxu0
    %v3284 = vadd.f32 %v3091, %v3283
    %v3285 = vpop.f32.mrb[0].mxu0
    %v3286 = vadd.f32 %v3093, %v3285
    %3287 = vmatprep.mubr.bf16.mxu0 %v2520
    %3288 = vmatmul.mubr.bf16.gmra.mrb[0].mxu0 %v2519
    %v3289 = vpop.f32.mrb[0].mxu0
    %v3290 = vadd.f32 %v3097, %v3289
    %v3291 = vpop.f32.mrb[0].mxu0
    %v3292 = vadd.f32 %v3099, %v3291
    %v3293 = vpop.f32.mrb[0].mxu0
    %v3294 = vadd.f32 %v3101, %v3293
    %v3295 = vpop.f32.mrb[0].mxu0
    %v3296 = vadd.f32 %v3103, %v3295
    %3297 = vmatprep.mubr.bf16.mxu0 %v2528
    %3298 = vmatmul.mubr.bf16.gmra.mrb[0].mxu0 %v2527
    %v3299 = vpop.f32.mrb[0].mxu0
    %v3300 = vadd.f32 %v3107, %v3299
    %v3301 = vpop.f32.mrb[0].mxu0
    %v3302 = vadd.f32 %v3109, %v3301
    %v3303 = vpop.f32.mrb[0].mxu0
    %v3304 = vadd.f32 %v3111, %v3303
    %v3305 = vpop.f32.mrb[0].mxu0
    %v3306 = vadd.f32 %v3113, %v3305
    %3307 = vmatprep.mubr.bf16.mxu0 %v2536
    %3308 = vmatmul.mubr.bf16.gmra.mrb[0].mxu0 %v2535
    %v3309 = vpop.f32.mrb[0].mxu0
    %v3310 = vadd.f32 %v3117, %v3309
    %v3311 = vpop.f32.mrb[0].mxu0
    %v3312 = vadd.f32 %v3119, %v3311
    %v3313 = vpop.f32.mrb[0].mxu0
    %v3314 = vadd.f32 %v3121, %v3313
    %v3315 = vpop.f32.mrb[0].mxu0
    %v3316 = vadd.f32 %v3123, %v3315
    %3317 = vmatprep.mubr.bf16.mxu0 %v2544
    %3318 = vmatmul.mubr.bf16.gmra.mrb[0].mxu0 %v2543
    %v3319 = vpop.f32.mrb[0].mxu0
    %v3320 = vadd.f32 %v3127, %v3319
    %v3321 = vpop.f32.mrb[0].mxu0
    %v3322 = vadd.f32 %v3129, %v3321
    %v3323 = vpop.f32.mrb[0].mxu0
    %v3324 = vadd.f32 %v3131, %v3323
    %v3325 = vpop.f32.mrb[0].mxu0
    %v3326 = vadd.f32 %v3133, %v3325
    %3327 = vmatprep.mubr.bf16.mxu0 %v2552
    %3328 = vmatmul.mubr.bf16.gmra.mrb[0].mxu0 %v2551
    %v3329 = vpop.f32.mrb[0].mxu0
    %v3330 = vadd.f32 %v3137, %v3329
    %v3331 = vpop.f32.mrb[0].mxu0
    %v3332 = vadd.f32 %v3139, %v3331
    %v3333 = vpop.f32.mrb[0].mxu0
    %v3334 = vadd.f32 %v3141, %v3333
    %v3335 = vpop.f32.mrb[0].mxu0
    %v3336 = vadd.f32 %v3143, %v3335
    %3337 = vdwg.mxu0
    %v3338 = vmax.f32 %v3180, 0.0
    %v3339 = vmax.f32 %v3182, 0.0
    %v3340 = vmax.f32 %v3184, 0.0
    %v3341 = vmax.f32 %v3186, 0.0
    %v3342 = vmax.f32 %v3190, 0.0
    %v3343 = vmax.f32 %v3192, 0.0
    %v3344 = vmax.f32 %v3194, 0.0
    %v3345 = vmax.f32 %v3196, 0.0
    %v3346 = vmax.f32 %v3200, 0.0
    %v3347 = vmax.f32 %v3202, 0.0
    %v3348 = vmax.f32 %v3204, 0.0
    %v3349 = vmax.f32 %v3206, 0.0
    %v3350 = vmax.f32 %v3210, 0.0
    %v3351 = vmax.f32 %v3212, 0.0
    %v3352 = vmax.f32 %v3214, 0.0
    %v3353 = vmax.f32 %v3216, 0.0
    %v3354 = vmax.f32 %v3220, 0.0
    %v3355 = vmax.f32 %v3222, 0.0
    %v3356 = vmax.f32 %v3224, 0.0
    %v3357 = vmax.f32 %v3226, 0.0
    %v3358 = vmax.f32 %v3230, 0.0
    %v3359 = vmax.f32 %v3232, 0.0
    %v3360 = vmax.f32 %v3234, 0.0
    %v3361 = vmax.f32 %v3236, 0.0
    %v3362 = vmax.f32 %v3240, 0.0
    %v3363 = vmax.f32 %v3242, 0.0
    %v3364 = vmax.f32 %v3244, 0.0
    %v3365 = vmax.f32 %v3246, 0.0
    %v3366 = vmax.f32 %v3250, 0.0
    %v3367 = vmax.f32 %v3252, 0.0
    %v3368 = vmax.f32 %v3254, 0.0
    %v3369 = vmax.f32 %v3256, 0.0
    %v3370 = vmax.f32 %v3260, 0.0
    %v3371 = vmax.f32 %v3262, 0.0
    %v3372 = vmax.f32 %v3264, 0.0
    %v3373 = vmax.f32 %v3266, 0.0
    %v3374 = vmax.f32 %v3270, 0.0
    %v3375 = vmax.f32 %v3272, 0.0
    %v3376 = vmax.f32 %v3274, 0.0
    %v3377 = vmax.f32 %v3276, 0.0
    %v3378 = vmax.f32 %v3280, 0.0
    %v3379 = vmax.f32 %v3282, 0.0
    %v3380 = vmax.f32 %v3284, 0.0
    %v3381 = vmax.f32 %v3286, 0.0
    %v3382 = vmax.f32 %v3290, 0.0
    %v3383 = vmax.f32 %v3292, 0.0
    %v3384 = vmax.f32 %v3294, 0.0
    %v3385 = vmax.f32 %v3296, 0.0
    %v3386 = vmax.f32 %v3300, 0.0
    %v3387 = vmax.f32 %v3302, 0.0
    %v3388 = vmax.f32 %v3304, 0.0
    %v3389 = vmax.f32 %v3306, 0.0
    %v3390 = vmax.f32 %v3310, 0.0
    %v3391 = vmax.f32 %v3312, 0.0
    %v3392 = vmax.f32 %v3314, 0.0
    %v3393 = vmax.f32 %v3316, 0.0
    %v3394 = vmax.f32 %v3320, 0.0
    %v3395 = vmax.f32 %v3322, 0.0
    %v3396 = vmax.f32 %v3324, 0.0
    %v3397 = vmax.f32 %v3326, 0.0
    %v3398 = vmax.f32 %v3330, 0.0
    %v3399 = vmax.f32 %v3332, 0.0
    %v3400 = vmax.f32 %v3334, 0.0
    %v3401 = vmax.f32 %v3336, 0.0
    %v3402 = vld [vmem:[%s3] sm:$0xf]
    %v3403 = vld [vmem:[%s3 + $0x4] sm:$0xf]
    %v3404 = vld [vmem:[%s3 + $0x8] sm:$0xf]
    %v3405 = vld [vmem:[%s3 + $0xc] sm:$0xf]
    %v3406 = vld [vmem:[%s3 + $0x10] sm:$0xf]
    %v3407 = vld [vmem:[%s3 + $0x14] sm:$0xf]
    %v3408 = vld [vmem:[%s3 + $0x18] sm:$0xf]
    %v3409 = vld [vmem:[%s3 + $0x1c] sm:$0xf]
    %v3410 = vld [vmem:[%s3 + $0x20] sm:$0xf]
    %v3411 = vld [vmem:[%s3 + $0x24] sm:$0xf]
    %v3412 = vld [vmem:[%s3 + $0x28] sm:$0xf]
    %v3413 = vld [vmem:[%s3 + $0x2c] sm:$0xf]
    %v3414 = vld [vmem:[%s3 + $0x30] sm:$0xf]
    %v3415 = vld [vmem:[%s3 + $0x34] sm:$0xf]
    %v3416 = vld [vmem:[%s3 + $0x38] sm:$0xf]
    %v3417 = vld [vmem:[%s3 + $0x3c] sm:$0xf]
    %v3418 = vld [vmem:[%s3 + $0x40] sm:$0xf]
    %v3419 = vld [vmem:[%s3 + $0x44] sm:$0xf]
    %v3420 = vld [vmem:[%s3 + $0x48] sm:$0xf]
    %v3421 = vld [vmem:[%s3 + $0x4c] sm:$0xf]
    %v3422 = vld [vmem:[%s3 + $0x50] sm:$0xf]
    %v3423 = vld [vmem:[%s3 + $0x54] sm:$0xf]
    %v3424 = vld [vmem:[%s3 + $0x58] sm:$0xf]
    %v3425 = vld [vmem:[%s3 + $0x5c] sm:$0xf]
    %v3426 = vld [vmem:[%s3 + $0x60] sm:$0xf]
    %v3427 = vld [vmem:[%s3 + $0x64] sm:$0xf]
    %v3428 = vld [vmem:[%s3 + $0x68] sm:$0xf]
    %v3429 = vld [vmem:[%s3 + $0x6c] sm:$0xf]
    %v3430 = vld [vmem:[%s3 + $0x70] sm:$0xf]
    %v3431 = vld [vmem:[%s3 + $0x74] sm:$0xf]
    %v3432 = vld [vmem:[%s3 + $0x78] sm:$0xf]
    %v3433 = vld [vmem:[%s3 + $0x7c] sm:$0xf]
    %v3434 = vpack.c.bf16 %v3340, %v3338
    %v3435 = vpack.c.bf16 %v3341, %v3339
    %v3436 = vpack.c.bf16 %v3344, %v3342
    %v3437 = vpack.c.bf16 %v3345, %v3343
    %v3438 = vpack.c.bf16 %v3348, %v3346
    %v3439 = vpack.c.bf16 %v3349, %v3347
    %v3440 = vpack.c.bf16 %v3352, %v3350
    %v3441 = vpack.c.bf16 %v3353, %v3351
    %v3442 = vpack.c.bf16 %v3356, %v3354
    %v3443 = vpack.c.bf16 %v3357, %v3355
    %v3444 = vpack.c.bf16 %v3360, %v3358
    %v3445 = vpack.c.bf16 %v3361, %v3359
    %v3446 = vpack.c.bf16 %v3364, %v3362
    %v3447 = vpack.c.bf16 %v3365, %v3363
    %v3448 = vpack.c.bf16 %v3368, %v3366
    %v3449 = vpack.c.bf16 %v3369, %v3367
    %v3450 = vpack.c.bf16 %v3372, %v3370
    %v3451 = vpack.c.bf16 %v3373, %v3371
    %v3452 = vpack.c.bf16 %v3376, %v3374
    %v3453 = vpack.c.bf16 %v3377, %v3375
    %v3454 = vpack.c.bf16 %v3380, %v3378
    %v3455 = vpack.c.bf16 %v3381, %v3379
    %v3456 = vpack.c.bf16 %v3384, %v3382
    %v3457 = vpack.c.bf16 %v3385, %v3383
    %v3458 = vpack.c.bf16 %v3388, %v3386
    %v3459 = vpack.c.bf16 %v3389, %v3387
    %v3460 = vpack.c.bf16 %v3392, %v3390
    %v3461 = vpack.c.bf16 %v3393, %v3391
    %v3462 = vpack.c.bf16 %v3396, %v3394
    %v3463 = vpack.c.bf16 %v3397, %v3395
    %v3464 = vpack.c.bf16 %v3400, %v3398
    %v3465 = vpack.c.bf16 %v3401, %v3399
    %v3466 = vld [vmem:[%s6 + $0x5] ss:$0 sm:$0xff]
    %v3499 = vunpack.c.l.b16 %v3402
    %v3500 = vunpack.c.l.b16 %v3403
    %v3501 = vunpack.c.l.b16 %v3404
    %v3502 = vunpack.c.l.b16 %v3405
    %v3503 = vunpack.c.l.b16 %v3406
    %v3504 = vunpack.c.l.b16 %v3407
    %v3505 = vunpack.c.l.b16 %v3408
    %v3506 = vunpack.c.l.b16 %v3409
    %v3507 = vunpack.c.l.b16 %v3410
    %v3508 = vunpack.c.l.b16 %v3411
    %v3509 = vunpack.c.l.b16 %v3412
    %v3510 = vunpack.c.l.b16 %v3413
    %v3511 = vunpack.c.l.b16 %v3414
    %v3512 = vunpack.c.l.b16 %v3415
    %v3513 = vunpack.c.l.b16 %v3416
    %v3514 = vunpack.c.l.b16 %v3417
    %v3515 = vunpack.c.l.b16 %v3418
    %v3516 = vunpack.c.l.b16 %v3419
    %v3517 = vunpack.c.l.b16 %v3420
    %v3518 = vunpack.c.l.b16 %v3421
    %v3519 = vunpack.c.l.b16 %v3422
    %v3520 = vunpack.c.l.b16 %v3423
    %v3521 = vunpack.c.l.b16 %v3424
    %v3522 = vunpack.c.l.b16 %v3425
    %v3523 = vunpack.c.l.b16 %v3426
    %v3524 = vunpack.c.l.b16 %v3427
    %v3525 = vunpack.c.l.b16 %v3428
    %v3526 = vunpack.c.l.b16 %v3429
    %v3527 = vunpack.c.l.b16 %v3430
    %v3528 = vunpack.c.l.b16 %v3431
    %v3529 = vunpack.c.l.b16 %v3432
    %v3530 = vunpack.c.l.b16 %v3433
    %v3531 = vpack.c.b16 %v3500, %v3499
    %v3532 = vpack.c.b16 %v3502, %v3501
    %v3533 = vpack.c.b16 %v3504, %v3503
    %v3534 = vpack.c.b16 %v3506, %v3505
    %v3535 = vpack.c.b16 %v3508, %v3507
    %v3536 = vpack.c.b16 %v3510, %v3509
    %v3537 = vpack.c.b16 %v3512, %v3511
    %v3538 = vpack.c.b16 %v3514, %v3513
    %v3539 = vpack.c.b16 %v3516, %v3515
    %v3540 = vpack.c.b16 %v3518, %v3517
    %v3541 = vpack.c.b16 %v3520, %v3519
    %v3542 = vpack.c.b16 %v3522, %v3521
    %v3543 = vpack.c.b16 %v3524, %v3523
    %v3544 = vpack.c.b16 %v3526, %v3525
    %v3545 = vpack.c.b16 %v3528, %v3527
    %v3546 = vpack.c.b16 %v3530, %v3529
    %3563 = vmatprep.subr.bf16.mxu0 0
    %3564 = vmatpush1.bf16.msra.mxu0 %v3531
    %3565 = vmatprep.subr.bf16.mxu0 0
    %3566 = vmatpush1.bf16.msra.mxu0 %v3532
    %3567 = vmatprep.subr.bf16.mxu0 0
    %3568 = vmatpush1.bf16.msra.mxu0 %v3533
    %3569 = vmatprep.subr.bf16.mxu0 0
    %3570 = vmatpush1.bf16.msra.mxu0 %v3534
    %3571 = vmatprep.subr.bf16.mxu0 0
    %3572 = vmatpush1.bf16.msra.mxu0 %v3535
    %3573 = vmatprep.subr.bf16.mxu0 0
    %3574 = vmatpush1.bf16.msra.mxu0 %v3536
    %3575 = vmatprep.subr.bf16.mxu0 0
    %3576 = vmatpush1.bf16.msra.mxu0 %v3537
    %3577 = vmatprep.subr.bf16.mxu0 0
    %3578 = vmatpush1.bf16.msra.mxu0 %v3538
    %3579 = vmatprep.subr.bf16.mxu0 0
    %3580 = vmatpush1.bf16.msra.mxu0 %v3539
    %3581 = vmatprep.subr.bf16.mxu0 0
    %3582 = vmatpush1.bf16.msra.mxu0 %v3540
    %3583 = vmatprep.subr.bf16.mxu0 0
    %3584 = vmatpush1.bf16.msra.mxu0 %v3541
    %3585 = vmatprep.subr.bf16.mxu0 0
    %3586 = vmatpush1.bf16.msra.mxu0 %v3542
    %3587 = vmatprep.subr.bf16.mxu0 0
    %3588 = vmatpush1.bf16.msra.mxu0 %v3543
    %3589 = vmatprep.subr.bf16.mxu0 0
    %3590 = vmatpush1.bf16.msra.mxu0 %v3544
    %3591 = vmatprep.subr.bf16.mxu0 0
    %3592 = vmatpush1.bf16.msra.mxu0 %v3545
    %3593 = vmatprep.subr.bf16.mxu0 0
    %3594 = vmatpush1.bf16.msra.mxu0 %v3546
    %3595 = vmatprep.mubr.bf16.mxu0 %v3435
    %3596 = vmatmul.mubr.bf16.gmra.mrb[0].mxu0 %v3434
    %v3597 = vpop.f32.mrb[0].mxu0
    %v3598 = vadd.f32 %v3466, %v3597
    %v3599 = vpop.f32.mrb[0].mxu0
    %v3600 = vpop.f32.mrb[0].mxu0
    %v3601 = vadd.f32 %v3466, %v3600
    %v3602 = vpop.f32.mrb[0].mxu0
    %3603 = vmatprep.mubr.bf16.mxu0 %v3437
    %3604 = vmatmul.mubr.bf16.gmra.mrb[0].mxu0 %v3436
    %v3605 = vpop.f32.mrb[0].mxu0
    %v3606 = vadd.f32 %v3466, %v3605
    %v3607 = vpop.f32.mrb[0].mxu0
    %v3608 = vpop.f32.mrb[0].mxu0
    %v3609 = vadd.f32 %v3466, %v3608
    %v3610 = vpop.f32.mrb[0].mxu0
    %3611 = vmatprep.mubr.bf16.mxu0 %v3439
    %3612 = vmatmul.mubr.bf16.gmra.mrb[0].mxu0 %v3438
    %v3613 = vpop.f32.mrb[0].mxu0
    %v3614 = vadd.f32 %v3466, %v3613
    %v3615 = vpop.f32.mrb[0].mxu0
    %v3616 = vpop.f32.mrb[0].mxu0
    %v3617 = vadd.f32 %v3466, %v3616
    %v3618 = vpop.f32.mrb[0].mxu0
    %3619 = vmatprep.mubr.bf16.mxu0 %v3441
    %3620 = vmatmul.mubr.bf16.gmra.mrb[0].mxu0 %v3440
    %v3621 = vpop.f32.mrb[0].mxu0
    %v3622 = vadd.f32 %v3466, %v3621
    %v3623 = vpop.f32.mrb[0].mxu0
    %v3624 = vpop.f32.mrb[0].mxu0
    %v3625 = vadd.f32 %v3466, %v3624
    %v3626 = vpop.f32.mrb[0].mxu0
    %3627 = vmatprep.mubr.bf16.mxu0 %v3443
    %3628 = vmatmul.mubr.bf16.gmra.mrb[0].mxu0 %v3442
    %v3629 = vpop.f32.mrb[0].mxu0
    %v3630 = vadd.f32 %v3466, %v3629
    %v3631 = vpop.f32.mrb[0].mxu0
    %v3632 = vpop.f32.mrb[0].mxu0
    %v3633 = vadd.f32 %v3466, %v3632
    %v3634 = vpop.f32.mrb[0].mxu0
    %3635 = vmatprep.mubr.bf16.mxu0 %v3445
    %3636 = vmatmul.mubr.bf16.gmra.mrb[0].mxu0 %v3444
    %v3637 = vpop.f32.mrb[0].mxu0
    %v3638 = vadd.f32 %v3466, %v3637
    %v3639 = vpop.f32.mrb[0].mxu0
    %v3640 = vpop.f32.mrb[0].mxu0
    %v3641 = vadd.f32 %v3466, %v3640
    %v3642 = vpop.f32.mrb[0].mxu0
    %3643 = vmatprep.mubr.bf16.mxu0 %v3447
    %3644 = vmatmul.mubr.bf16.gmra.mrb[0].mxu0 %v3446
    %v3645 = vpop.f32.mrb[0].mxu0
    %v3646 = vadd.f32 %v3466, %v3645
    %v3647 = vpop.f32.mrb[0].mxu0
    %v3648 = vpop.f32.mrb[0].mxu0
    %v3649 = vadd.f32 %v3466, %v3648
    %v3650 = vpop.f32.mrb[0].mxu0
    %3651 = vmatprep.mubr.bf16.mxu0 %v3449
    %3652 = vmatmul.mubr.bf16.gmra.mrb[0].mxu0 %v3448
    %v3653 = vpop.f32.mrb[0].mxu0
    %v3654 = vadd.f32 %v3466, %v3653
    %v3655 = vpop.f32.mrb[0].mxu0
    %v3656 = vpop.f32.mrb[0].mxu0
    %v3657 = vadd.f32 %v3466, %v3656
    %v3658 = vpop.f32.mrb[0].mxu0
    %3659 = vmatprep.mubr.bf16.mxu0 %v3451
    %3660 = vmatmul.mubr.bf16.gmra.mrb[0].mxu0 %v3450
    %v3661 = vpop.f32.mrb[0].mxu0
    %v3662 = vadd.f32 %v3466, %v3661
    %v3663 = vpop.f32.mrb[0].mxu0
    %v3664 = vpop.f32.mrb[0].mxu0
    %v3665 = vadd.f32 %v3466, %v3664
    %v3666 = vpop.f32.mrb[0].mxu0
    %3667 = vmatprep.mubr.bf16.mxu0 %v3453
    %3668 = vmatmul.mubr.bf16.gmra.mrb[0].mxu0 %v3452
    %v3669 = vpop.f32.mrb[0].mxu0
    %v3670 = vadd.f32 %v3466, %v3669
    %v3671 = vpop.f32.mrb[0].mxu0
    %v3672 = vpop.f32.mrb[0].mxu0
    %v3673 = vadd.f32 %v3466, %v3672
    %v3674 = vpop.f32.mrb[0].mxu0
    %3675 = vmatprep.mubr.bf16.mxu0 %v3455
    %3676 = vmatmul.mubr.bf16.gmra.mrb[0].mxu0 %v3454
    %v3677 = vpop.f32.mrb[0].mxu0
    %v3678 = vadd.f32 %v3466, %v3677
    %v3679 = vpop.f32.mrb[0].mxu0
    %v3680 = vpop.f32.mrb[0].mxu0
    %v3681 = vadd.f32 %v3466, %v3680
    %v3682 = vpop.f32.mrb[0].mxu0
    %3683 = vmatprep.mubr.bf16.mxu0 %v3457
    %3684 = vmatmul.mubr.bf16.gmra.mrb[0].mxu0 %v3456
    %v3685 = vpop.f32.mrb[0].mxu0
    %v3686 = vadd.f32 %v3466, %v3685
    %v3687 = vpop.f32.mrb[0].mxu0
    %v3688 = vpop.f32.mrb[0].mxu0
    %v3689 = vadd.f32 %v3466, %v3688
    %v3690 = vpop.f32.mrb[0].mxu0
    %3691 = vmatprep.mubr.bf16.mxu0 %v3459
    %3692 = vmatmul.mubr.bf16.gmra.mrb[0].mxu0 %v3458
    %v3693 = vpop.f32.mrb[0].mxu0
    %v3694 = vadd.f32 %v3466, %v3693
    %v3695 = vpop.f32.mrb[0].mxu0
    %v3696 = vpop.f32.mrb[0].mxu0
    %v3697 = vadd.f32 %v3466, %v3696
    %v3698 = vpop.f32.mrb[0].mxu0
    %3699 = vmatprep.mubr.bf16.mxu0 %v3461
    %3700 = vmatmul.mubr.bf16.gmra.mrb[0].mxu0 %v3460
    %v3701 = vpop.f32.mrb[0].mxu0
    %v3702 = vadd.f32 %v3466, %v3701
    %v3703 = vpop.f32.mrb[0].mxu0
    %v3704 = vpop.f32.mrb[0].mxu0
    %v3705 = vadd.f32 %v3466, %v3704
    %v3706 = vpop.f32.mrb[0].mxu0
    %3707 = vmatprep.mubr.bf16.mxu0 %v3463
    %3708 = vmatmul.mubr.bf16.gmra.mrb[0].mxu0 %v3462
    %v3709 = vpop.f32.mrb[0].mxu0
    %v3710 = vadd.f32 %v3466, %v3709
    %v3711 = vpop.f32.mrb[0].mxu0
    %v3712 = vpop.f32.mrb[0].mxu0
    %v3713 = vadd.f32 %v3466, %v3712
    %v3714 = vpop.f32.mrb[0].mxu0
    %3715 = vmatprep.mubr.bf16.mxu0 %v3465
    %3716 = vmatmul.mubr.bf16.gmra.mrb[0].mxu0 %v3464
    %v3717 = vpop.f32.mrb[0].mxu0
    %v3718 = vadd.f32 %v3466, %v3717
    %v3719 = vpop.f32.mrb[0].mxu0
    %v3720 = vpop.f32.mrb[0].mxu0
    %v3721 = vadd.f32 %v3466, %v3720
    %v3722 = vpop.f32.mrb[0].mxu0
    %3723 = vdwg.mxu0
    %v3724 = vmax.f32 %v3598, 0.0
    %v3725 = vmax.f32 %v3601, 0.0
    %v3726 = vmax.f32 %v3606, 0.0
    %v3727 = vmax.f32 %v3609, 0.0
    %v3728 = vmax.f32 %v3614, 0.0
    %v3729 = vmax.f32 %v3617, 0.0
    %v3730 = vmax.f32 %v3622, 0.0
    %v3731 = vmax.f32 %v3625, 0.0
    %v3732 = vmax.f32 %v3630, 0.0
    %v3733 = vmax.f32 %v3633, 0.0
    %v3734 = vmax.f32 %v3638, 0.0
    %v3735 = vmax.f32 %v3641, 0.0
    %v3736 = vmax.f32 %v3646, 0.0
    %v3737 = vmax.f32 %v3649, 0.0
    %v3738 = vmax.f32 %v3654, 0.0
    %v3739 = vmax.f32 %v3657, 0.0
    %v3740 = vmax.f32 %v3662, 0.0
    %v3741 = vmax.f32 %v3665, 0.0
    %v3742 = vmax.f32 %v3670, 0.0
    %v3743 = vmax.f32 %v3673, 0.0
    %v3744 = vmax.f32 %v3678, 0.0
    %v3745 = vmax.f32 %v3681, 0.0
    %v3746 = vmax.f32 %v3686, 0.0
    %v3747 = vmax.f32 %v3689, 0.0
    %v3748 = vmax.f32 %v3694, 0.0
    %v3749 = vmax.f32 %v3697, 0.0
    %v3750 = vmax.f32 %v3702, 0.0
    %v3751 = vmax.f32 %v3705, 0.0
    %v3752 = vmax.f32 %v3710, 0.0
    %v3753 = vmax.f32 %v3713, 0.0
    %v3754 = vmax.f32 %v3718, 0.0
    %v3755 = vmax.f32 %v3721, 0.0
    %s3756 = scalar_lea.vmem %s1, 128
    %v3757 = vld [vmem:[%s3756] sm:$0xf]
    %v3758 = vld [vmem:[%s3756 + $0x4] sm:$0xf]
    %v3759 = vld [vmem:[%s3756 + $0x8] sm:$0xf]
    %v3760 = vld [vmem:[%s3756 + $0xc] sm:$0xf]
    %v3761 = vld [vmem:[%s3756 + $0x10] sm:$0xf]
    %v3762 = vld [vmem:[%s3756 + $0x14] sm:$0xf]
    %v3763 = vld [vmem:[%s3756 + $0x18] sm:$0xf]
    %v3764 = vld [vmem:[%s3756 + $0x1c] sm:$0xf]
    %v3765 = vld [vmem:[%s3756 + $0x20] sm:$0xf]
    %v3766 = vld [vmem:[%s3756 + $0x24] sm:$0xf]
    %v3767 = vld [vmem:[%s3756 + $0x28] sm:$0xf]
    %v3768 = vld [vmem:[%s3756 + $0x2c] sm:$0xf]
    %v3769 = vld [vmem:[%s3756 + $0x30] sm:$0xf]
    %v3770 = vld [vmem:[%s3756 + $0x34] sm:$0xf]
    %v3771 = vld [vmem:[%s3756 + $0x38] sm:$0xf]
    %v3772 = vld [vmem:[%s3756 + $0x3c] sm:$0xf]
    %v3773 = vpack.c.bf16 %v3725, %v3724
    %v3774 = vpack.c.bf16 %v3727, %v3726
    %v3775 = vpack.c.bf16 %v3729, %v3728
    %v3776 = vpack.c.bf16 %v3731, %v3730
    %v3777 = vpack.c.bf16 %v3733, %v3732
    %v3778 = vpack.c.bf16 %v3735, %v3734
    %v3779 = vpack.c.bf16 %v3737, %v3736
    %v3780 = vpack.c.bf16 %v3739, %v3738
    %v3781 = vpack.c.bf16 %v3741, %v3740
    %v3782 = vpack.c.bf16 %v3743, %v3742
    %v3783 = vpack.c.bf16 %v3745, %v3744
    %v3784 = vpack.c.bf16 %v3747, %v3746
    %v3785 = vpack.c.bf16 %v3749, %v3748
    %v3786 = vpack.c.bf16 %v3751, %v3750
    %v3787 = vpack.c.bf16 %v3753, %v3752
    %v3788 = vpack.c.bf16 %v3755, %v3754
    %v3789 = vld [vmem:[%s6 + $0x6] ss:$0 sm:$0xff]
    %v3806 = vunpack.c.l.b16 %v3757
    %v3807 = vunpack.c.l.b16 %v3758
    %v3808 = vunpack.c.l.b16 %v3759
    %v3809 = vunpack.c.l.b16 %v3760
    %v3810 = vunpack.c.l.b16 %v3761
    %v3811 = vunpack.c.l.b16 %v3762
    %v3812 = vunpack.c.l.b16 %v3763
    %v3813 = vunpack.c.l.b16 %v3764
    %v3814 = vunpack.c.l.b16 %v3765
    %v3815 = vunpack.c.l.b16 %v3766
    %v3816 = vunpack.c.l.b16 %v3767
    %v3817 = vunpack.c.l.b16 %v3768
    %v3818 = vunpack.c.l.b16 %v3769
    %v3819 = vunpack.c.l.b16 %v3770
    %v3820 = vunpack.c.l.b16 %v3771
    %v3821 = vunpack.c.l.b16 %v3772
    %v3822 = vpack.c.b16 %v3807, %v3806
    %v3823 = vpack.c.b16 %v3809, %v3808
    %v3824 = vpack.c.b16 %v3811, %v3810
    %v3825 = vpack.c.b16 %v3813, %v3812
    %v3826 = vpack.c.b16 %v3815, %v3814
    %v3827 = vpack.c.b16 %v3817, %v3816
    %v3828 = vpack.c.b16 %v3819, %v3818
    %v3829 = vpack.c.b16 %v3821, %v3820
    %3838 = vmatprep.subr.bf16.mxu0 0
    %3839 = vmatpush1.bf16.msra.mxu0 %v3822
    %3840 = vmatprep.subr.bf16.mxu0 0
    %3841 = vmatpush1.bf16.msra.mxu0 %v3823
    %3842 = vmatprep.subr.bf16.mxu0 0
    %3843 = vmatpush1.bf16.msra.mxu0 %v3824
    %3844 = vmatprep.subr.bf16.mxu0 0
    %3845 = vmatpush1.bf16.msra.mxu0 %v3825
    %3846 = vmatprep.subr.bf16.mxu0 0
    %3847 = vmatpush1.bf16.msra.mxu0 %v3826
    %3848 = vmatprep.subr.bf16.mxu0 0
    %3849 = vmatpush1.bf16.msra.mxu0 %v3827
    %3850 = vmatprep.subr.bf16.mxu0 0
    %3851 = vmatpush1.bf16.msra.mxu0 %v3828
    %3852 = vmatprep.subr.bf16.mxu0 0
    %3853 = vmatpush1.bf16.msra.mxu0 %v3829
    %3854 = vmatprep.subr.bf16.mxu0 0
    %3855 = vmatpush1.bf16.msra.mxu0 0
    %3856 = vmatprep.subr.bf16.mxu0 0
    %3857 = vmatpush1.bf16.msra.mxu0 0
    %3858 = vmatprep.subr.bf16.mxu0 0
    %3859 = vmatpush1.bf16.msra.mxu0 0
    %3860 = vmatprep.subr.bf16.mxu0 0
    %3861 = vmatpush1.bf16.msra.mxu0 0
    %3862 = vmatprep.subr.bf16.mxu0 0
    %3863 = vmatpush1.bf16.msra.mxu0 0
    %3864 = vmatprep.subr.bf16.mxu0 0
    %3865 = vmatpush1.bf16.msra.mxu0 0
    %3866 = vmatprep.subr.bf16.mxu0 0
    %3867 = vmatpush1.bf16.msra.mxu0 0
    %3868 = vmatprep.subr.bf16.mxu0 0
    %3869 = vmatpush1.bf16.msra.mxu0 0
    %3870 = vmatprep.mubr.bf16.mxu0 0
    %3871 = vmatmul.mubr.bf16.gmra.mrb[0].mxu0 %v3773
    %v3872 = vpop.f32.mrb[0].mxu0
    %v3873 = vadd.f32 %v3789, %v3872
    %v3874 = vpop.f32.mrb[0].mxu0
    %v3875 = vpop.f32.mrb[0].mxu0
    %v3876 = vadd.f32 %v3789, %v3875
    %v3877 = vpop.f32.mrb[0].mxu0
    %3878 = vmatprep.mubr.bf16.mxu0 0
    %3879 = vmatmul.mubr.bf16.gmra.mrb[0].mxu0 %v3774
    %v3880 = vpop.f32.mrb[0].mxu0
    %v3881 = vadd.f32 %v3789, %v3880
    %v3882 = vpop.f32.mrb[0].mxu0
    %v3883 = vpop.f32.mrb[0].mxu0
    %v3884 = vadd.f32 %v3789, %v3883
    %v3885 = vpop.f32.mrb[0].mxu0
    %3886 = vmatprep.mubr.bf16.mxu0 0
    %3887 = vmatmul.mubr.bf16.gmra.mrb[0].mxu0 %v3775
    %v3888 = vpop.f32.mrb[0].mxu0
    %v3889 = vadd.f32 %v3789, %v3888
    %v3890 = vpop.f32.mrb[0].mxu0
    %v3891 = vpop.f32.mrb[0].mxu0
    %v3892 = vadd.f32 %v3789, %v3891
    %v3893 = vpop.f32.mrb[0].mxu0
    %3894 = vmatprep.mubr.bf16.mxu0 0
    %3895 = vmatmul.mubr.bf16.gmra.mrb[0].mxu0 %v3776
    %v3896 = vpop.f32.mrb[0].mxu0
    %v3897 = vadd.f32 %v3789, %v3896
    %v3898 = vpop.f32.mrb[0].mxu0
    %v3899 = vpop.f32.mrb[0].mxu0
    %v3900 = vadd.f32 %v3789, %v3899
    %v3901 = vpop.f32.mrb[0].mxu0
    %3902 = vmatprep.mubr.bf16.mxu0 0
    %3903 = vmatmul.mubr.bf16.gmra.mrb[0].mxu0 %v3777
    %v3904 = vpop.f32.mrb[0].mxu0
    %v3905 = vadd.f32 %v3789, %v3904
    %v3906 = vpop.f32.mrb[0].mxu0
    %v3907 = vpop.f32.mrb[0].mxu0
    %v3908 = vadd.f32 %v3789, %v3907
    %v3909 = vpop.f32.mrb[0].mxu0
    %3910 = vmatprep.mubr.bf16.mxu0 0
    %3911 = vmatmul.mubr.bf16.gmra.mrb[0].mxu0 %v3778
    %v3912 = vpop.f32.mrb[0].mxu0
    %v3913 = vadd.f32 %v3789, %v3912
    %v3914 = vpop.f32.mrb[0].mxu0
    %v3915 = vpop.f32.mrb[0].mxu0
    %v3916 = vadd.f32 %v3789, %v3915
    %v3917 = vpop.f32.mrb[0].mxu0
    %3918 = vmatprep.mubr.bf16.mxu0 0
    %3919 = vmatmul.mubr.bf16.gmra.mrb[0].mxu0 %v3779
    %v3920 = vpop.f32.mrb[0].mxu0
    %v3921 = vadd.f32 %v3789, %v3920
    %v3922 = vpop.f32.mrb[0].mxu0
    %v3923 = vpop.f32.mrb[0].mxu0
    %v3924 = vadd.f32 %v3789, %v3923
    %v3925 = vpop.f32.mrb[0].mxu0
    %3926 = vmatprep.mubr.bf16.mxu0 0
    %3927 = vmatmul.mubr.bf16.gmra.mrb[0].mxu0 %v3780
    %v3928 = vpop.f32.mrb[0].mxu0
    %v3929 = vadd.f32 %v3789, %v3928
    %v3930 = vpop.f32.mrb[0].mxu0
    %v3931 = vpop.f32.mrb[0].mxu0
    %v3932 = vadd.f32 %v3789, %v3931
    %v3933 = vpop.f32.mrb[0].mxu0
    %3934 = vmatprep.mubr.bf16.mxu0 0
    %3935 = vmatmul.mubr.bf16.gmra.mrb[0].mxu0 %v3781
    %v3936 = vpop.f32.mrb[0].mxu0
    %v3937 = vadd.f32 %v3789, %v3936
    %v3938 = vpop.f32.mrb[0].mxu0
    %v3939 = vpop.f32.mrb[0].mxu0
    %v3940 = vadd.f32 %v3789, %v3939
    %v3941 = vpop.f32.mrb[0].mxu0
    %3942 = vmatprep.mubr.bf16.mxu0 0
    %3943 = vmatmul.mubr.bf16.gmra.mrb[0].mxu0 %v3782
    %v3944 = vpop.f32.mrb[0].mxu0
    %v3945 = vadd.f32 %v3789, %v3944
    %v3946 = vpop.f32.mrb[0].mxu0
    %v3947 = vpop.f32.mrb[0].mxu0
    %v3948 = vadd.f32 %v3789, %v3947
    %v3949 = vpop.f32.mrb[0].mxu0
    %3950 = vmatprep.mubr.bf16.mxu0 0
    %3951 = vmatmul.mubr.bf16.gmra.mrb[0].mxu0 %v3783
    %v3952 = vpop.f32.mrb[0].mxu0
    %v3953 = vadd.f32 %v3789, %v3952
    %v3954 = vpop.f32.mrb[0].mxu0
    %v3955 = vpop.f32.mrb[0].mxu0
    %v3956 = vadd.f32 %v3789, %v3955
    %v3957 = vpop.f32.mrb[0].mxu0
    %3958 = vmatprep.mubr.bf16.mxu0 0
    %3959 = vmatmul.mubr.bf16.gmra.mrb[0].mxu0 %v3784
    %v3960 = vpop.f32.mrb[0].mxu0
    %v3961 = vadd.f32 %v3789, %v3960
    %v3962 = vpop.f32.mrb[0].mxu0
    %v3963 = vpop.f32.mrb[0].mxu0
    %v3964 = vadd.f32 %v3789, %v3963
    %v3965 = vpop.f32.mrb[0].mxu0
    %3966 = vmatprep.mubr.bf16.mxu0 0
    %3967 = vmatmul.mubr.bf16.gmra.mrb[0].mxu0 %v3785
    %v3968 = vpop.f32.mrb[0].mxu0
    %v3969 = vadd.f32 %v3789, %v3968
    %v3970 = vpop.f32.mrb[0].mxu0
    %v3971 = vpop.f32.mrb[0].mxu0
    %v3972 = vadd.f32 %v3789, %v3971
    %v3973 = vpop.f32.mrb[0].mxu0
    %3974 = vmatprep.mubr.bf16.mxu0 0
    %3975 = vmatmul.mubr.bf16.gmra.mrb[0].mxu0 %v3786
    %v3976 = vpop.f32.mrb[0].mxu0
    %v3977 = vadd.f32 %v3789, %v3976
    %v3978 = vpop.f32.mrb[0].mxu0
    %v3979 = vpop.f32.mrb[0].mxu0
    %v3980 = vadd.f32 %v3789, %v3979
    %v3981 = vpop.f32.mrb[0].mxu0
    %3982 = vmatprep.mubr.bf16.mxu0 0
    %3983 = vmatmul.mubr.bf16.gmra.mrb[0].mxu0 %v3787
    %v3984 = vpop.f32.mrb[0].mxu0
    %v3985 = vadd.f32 %v3789, %v3984
    %v3986 = vpop.f32.mrb[0].mxu0
    %v3987 = vpop.f32.mrb[0].mxu0
    %v3988 = vadd.f32 %v3789, %v3987
    %v3989 = vpop.f32.mrb[0].mxu0
    %3990 = vmatprep.mubr.bf16.mxu0 0
    %3991 = vmatmul.mubr.bf16.gmra.mrb[0].mxu0 %v3788
    %v3992 = vpop.f32.mrb[0].mxu0
    %v3993 = vadd.f32 %v3789, %v3992
    %v3994 = vpop.f32.mrb[0].mxu0
    %v3995 = vpop.f32.mrb[0].mxu0
    %v3996 = vadd.f32 %v3789, %v3995
    %v3997 = vpop.f32.mrb[0].mxu0
    %3998 = vdwg.mxu0
    %v3999 = vmax.f32 %v3873, 0.0
    %v4000 = vmax.f32 %v3876, 0.0
    %v4001 = vmax.f32 %v3881, 0.0
    %v4002 = vmax.f32 %v3884, 0.0
    %v4003 = vmax.f32 %v3889, 0.0
    %v4004 = vmax.f32 %v3892, 0.0
    %v4005 = vmax.f32 %v3897, 0.0
    %v4006 = vmax.f32 %v3900, 0.0
    %v4007 = vmax.f32 %v3905, 0.0
    %v4008 = vmax.f32 %v3908, 0.0
    %v4009 = vmax.f32 %v3913, 0.0
    %v4010 = vmax.f32 %v3916, 0.0
    %v4011 = vmax.f32 %v3921, 0.0
    %v4012 = vmax.f32 %v3924, 0.0
    %v4013 = vmax.f32 %v3929, 0.0
    %v4014 = vmax.f32 %v3932, 0.0
    %v4015 = vmax.f32 %v3937, 0.0
    %v4016 = vmax.f32 %v3940, 0.0
    %v4017 = vmax.f32 %v3945, 0.0
    %v4018 = vmax.f32 %v3948, 0.0
    %v4019 = vmax.f32 %v3953, 0.0
    %v4020 = vmax.f32 %v3956, 0.0
    %v4021 = vmax.f32 %v3961, 0.0
    %v4022 = vmax.f32 %v3964, 0.0
    %v4023 = vmax.f32 %v3969, 0.0
    %v4024 = vmax.f32 %v3972, 0.0
    %v4025 = vmax.f32 %v3977, 0.0
    %v4026 = vmax.f32 %v3980, 0.0
    %v4027 = vmax.f32 %v3985, 0.0
    %v4028 = vmax.f32 %v3988, 0.0
    %v4029 = vmax.f32 %v3993, 0.0
    %v4030 = vmax.f32 %v3996, 0.0
    %s4031 = scalar_lea.vmem %s1, 192
    %v4032 = vld [vmem:[%s4031] sm:$0xf]
    %v4033 = vld [vmem:[%s4031 + $0x4] sm:$0xf]
    %v4034 = vld [vmem:[%s4031 + $0x8] sm:$0xf]
    %v4035 = vld [vmem:[%s4031 + $0xc] sm:$0xf]
    %v4036 = vld [vmem:[%s4031 + $0x10] sm:$0xf]
    %v4037 = vld [vmem:[%s4031 + $0x14] sm:$0xf]
    %v4038 = vld [vmem:[%s4031 + $0x18] sm:$0xf]
    %v4039 = vld [vmem:[%s4031 + $0x1c] sm:$0xf]
    %v4040 = vld [vmem:[%s4031 + $0x20] sm:$0xf]
    %v4041 = vld [vmem:[%s4031 + $0x24] sm:$0xf]
    %v4042 = vld [vmem:[%s4031 + $0x28] sm:$0xf]
    %v4043 = vld [vmem:[%s4031 + $0x2c] sm:$0xf]
    %v4044 = vld [vmem:[%s4031 + $0x30] sm:$0xf]
    %v4045 = vld [vmem:[%s4031 + $0x34] sm:$0xf]
    %v4046 = vld [vmem:[%s4031 + $0x38] sm:$0xf]
    %v4047 = vld [vmem:[%s4031 + $0x3c] sm:$0xf]
    %v4048 = vpack.c.bf16 %v4000, %v3999
    %v4049 = vpack.c.bf16 %v4002, %v4001
    %v4050 = vpack.c.bf16 %v4004, %v4003
    %v4051 = vpack.c.bf16 %v4006, %v4005
    %v4052 = vpack.c.bf16 %v4008, %v4007
    %v4053 = vpack.c.bf16 %v4010, %v4009
    %v4054 = vpack.c.bf16 %v4012, %v4011
    %v4055 = vpack.c.bf16 %v4014, %v4013
    %v4056 = vpack.c.bf16 %v4016, %v4015
    %v4057 = vpack.c.bf16 %v4018, %v4017
    %v4058 = vpack.c.bf16 %v4020, %v4019
    %v4059 = vpack.c.bf16 %v4022, %v4021
    %v4060 = vpack.c.bf16 %v4024, %v4023
    %v4061 = vpack.c.bf16 %v4026, %v4025
    %v4062 = vpack.c.bf16 %v4028, %v4027
    %v4063 = vpack.c.bf16 %v4030, %v4029
    %v4064 = vld [vmem:[%s6 + $0x7] ss:$0 sm:$0xff]
    %v4081 = vunpack.c.l.b16 %v4032
    %v4082 = vunpack.c.l.b16 %v4033
    %v4083 = vunpack.c.l.b16 %v4034
    %v4084 = vunpack.c.l.b16 %v4035
    %v4085 = vunpack.c.l.b16 %v4036
    %v4086 = vunpack.c.l.b16 %v4037
    %v4087 = vunpack.c.l.b16 %v4038
    %v4088 = vunpack.c.l.b16 %v4039
    %v4089 = vunpack.c.l.b16 %v4040
    %v4090 = vunpack.c.l.b16 %v4041
    %v4091 = vunpack.c.l.b16 %v4042
    %v4092 = vunpack.c.l.b16 %v4043
    %v4093 = vunpack.c.l.b16 %v4044
    %v4094 = vunpack.c.l.b16 %v4045
    %v4095 = vunpack.c.l.b16 %v4046
    %v4096 = vunpack.c.l.b16 %v4047
    %v4097 = vpack.c.b16 %v4082, %v4081
    %v4098 = vpack.c.b16 %v4084, %v4083
    %v4099 = vpack.c.b16 %v4086, %v4085
    %v4100 = vpack.c.b16 %v4088, %v4087
    %v4101 = vpack.c.b16 %v4090, %v4089
    %v4102 = vpack.c.b16 %v4092, %v4091
    %v4103 = vpack.c.b16 %v4094, %v4093
    %v4104 = vpack.c.b16 %v4096, %v4095
    %4113 = vmatprep.subr.bf16.mxu0 0
    %4114 = vmatpush1.bf16.msra.mxu0 %v4097
    %4115 = vmatprep.subr.bf16.mxu0 0
    %4116 = vmatpush1.bf16.msra.mxu0 %v4098
    %4117 = vmatprep.subr.bf16.mxu0 0
    %4118 = vmatpush1.bf16.msra.mxu0 %v4099
    %4119 = vmatprep.subr.bf16.mxu0 0
    %4120 = vmatpush1.bf16.msra.mxu0 %v4100
    %4121 = vmatprep.subr.bf16.mxu0 0
    %4122 = vmatpush1.bf16.msra.mxu0 %v4101
    %4123 = vmatprep.subr.bf16.mxu0 0
    %4124 = vmatpush1.bf16.msra.mxu0 %v4102
    %4125 = vmatprep.subr.bf16.mxu0 0
    %4126 = vmatpush1.bf16.msra.mxu0 %v4103
    %4127 = vmatprep.subr.bf16.mxu0 0
    %4128 = vmatpush1.bf16.msra.mxu0 %v4104
    %4129 = vmatprep.subr.bf16.mxu0 0
    %4130 = vmatpush1.bf16.msra.mxu0 0
    %4131 = vmatprep.subr.bf16.mxu0 0
    %4132 = vmatpush1.bf16.msra.mxu0 0
    %4133 = vmatprep.subr.bf16.mxu0 0
    %4134 = vmatpush1.bf16.msra.mxu0 0
    %4135 = vmatprep.subr.bf16.mxu0 0
    %4136 = vmatpush1.bf16.msra.mxu0 0
    %4137 = vmatprep.subr.bf16.mxu0 0
    %4138 = vmatpush1.bf16.msra.mxu0 0
    %4139 = vmatprep.subr.bf16.mxu0 0
    %4140 = vmatpush1.bf16.msra.mxu0 0
    %4141 = vmatprep.subr.bf16.mxu0 0
    %4142 = vmatpush1.bf16.msra.mxu0 0
    %4143 = vmatprep.subr.bf16.mxu0 0
    %4144 = vmatpush1.bf16.msra.mxu0 0
    %4145 = vmatprep.mubr.bf16.mxu0 0
    %4146 = vmatmul.mubr.bf16.gmra.mrb[0].mxu0 %v4048
    %v4147 = vpop.f32.mrb[0].mxu0
    %v4148 = vadd.f32 %v4064, %v4147
    %v4149 = vpop.f32.mrb[0].mxu0
    %v4150 = vpop.f32.mrb[0].mxu0
    %v4151 = vadd.f32 %v4064, %v4150
    %v4152 = vpop.f32.mrb[0].mxu0
    %4153 = vmatprep.mubr.bf16.mxu0 0
    %4154 = vmatmul.mubr.bf16.gmra.mrb[0].mxu0 %v4049
    %v4155 = vpop.f32.mrb[0].mxu0
    %v4156 = vadd.f32 %v4064, %v4155
    %v4157 = vpop.f32.mrb[0].mxu0
    %v4158 = vpop.f32.mrb[0].mxu0
    %v4159 = vadd.f32 %v4064, %v4158
    %v4160 = vpop.f32.mrb[0].mxu0
    %4161 = vmatprep.mubr.bf16.mxu0 0
    %4162 = vmatmul.mubr.bf16.gmra.mrb[0].mxu0 %v4050
    %v4163 = vpop.f32.mrb[0].mxu0
    %v4164 = vadd.f32 %v4064, %v4163
    %v4165 = vpop.f32.mrb[0].mxu0
    %v4166 = vpop.f32.mrb[0].mxu0
    %v4167 = vadd.f32 %v4064, %v4166
    %v4168 = vpop.f32.mrb[0].mxu0
    %4169 = vmatprep.mubr.bf16.mxu0 0
    %4170 = vmatmul.mubr.bf16.gmra.mrb[0].mxu0 %v4051
    %v4171 = vpop.f32.mrb[0].mxu0
    %v4172 = vadd.f32 %v4064, %v4171
    %v4173 = vpop.f32.mrb[0].mxu0
    %v4174 = vpop.f32.mrb[0].mxu0
    %v4175 = vadd.f32 %v4064, %v4174
    %v4176 = vpop.f32.mrb[0].mxu0
    %4177 = vmatprep.mubr.bf16.mxu0 0
    %4178 = vmatmul.mubr.bf16.gmra.mrb[0].mxu0 %v4052
    %v4179 = vpop.f32.mrb[0].mxu0
    %v4180 = vadd.f32 %v4064, %v4179
    %v4181 = vpop.f32.mrb[0].mxu0
    %v4182 = vpop.f32.mrb[0].mxu0
    %v4183 = vadd.f32 %v4064, %v4182
    %v4184 = vpop.f32.mrb[0].mxu0
    %4185 = vmatprep.mubr.bf16.mxu0 0
    %4186 = vmatmul.mubr.bf16.gmra.mrb[0].mxu0 %v4053
    %v4187 = vpop.f32.mrb[0].mxu0
    %v4188 = vadd.f32 %v4064, %v4187
    %v4189 = vpop.f32.mrb[0].mxu0
    %v4190 = vpop.f32.mrb[0].mxu0
    %v4191 = vadd.f32 %v4064, %v4190
    %v4192 = vpop.f32.mrb[0].mxu0
    %4193 = vmatprep.mubr.bf16.mxu0 0
    %4194 = vmatmul.mubr.bf16.gmra.mrb[0].mxu0 %v4054
    %v4195 = vpop.f32.mrb[0].mxu0
    %v4196 = vadd.f32 %v4064, %v4195
    %v4197 = vpop.f32.mrb[0].mxu0
    %v4198 = vpop.f32.mrb[0].mxu0
    %v4199 = vadd.f32 %v4064, %v4198
    %v4200 = vpop.f32.mrb[0].mxu0
    %4201 = vmatprep.mubr.bf16.mxu0 0
    %4202 = vmatmul.mubr.bf16.gmra.mrb[0].mxu0 %v4055
    %v4203 = vpop.f32.mrb[0].mxu0
    %v4204 = vadd.f32 %v4064, %v4203
    %v4205 = vpop.f32.mrb[0].mxu0
    %v4206 = vpop.f32.mrb[0].mxu0
    %v4207 = vadd.f32 %v4064, %v4206
    %v4208 = vpop.f32.mrb[0].mxu0
    %4209 = vmatprep.mubr.bf16.mxu0 0
    %4210 = vmatmul.mubr.bf16.gmra.mrb[0].mxu0 %v4056
    %v4211 = vpop.f32.mrb[0].mxu0
    %v4212 = vadd.f32 %v4064, %v4211
    %v4213 = vpop.f32.mrb[0].mxu0
    %v4214 = vpop.f32.mrb[0].mxu0
    %v4215 = vadd.f32 %v4064, %v4214
    %v4216 = vpop.f32.mrb[0].mxu0
    %4217 = vmatprep.mubr.bf16.mxu0 0
    %4218 = vmatmul.mubr.bf16.gmra.mrb[0].mxu0 %v4057
    %v4219 = vpop.f32.mrb[0].mxu0
    %v4220 = vadd.f32 %v4064, %v4219
    %v4221 = vpop.f32.mrb[0].mxu0
    %v4222 = vpop.f32.mrb[0].mxu0
    %v4223 = vadd.f32 %v4064, %v4222
    %v4224 = vpop.f32.mrb[0].mxu0
    %4225 = vmatprep.mubr.bf16.mxu0 0
    %4226 = vmatmul.mubr.bf16.gmra.mrb[0].mxu0 %v4058
    %v4227 = vpop.f32.mrb[0].mxu0
    %v4228 = vadd.f32 %v4064, %v4227
    %v4229 = vpop.f32.mrb[0].mxu0
    %v4230 = vpop.f32.mrb[0].mxu0
    %v4231 = vadd.f32 %v4064, %v4230
    %v4232 = vpop.f32.mrb[0].mxu0
    %4233 = vmatprep.mubr.bf16.mxu0 0
    %4234 = vmatmul.mubr.bf16.gmra.mrb[0].mxu0 %v4059
    %v4235 = vpop.f32.mrb[0].mxu0
    %v4236 = vadd.f32 %v4064, %v4235
    %v4237 = vpop.f32.mrb[0].mxu0
    %v4238 = vpop.f32.mrb[0].mxu0
    %v4239 = vadd.f32 %v4064, %v4238
    %v4240 = vpop.f32.mrb[0].mxu0
    %4241 = vmatprep.mubr.bf16.mxu0 0
    %4242 = vmatmul.mubr.bf16.gmra.mrb[0].mxu0 %v4060
    %v4243 = vpop.f32.mrb[0].mxu0
    %v4244 = vadd.f32 %v4064, %v4243
    %v4245 = vpop.f32.mrb[0].mxu0
    %v4246 = vpop.f32.mrb[0].mxu0
    %v4247 = vadd.f32 %v4064, %v4246
    %v4248 = vpop.f32.mrb[0].mxu0
    %4249 = vmatprep.mubr.bf16.mxu0 0
    %4250 = vmatmul.mubr.bf16.gmra.mrb[0].mxu0 %v4061
    %v4251 = vpop.f32.mrb[0].mxu0
    %v4252 = vadd.f32 %v4064, %v4251
    %v4253 = vpop.f32.mrb[0].mxu0
    %v4254 = vpop.f32.mrb[0].mxu0
    %v4255 = vadd.f32 %v4064, %v4254
    %v4256 = vpop.f32.mrb[0].mxu0
    %4257 = vmatprep.mubr.bf16.mxu0 0
    %4258 = vmatmul.mubr.bf16.gmra.mrb[0].mxu0 %v4062
    %v4259 = vpop.f32.mrb[0].mxu0
    %v4260 = vadd.f32 %v4064, %v4259
    %v4261 = vpop.f32.mrb[0].mxu0
    %v4262 = vpop.f32.mrb[0].mxu0
    %v4263 = vadd.f32 %v4064, %v4262
    %v4264 = vpop.f32.mrb[0].mxu0
    %4265 = vmatprep.mubr.bf16.mxu0 0
    %4266 = vmatmul.mubr.bf16.gmra.mrb[0].mxu0 %v4063
    %v4267 = vpop.f32.mrb[0].mxu0
    %v4268 = vadd.f32 %v4064, %v4267
    %v4269 = vpop.f32.mrb[0].mxu0
    %v4270 = vpop.f32.mrb[0].mxu0
    %v4271 = vadd.f32 %v4064, %v4270
    %v4272 = vpop.f32.mrb[0].mxu0
    %4273 = vdwg.mxu0
    %v4274 = vmax.f32 %v4148, 0.0
    %v4275 = vmax.f32 %v4151, 0.0
    %v4276 = vmax.f32 %v4156, 0.0
    %v4277 = vmax.f32 %v4159, 0.0
    %v4278 = vmax.f32 %v4164, 0.0
    %v4279 = vmax.f32 %v4167, 0.0
    %v4280 = vmax.f32 %v4172, 0.0
    %v4281 = vmax.f32 %v4175, 0.0
    %v4282 = vmax.f32 %v4180, 0.0
    %v4283 = vmax.f32 %v4183, 0.0
    %v4284 = vmax.f32 %v4188, 0.0
    %v4285 = vmax.f32 %v4191, 0.0
    %v4286 = vmax.f32 %v4196, 0.0
    %v4287 = vmax.f32 %v4199, 0.0
    %v4288 = vmax.f32 %v4204, 0.0
    %v4289 = vmax.f32 %v4207, 0.0
    %v4290 = vmax.f32 %v4212, 0.0
    %v4291 = vmax.f32 %v4215, 0.0
    %v4292 = vmax.f32 %v4220, 0.0
    %v4293 = vmax.f32 %v4223, 0.0
    %v4294 = vmax.f32 %v4228, 0.0
    %v4295 = vmax.f32 %v4231, 0.0
    %v4296 = vmax.f32 %v4236, 0.0
    %v4297 = vmax.f32 %v4239, 0.0
    %v4298 = vmax.f32 %v4244, 0.0
    %v4299 = vmax.f32 %v4247, 0.0
    %v4300 = vmax.f32 %v4252, 0.0
    %v4301 = vmax.f32 %v4255, 0.0
    %v4302 = vmax.f32 %v4260, 0.0
    %v4303 = vmax.f32 %v4263, 0.0
    %v4304 = vmax.f32 %v4268, 0.0
    %v4305 = vmax.f32 %v4271, 0.0
    %s4306 = scalar_lea.vmem %s1, 256
    %v4307 = vld [vmem:[%s4306] sm:$0xf]
    %v4308 = vld [vmem:[%s4306 + $0x4] sm:$0xf]
    %v4309 = vld [vmem:[%s4306 + $0x8] sm:$0xf]
    %v4310 = vld [vmem:[%s4306 + $0xc] sm:$0xf]
    %v4311 = vld [vmem:[%s4306 + $0x10] sm:$0xf]
    %v4312 = vld [vmem:[%s4306 + $0x14] sm:$0xf]
    %v4313 = vld [vmem:[%s4306 + $0x18] sm:$0xf]
    %v4314 = vld [vmem:[%s4306 + $0x1c] sm:$0xf]
    %v4315 = vld [vmem:[%s4306 + $0x20] sm:$0xf]
    %v4316 = vld [vmem:[%s4306 + $0x24] sm:$0xf]
    %v4317 = vld [vmem:[%s4306 + $0x28] sm:$0xf]
    %v4318 = vld [vmem:[%s4306 + $0x2c] sm:$0xf]
    %v4319 = vld [vmem:[%s4306 + $0x30] sm:$0xf]
    %v4320 = vld [vmem:[%s4306 + $0x34] sm:$0xf]
    %v4321 = vld [vmem:[%s4306 + $0x38] sm:$0xf]
    %v4322 = vld [vmem:[%s4306 + $0x3c] sm:$0xf]
    %v4323 = vpack.c.bf16 %v4275, %v4274
    %v4324 = vpack.c.bf16 %v4277, %v4276
    %v4325 = vpack.c.bf16 %v4279, %v4278
    %v4326 = vpack.c.bf16 %v4281, %v4280
    %v4327 = vpack.c.bf16 %v4283, %v4282
    %v4328 = vpack.c.bf16 %v4285, %v4284
    %v4329 = vpack.c.bf16 %v4287, %v4286
    %v4330 = vpack.c.bf16 %v4289, %v4288
    %v4331 = vpack.c.bf16 %v4291, %v4290
    %v4332 = vpack.c.bf16 %v4293, %v4292
    %v4333 = vpack.c.bf16 %v4295, %v4294
    %v4334 = vpack.c.bf16 %v4297, %v4296
    %v4335 = vpack.c.bf16 %v4299, %v4298
    %v4336 = vpack.c.bf16 %v4301, %v4300
    %v4337 = vpack.c.bf16 %v4303, %v4302
    %v4338 = vpack.c.bf16 %v4305, %v4304
    %v4339 = vld [vmem:[%s6 + $0x40] ss:$0 sm:$0xff]
    %v4356 = vunpack.c.l.b16 %v4307
    %v4357 = vunpack.c.l.b16 %v4308
    %v4358 = vunpack.c.l.b16 %v4309
    %v4359 = vunpack.c.l.b16 %v4310
    %v4360 = vunpack.c.l.b16 %v4311
    %v4361 = vunpack.c.l.b16 %v4312
    %v4362 = vunpack.c.l.b16 %v4313
    %v4363 = vunpack.c.l.b16 %v4314
    %v4364 = vunpack.c.l.b16 %v4315
    %v4365 = vunpack.c.l.b16 %v4316
    %v4366 = vunpack.c.l.b16 %v4317
    %v4367 = vunpack.c.l.b16 %v4318
    %v4368 = vunpack.c.l.b16 %v4319
    %v4369 = vunpack.c.l.b16 %v4320
    %v4370 = vunpack.c.l.b16 %v4321
    %v4371 = vunpack.c.l.b16 %v4322
    %v4372 = vpack.c.b16 %v4357, %v4356
    %v4373 = vpack.c.b16 %v4359, %v4358
    %v4374 = vpack.c.b16 %v4361, %v4360
    %v4375 = vpack.c.b16 %v4363, %v4362
    %v4376 = vpack.c.b16 %v4365, %v4364
    %v4377 = vpack.c.b16 %v4367, %v4366
    %v4378 = vpack.c.b16 %v4369, %v4368
    %v4379 = vpack.c.b16 %v4371, %v4370
    %4388 = vmatprep.subr.bf16.mxu0 0
    %4389 = vmatpush1.bf16.msra.mxu0 %v4372
    %4390 = vmatprep.subr.bf16.mxu0 0
    %4391 = vmatpush1.bf16.msra.mxu0 %v4373
    %4392 = vmatprep.subr.bf16.mxu0 0
    %4393 = vmatpush1.bf16.msra.mxu0 %v4374
    %4394 = vmatprep.subr.bf16.mxu0 0
    %4395 = vmatpush1.bf16.msra.mxu0 %v4375
    %4396 = vmatprep.subr.bf16.mxu0 0
    %4397 = vmatpush1.bf16.msra.mxu0 %v4376
    %4398 = vmatprep.subr.bf16.mxu0 0
    %4399 = vmatpush1.bf16.msra.mxu0 %v4377
    %4400 = vmatprep.subr.bf16.mxu0 0
    %4401 = vmatpush1.bf16.msra.mxu0 %v4378
    %4402 = vmatprep.subr.bf16.mxu0 0
    %4403 = vmatpush1.bf16.msra.mxu0 %v4379
    %4404 = vmatprep.subr.bf16.mxu0 0
    %4405 = vmatpush1.bf16.msra.mxu0 0
    %4406 = vmatprep.subr.bf16.mxu0 0
    %4407 = vmatpush1.bf16.msra.mxu0 0
    %4408 = vmatprep.subr.bf16.mxu0 0
    %4409 = vmatpush1.bf16.msra.mxu0 0
    %4410 = vmatprep.subr.bf16.mxu0 0
    %4411 = vmatpush1.bf16.msra.mxu0 0
    %4412 = vmatprep.subr.bf16.mxu0 0
    %4413 = vmatpush1.bf16.msra.mxu0 0
    %4414 = vmatprep.subr.bf16.mxu0 0
    %4415 = vmatpush1.bf16.msra.mxu0 0
    %4416 = vmatprep.subr.bf16.mxu0 0
    %4417 = vmatpush1.bf16.msra.mxu0 0
    %4418 = vmatprep.subr.bf16.mxu0 0
    %4419 = vmatpush1.bf16.msra.mxu0 0
    %4420 = vmatprep.mubr.bf16.mxu0 0
    %4421 = vmatmul.mubr.bf16.gmra.mrb[0].mxu0 %v4323
    %v4422 = vpop.f32.mrb[0].mxu0
    %v4423 = vadd.f32 %v4339, %v4422
    %v4424 = vpop.f32.mrb[0].mxu0
    %v4425 = vpop.f32.mrb[0].mxu0
    %v4426 = vadd.f32 %v4339, %v4425
    %v4427 = vpop.f32.mrb[0].mxu0
    %4428 = vmatprep.mubr.bf16.mxu0 0
    %4429 = vmatmul.mubr.bf16.gmra.mrb[0].mxu0 %v4324
    %v4430 = vpop.f32.mrb[0].mxu0
    %v4431 = vadd.f32 %v4339, %v4430
    %v4432 = vpop.f32.mrb[0].mxu0
    %v4433 = vpop.f32.mrb[0].mxu0
    %v4434 = vadd.f32 %v4339, %v4433
    %v4435 = vpop.f32.mrb[0].mxu0
    %4436 = vmatprep.mubr.bf16.mxu0 0
    %4437 = vmatmul.mubr.bf16.gmra.mrb[0].mxu0 %v4325
    %v4438 = vpop.f32.mrb[0].mxu0
    %v4439 = vadd.f32 %v4339, %v4438
    %v4440 = vpop.f32.mrb[0].mxu0
    %v4441 = vpop.f32.mrb[0].mxu0
    %v4442 = vadd.f32 %v4339, %v4441
    %v4443 = vpop.f32.mrb[0].mxu0
    %4444 = vmatprep.mubr.bf16.mxu0 0
    %4445 = vmatmul.mubr.bf16.gmra.mrb[0].mxu0 %v4326
    %v4446 = vpop.f32.mrb[0].mxu0
    %v4447 = vadd.f32 %v4339, %v4446
    %v4448 = vpop.f32.mrb[0].mxu0
    %v4449 = vpop.f32.mrb[0].mxu0
    %v4450 = vadd.f32 %v4339, %v4449
    %v4451 = vpop.f32.mrb[0].mxu0
    %4452 = vmatprep.mubr.bf16.mxu0 0
    %4453 = vmatmul.mubr.bf16.gmra.mrb[0].mxu0 %v4327
    %v4454 = vpop.f32.mrb[0].mxu0
    %v4455 = vadd.f32 %v4339, %v4454
    %v4456 = vpop.f32.mrb[0].mxu0
    %v4457 = vpop.f32.mrb[0].mxu0
    %v4458 = vadd.f32 %v4339, %v4457
    %v4459 = vpop.f32.mrb[0].mxu0
    %4460 = vmatprep.mubr.bf16.mxu0 0
    %4461 = vmatmul.mubr.bf16.gmra.mrb[0].mxu0 %v4328
    %v4462 = vpop.f32.mrb[0].mxu0
    %v4463 = vadd.f32 %v4339, %v4462
    %v4464 = vpop.f32.mrb[0].mxu0
    %v4465 = vpop.f32.mrb[0].mxu0
    %v4466 = vadd.f32 %v4339, %v4465
    %v4467 = vpop.f32.mrb[0].mxu0
    %4468 = vmatprep.mubr.bf16.mxu0 0
    %4469 = vmatmul.mubr.bf16.gmra.mrb[0].mxu0 %v4329
    %v4470 = vpop.f32.mrb[0].mxu0
    %v4471 = vadd.f32 %v4339, %v4470
    %v4472 = vpop.f32.mrb[0].mxu0
    %v4473 = vpop.f32.mrb[0].mxu0
    %v4474 = vadd.f32 %v4339, %v4473
    %v4475 = vpop.f32.mrb[0].mxu0
    %4476 = vmatprep.mubr.bf16.mxu0 0
    %4477 = vmatmul.mubr.bf16.gmra.mrb[0].mxu0 %v4330
    %v4478 = vpop.f32.mrb[0].mxu0
    %v4479 = vadd.f32 %v4339, %v4478
    %v4480 = vpop.f32.mrb[0].mxu0
    %v4481 = vpop.f32.mrb[0].mxu0
    %v4482 = vadd.f32 %v4339, %v4481
    %v4483 = vpop.f32.mrb[0].mxu0
    %4484 = vmatprep.mubr.bf16.mxu0 0
    %4485 = vmatmul.mubr.bf16.gmra.mrb[0].mxu0 %v4331
    %v4486 = vpop.f32.mrb[0].mxu0
    %v4487 = vadd.f32 %v4339, %v4486
    %v4488 = vpop.f32.mrb[0].mxu0
    %v4489 = vpop.f32.mrb[0].mxu0
    %v4490 = vadd.f32 %v4339, %v4489
    %v4491 = vpop.f32.mrb[0].mxu0
    %4492 = vmatprep.mubr.bf16.mxu0 0
    %4493 = vmatmul.mubr.bf16.gmra.mrb[0].mxu0 %v4332
    %v4494 = vpop.f32.mrb[0].mxu0
    %v4495 = vadd.f32 %v4339, %v4494
    %v4496 = vpop.f32.mrb[0].mxu0
    %v4497 = vpop.f32.mrb[0].mxu0
    %v4498 = vadd.f32 %v4339, %v4497
    %v4499 = vpop.f32.mrb[0].mxu0
    %4500 = vmatprep.mubr.bf16.mxu0 0
    %4501 = vmatmul.mubr.bf16.gmra.mrb[0].mxu0 %v4333
    %v4502 = vpop.f32.mrb[0].mxu0
    %v4503 = vadd.f32 %v4339, %v4502
    %v4504 = vpop.f32.mrb[0].mxu0
    %v4505 = vpop.f32.mrb[0].mxu0
    %v4506 = vadd.f32 %v4339, %v4505
    %v4507 = vpop.f32.mrb[0].mxu0
    %4508 = vmatprep.mubr.bf16.mxu0 0
    %4509 = vmatmul.mubr.bf16.gmra.mrb[0].mxu0 %v4334
    %v4510 = vpop.f32.mrb[0].mxu0
    %v4511 = vadd.f32 %v4339, %v4510
    %v4512 = vpop.f32.mrb[0].mxu0
    %v4513 = vpop.f32.mrb[0].mxu0
    %v4514 = vadd.f32 %v4339, %v4513
    %v4515 = vpop.f32.mrb[0].mxu0
    %4516 = vmatprep.mubr.bf16.mxu0 0
    %4517 = vmatmul.mubr.bf16.gmra.mrb[0].mxu0 %v4335
    %v4518 = vpop.f32.mrb[0].mxu0
    %v4519 = vadd.f32 %v4339, %v4518
    %v4520 = vpop.f32.mrb[0].mxu0
    %v4521 = vpop.f32.mrb[0].mxu0
    %v4522 = vadd.f32 %v4339, %v4521
    %v4523 = vpop.f32.mrb[0].mxu0
    %4524 = vmatprep.mubr.bf16.mxu0 0
    %4525 = vmatmul.mubr.bf16.gmra.mrb[0].mxu0 %v4336
    %v4526 = vpop.f32.mrb[0].mxu0
    %v4527 = vadd.f32 %v4339, %v4526
    %v4528 = vpop.f32.mrb[0].mxu0
    %v4529 = vpop.f32.mrb[0].mxu0
    %v4530 = vadd.f32 %v4339, %v4529
    %v4531 = vpop.f32.mrb[0].mxu0
    %4532 = vmatprep.mubr.bf16.mxu0 0
    %4533 = vmatmul.mubr.bf16.gmra.mrb[0].mxu0 %v4337
    %v4534 = vpop.f32.mrb[0].mxu0
    %v4535 = vadd.f32 %v4339, %v4534
    %v4536 = vpop.f32.mrb[0].mxu0
    %v4537 = vpop.f32.mrb[0].mxu0
    %v4538 = vadd.f32 %v4339, %v4537
    %v4539 = vpop.f32.mrb[0].mxu0
    %4540 = vmatprep.mubr.bf16.mxu0 0
    %4541 = vmatmul.mubr.bf16.gmra.mrb[0].mxu0 %v4338
    %v4542 = vpop.f32.mrb[0].mxu0
    %v4543 = vadd.f32 %v4339, %v4542
    %v4544 = vpop.f32.mrb[0].mxu0
    %v4545 = vpop.f32.mrb[0].mxu0
    %v4546 = vadd.f32 %v4339, %v4545
    %v4547 = vpop.f32.mrb[0].mxu0
    %4548 = vdwg.mxu0
    %4549 = vst [vmem:[%s7] sm:$0xff] %v4423
    %4550 = vst [vmem:[%s7 + $0x8] sm:$0xff] %v4426
    %4551 = vst [vmem:[%s7 + $0x10] sm:$0xff] %v4431
    %4552 = vst [vmem:[%s7 + $0x18] sm:$0xff] %v4434
    %4553 = vst [vmem:[%s7 + $0x20] sm:$0xff] %v4439
    %4554 = vst [vmem:[%s7 + $0x28] sm:$0xff] %v4442
    %4555 = vst [vmem:[%s7 + $0x30] sm:$0xff] %v4447
    %4556 = vst [vmem:[%s7 + $0x38] sm:$0xff] %v4450
    %4557 = vst [vmem:[%s7 + $0x40] sm:$0xff] %v4455
    %4558 = vst [vmem:[%s7 + $0x48] sm:$0xff] %v4458
    %4559 = vst [vmem:[%s7 + $0x50] sm:$0xff] %v4463
    %4560 = vst [vmem:[%s7 + $0x58] sm:$0xff] %v4466
    %4561 = vst [vmem:[%s7 + $0x60] sm:$0xff] %v4471
    %4562 = vst [vmem:[%s7 + $0x68] sm:$0xff] %v4474
    %4563 = vst [vmem:[%s7 + $0x70] sm:$0xff] %v4479
    %4564 = vst [vmem:[%s7 + $0x78] sm:$0xff] %v4482
    %4565 = vst [vmem:[%s7 + $0x80] sm:$0xff] %v4487
    %4566 = vst [vmem:[%s7 + $0x88] sm:$0xff] %v4490
    %4567 = vst [vmem:[%s7 + $0x90] sm:$0xff] %v4495
    %4568 = vst [vmem:[%s7 + $0x98] sm:$0xff] %v4498
    %4569 = vst [vmem:[%s7 + $0xa0] sm:$0xff] %v4503
    %4570 = vst [vmem:[%s7 + $0xa8] sm:$0xff] %v4506
    %4571 = vst [vmem:[%s7 + $0xb0] sm:$0xff] %v4511
    %4572 = vst [vmem:[%s7 + $0xb8] sm:$0xff] %v4514
    %4573 = vst [vmem:[%s7 + $0xc0] sm:$0xff] %v4519
    %4574 = vst [vmem:[%s7 + $0xc8] sm:$0xff] %v4522
    %4575 = vst [vmem:[%s7 + $0xd0] sm:$0xff] %v4527
    %4576 = vst [vmem:[%s7 + $0xd8] sm:$0xff] %v4530
    %4577 = vst [vmem:[%s7 + $0xe0] sm:$0xff] %v4535
    %4578 = vst [vmem:[%s7 + $0xe8] sm:$0xff] %v4538
    %4579 = vst [vmem:[%s7 + $0xf0] sm:$0xff] %v4543
    %4580 = vst [vmem:[%s7 + $0xf8] sm:$0xff] %v4546
    // Predicated region
    $region22: #{dqn_forward.1} parent=1 // pred_check
      _
    $region23: #{dqn_forward.1} parent=1 // pred_check_branch
      %4582 = sbr.rel (0) target = $region25
    $region24: #{dqn_forward.1} parent=1 // pred_region
      _
    $region25: #{dqn_forward.1} parent=1 // pred_fallthru
      _
    // Predicated region
    $region26: #{dqn_forward.1} parent=1 // pred_check
      _
    $region27: #{dqn_forward.1} parent=1 // pred_check_branch
      %4584 = sbr.rel (0) target = $region29
    $region28: #{dqn_forward.1} parent=1 // pred_region
      _
    $region29: #{dqn_forward.1} parent=1 // pred_fallthru
      _
  %4585 = vsyncmov [#allocation4]
  %s4586 = vpop.sfrf %4585
  %p4587 = scmp.eq.s32.totalorder %s4586, 0
  %p4588 = pneg %p4587
  %4590 = shalt.err (%p4588)
  %s4591 = scalar_lea.sflag [#allocation4], 1
  %4592 = vsyncmov %s4591
  %s4593 = vpop.sfrf %4592
  %p4594 = scmp.eq.s32.totalorder %s4593, 0
  %p4595 = pneg %p4594
  %4597 = shalt.err (%p4595)

</llo_original>
